<compile_context>
chip_gen: v6e
topology: v6e:2x2x1
jax: 0.10.0
libtpu: 0.0.40
codegen_flags: <defaults>
</compile_context>

<pallas_src>
import math

import jax
import jax.numpy as jnp
import numpy as np
from jax.experimental import pallas as pl
from jax.experimental.pallas import tpu as pltpu


# ----------------------------- Pallas kernel -------------------------------- #

def cnn_g_kernel(x_ref,
                 nf40, nl40, nf20, nl20, nf10, nl10,
                 w1, b1, w2, b2, w3, b3, w4, b4, w5, b5, w6, b6,
                 fc1_w, fc1_b, fc2_w, fc2_b,
                 logits_ref, logprob_ref,
                 s1, s2, s3):
    tb = logits_ref.shape[1]                       # samples per grid step

    def conv3_relu(h, w_ref, b_ref, nf_ref, nl_ref):
        # h: (M, Cin) f32 slab, rows = sample-major positions.
        # Shift by +/-1 position via sublane roll (XLU); the f32 0/1 masks zero the
        # first/last position of every sample -> 'same' padding AND no cross-sample
        # leakage.  (M-1)-roll == shift -1 with wrap, and wrapped rows are masked.
        m = h.shape[0]
        xm = (pltpu.roll(h, 1, axis=0) * nf_ref[...]).astype(jnp.bfloat16)      # x[l-1]
        xc = h.astype(jnp.bfloat16)                                             # x[l]
        xp = (pltpu.roll(h, m - 1, axis=0) * nl_ref[...]).astype(jnp.bfloat16)  # x[l+1]
        patches = jnp.concatenate([xm, xc, xp], axis=1)        # (M, 3*Cin) im2col
        y = jnp.dot(patches, w_ref[...], preferred_element_type=jnp.float32)
        return jnp.maximum(y + b_ref[...], 0.0)                # bias + ReLU in f32

    def max_pool2(h, scratch):
        # MaxPool1d(2): stride-2 row downselect via a VMEM scratch, no matmuls.
        m = h.shape[0]
        scratch[...] = h
        even = scratch[pl.ds(0, m // 2, stride=2), :]
        odd = scratch[pl.ds(1, m // 2, stride=2), :]
        return jnp.maximum(even, odd)                          # (M//2, C) f32

    h = conv3_relu(x_ref[...], w1, b1, nf40, nl40)             # (tb*40, 32)
    h = conv3_relu(h, w2, b2, nf40, nl40)                      # (tb*40, 32)
    h = max_pool2(h, s1)                                       # (tb*20, 32)
    h = conv3_relu(h, w3, b3, nf20, nl20)                      # (tb*20, 64)
    h = conv3_relu(h, w4, b4, nf20, nl20)                      # (tb*20, 64)
    h = max_pool2(h, s2)                                       # (tb*10, 64)
    h = conv3_relu(h, w5, b5, nf10, nl10)                      # (tb*10, 128)
    h = conv3_relu(h, w6, b6, nf10, nl10)                      # (tb*10, 128)
    # nn.Dropout(p=0.5) is identity at inference.

    # Fused MaxPool1d(2) + flatten(x, 1): for each pooled position l, gather the two
    # taps (rows b*10 + 2l and b*10 + 2l+1) with stride-10 sublane reads, max them,
    # and lane-concatenate so hf[b, l*128 + c] matches the repacked fc1 weight rows.
    s3[...] = h
    parts = []
    for l in range(5):
        e = s3[pl.ds(2 * l, tb, stride=10), :]
        o = s3[pl.ds(2 * l + 1, tb, stride=10), :]
        parts.append(jnp.maximum(e, o).astype(jnp.bfloat16))
    hf = jnp.concatenate(parts, axis=1)                        # (tb, 640) bf16

    z1 = jnp.dot(hf, fc1_w[...], preferred_element_type=jnp.float32) + fc1_b[...]
    z2 = jnp.dot(z1.astype(jnp.bfloat16), fc2_w[...],
                 preferred_element_type=jnp.float32) + fc2_b[...]   # (tb, classes)

    logits_ref[0] = z2
    m = jnp.max(z2, axis=1, keepdims=True)
    lse = m + jnp.log(jnp.sum(jnp.exp(z2 - m), axis=1, keepdims=True))
    logprob_ref[0] = z2 - lse


# ------------------------------- Wrapper ------------------------------------ #

def prepare_params(params, segment_size=40):
    """One-time host-side repack of PyTorch-layout params into kernel layout.

    Conv weights (Cout, Cin, 3) -> (3*Cin, Cout) bf16 (row index = k*Cin + cin);
    fc1 (160, 640)              -> (640, 160) bf16 with row index l*128 + c
                                   (matches the kernel's (l-major, c-minor) flatten);
    fc2 (classes, 160)          -> (160, classes) bf16; biases -> (1, C) f32.
    """
    kp = {}
    for i in range(1, 7):
        w = params[f"conv{i}_w"]                              # (Cout, Cin, 3)
        cout, cin, _ = w.shape
        kp[f"conv{i}_w"] = (jnp.transpose(w, (2, 1, 0))       # (3, Cin, Cout)
                            .reshape(3 * cin, cout)
                            .astype(jnp.bfloat16))
        kp[f"conv{i}_b"] = params[f"conv{i}_b"].reshape(1, -1).astype(jnp.float32)

    l_final = segment_size // 8                               # 5 after 3 pools
    c_final = 128
    out1 = params["fc1_w"].shape[0]                           # 4 * segment_size
    kp["fc1_w"] = (params["fc1_w"].T                          # (640, 160), row = c*5 + l
                   .reshape(c_final, l_final, out1)           # (c, l, o)
                   .transpose(1, 0, 2)                        # (l, c, o)
                   .reshape(l_final * c_final, out1)          # row = l*128 + c
                   .astype(jnp.bfloat16))
    kp["fc1_b"] = params["fc1_b"].reshape(1, -1).astype(jnp.float32)
    kp["fc2_w"] = params["fc2_w"].T.astype(jnp.bfloat16)      # (160, classes)
    kp["fc2_b"] = params["fc2_b"].reshape(1, -1).astype(jnp.float32)
    return kp


def cnn_g_forward(x_ncl, kparams, tb=8):
    """x_ncl: (B, num_channels, 40) PyTorch NCL layout. Returns (logits, log_probs)."""
    B, C0, L0 = x_ncl.shape
    classes = kparams["fc2_b"].shape[1]
    if tb % 4 != 0:
        raise ValueError("tb must be a multiple of 4 (keeps all slab heights 8-aligned)")

    G = -(-B // tb)                                           # cdiv
    B_pad = G * tb

    x_blc = jnp.transpose(x_ncl, (0, 2, 1)).astype(jnp.float32)   # (B, 40, C0)
    if B_pad != B:
        x_blc = jnp.pad(x_blc, ((0, B_pad - B), (0, 0), (0, 0)))
    x_slab = x_blc.reshape(B_pad * L0, C0)                    # row = b*40 + l

    # Per-sample boundary masks (0 at the first / last position of each sample).
    def masks_for(L):
        r = np.arange(tb * L) % L
        nf = jnp.asarray((r != 0).astype(np.float32).reshape(-1, 1))
        nl = jnp.asarray((r != L - 1).astype(np.float32).reshape(-1, 1))
        return nf, nl

    nf40, nl40 = masks_for(40)
    nf20, nl20 = masks_for(20)
    nf10, nl10 = masks_for(10)
    mask_args = [nf40, nl40, nf20, nl20, nf10, nl10]

    weight_args = []
    for i in range(1, 7):
        weight_args += [kparams[f"conv{i}_w"], kparams[f"conv{i}_b"]]
    weight_args += [kparams["fc1_w"], kparams["fc1_b"], kparams["fc2_w"], kparams["fc2_b"]]

    def pinned(arr):
        return pl.BlockSpec(arr.shape, lambda g, n=arr.ndim: (0,) * n)   # resident across grid

    in_specs = ([pl.BlockSpec((tb * L0, C0), lambda g: (g, 0))]
                + [pinned(a) for a in mask_args + weight_args])
    out_spec = pl.BlockSpec((1, tb, classes), lambda g: (g, 0, 0))

    # VMEM budget from the per-step footprint (pinned weights/masks x2 pipeline
    # buffers + input/output blocks + scratch + headroom), not the whole batch.
    pinned_bytes = sum(int(a.size) * a.dtype.itemsize for a in mask_args + weight_args)
    step_io_bytes = tb * L0 * C0 * 4 + 2 * tb * classes * 4
    scratch_bytes = (tb * 40 * 32 + tb * 20 * 64 + tb * 10 * 128) * 4
    vmem_limit = int(min(32 * 1024 * 1024,
                         2 * (pinned_bytes + step_io_bytes) + scratch_bytes + 6 * 1024 * 1024))

    logits3, logprobs3 = pl.pallas_call(
        cnn_g_kernel,
        grid=(G,),
        out_shape=(jax.ShapeDtypeStruct((G, tb, classes), jnp.float32),
                   jax.ShapeDtypeStruct((G, tb, classes), jnp.float32)),
        in_specs=in_specs,
        out_specs=(out_spec, out_spec),
        scratch_shapes=[pltpu.VMEM((tb * 40, 32), jnp.float32),
                        pltpu.VMEM((tb * 20, 64), jnp.float32),
                        pltpu.VMEM((tb * 10, 128), jnp.float32)],
        compiler_params=pltpu.CompilerParams(
            dimension_semantics=("parallel",),
            vmem_limit_bytes=vmem_limit),
    )(x_slab, *mask_args, *weight_args)

    logits = logits3.reshape(B_pad, classes)[:B]
    logprobs = logprobs3.reshape(B_pad, classes)[:B]
    return logits, logprobs


# ---------------------- Pure-JAX reference (PyTorch layout) ----------------- #
# Uses the same bf16 MXU-operand / f32-accumulation quantization as the kernel.

def _ref_conv1d_same(x, w, b):
    B, Cin, L = x.shape
    xpad = jnp.pad(x, ((0, 0), (0, 0), (1, 1))).astype(jnp.bfloat16)
    wb = w.astype(jnp.bfloat16)
    out = jnp.zeros((B, w.shape[0], L), jnp.float32)
    for k in range(3):
        out = out + jnp.einsum("bcl,oc->bol", xpad[:, :, k:k + L], wb[:, :, k],
                               preferred_element_type=jnp.float32)
    return jax.nn.relu(out + b[None, :, None])


def _ref_maxpool2(x):
    return jnp.maximum(x[:, :, 0::2], x[:, :, 1::2])


def reference_forward(x, params):
    h = x
    h = _ref_conv1d_same(h, params["conv1_w"], params["conv1_b"])
    h = _ref_conv1d_same(h, params["conv2_w"], params["conv2_b"])
    h = _ref_maxpool2(h)
    h = _ref_conv1d_same(h, params["conv3_w"], params["conv3_b"])
    h = _ref_conv1d_same(h, params["conv4_w"], params["conv4_b"])
    h = _ref_maxpool2(h)
    h = _ref_conv1d_same(h, params["conv5_w"], params["conv5_b"])
    h = _ref_conv1d_same(h, params["conv6_w"], params["conv6_b"])
    h = _ref_maxpool2(h)
    flat = h.reshape(h.shape[0], -1)                       # PyTorch flatten(x, 1): (B, C*L)
    z1 = jnp.dot(flat.astype(jnp.bfloat16), params["fc1_w"].T.astype(jnp.bfloat16),
                 preferred_element_type=jnp.float32) + params["fc1_b"]
    z2 = jnp.dot(z1.astype(jnp.bfloat16), params["fc2_w"].T.astype(jnp.bfloat16),
                 preferred_element_type=jnp.float32) + params["fc2_b"]
    return z2, jax.nn.log_softmax(z2, axis=1)


# ----------------------------- Param init ----------------------------------- #

def init_params(key, num_channels, segment_size, classes):
    params = {}
    conv_defs = [(num_channels, 32), (32, 32), (32, 64), (64, 64), (64, 128), (128, 128)]
    keys = jax.random.split(key, 16)
    ki = 0
    for i, (cin, cout) in enumerate(conv_defs, start=1):
        bound = 1.0 / math.sqrt(cin * 3)
        params[f"conv{i}_w"] = jax.random.uniform(keys[ki], (cout, cin, 3), jnp.float32, -bound, bound); ki += 1
        params[f"conv{i}_b"] = jax.random.uniform(keys[ki], (cout,), jnp.float32, -bound, bound); ki += 1
    infeat = 16 * segment_size
    out1 = 4 * segment_size
    bound = 1.0 / math.sqrt(infeat)
    params["fc1_w"] = jax.random.uniform(keys[ki], (out1, infeat), jnp.float32, -bound, bound); ki += 1
    params["fc1_b"] = jax.random.uniform(keys[ki], (out1,), jnp.float32, -bound, bound); ki += 1
    bound = 1.0 / math.sqrt(out1)
    params["fc2_w"] = jax.random.uniform(keys[ki], (classes, out1), jnp.float32, -bound, bound); ki += 1
    params["fc2_b"] = jax.random.uniform(keys[ki], (classes,), jnp.float32, -bound, bound); ki += 1
    return params


# --------------------------------- Main -------------------------------------- #

if __name__ == "__main__":
    num_channels, segment_size, classes = 4, 40, 10
    B, TB = 8, 4                                   # 2 grid steps -> both v7x TCs usable

    key = jax.random.PRNGKey(0)
    pkey, xkey = jax.random.split(key)
    params = init_params(pkey, num_channels, segment_size, classes)
    x = jax.random.normal(xkey, (B, num_channels, segment_size), jnp.float32)

    kparams = prepare_params(params, segment_size)        # one-time host-side weight repack
    logits, logprobs = cnn_g_forward(x, kparams, tb=TB)
    jax.block_until_ready((logits, logprobs))

    ref_logits, ref_logprobs = reference_forward(x, params)
    np.testing.assert_allclose(np.asarray(logits), np.asarray(ref_logits), rtol=5e-3, atol=5e-3)
    np.testing.assert_allclose(np.asarray(logprobs), np.asarray(ref_logprobs), rtol=5e-3, atol=5e-3)

    print("KERNEL_OK")
</pallas_src>

<mosaic_0001>
module attributes {stable_mosaic.version = 11 : i64} {
  func.func @cnn_g_kernel(%arg0: i32, %arg1: memref<160x4xf32, #tpu.memory_space<vmem>>, %arg2: memref<160x1xf32, #tpu.memory_space<vmem>>, %arg3: memref<160x1xf32, #tpu.memory_space<vmem>>, %arg4: memref<80x1xf32, #tpu.memory_space<vmem>>, %arg5: memref<80x1xf32, #tpu.memory_space<vmem>>, %arg6: memref<40x1xf32, #tpu.memory_space<vmem>>, %arg7: memref<40x1xf32, #tpu.memory_space<vmem>>, %arg8: memref<12x32xbf16, #tpu.memory_space<vmem>>, %arg9: memref<1x32xf32, #tpu.memory_space<vmem>>, %arg10: memref<96x32xbf16, #tpu.memory_space<vmem>>, %arg11: memref<1x32xf32, #tpu.memory_space<vmem>>, %arg12: memref<96x64xbf16, #tpu.memory_space<vmem>>, %arg13: memref<1x64xf32, #tpu.memory_space<vmem>>, %arg14: memref<192x64xbf16, #tpu.memory_space<vmem>>, %arg15: memref<1x64xf32, #tpu.memory_space<vmem>>, %arg16: memref<192x128xbf16, #tpu.memory_space<vmem>>, %arg17: memref<1x128xf32, #tpu.memory_space<vmem>>, %arg18: memref<384x128xbf16, #tpu.memory_space<vmem>>, %arg19: memref<1x128xf32, #tpu.memory_space<vmem>>, %arg20: memref<640x160xbf16, #tpu.memory_space<vmem>>, %arg21: memref<1x160xf32, #tpu.memory_space<vmem>>, %arg22: memref<160x10xbf16, #tpu.memory_space<vmem>>, %arg23: memref<1x10xf32, #tpu.memory_space<vmem>>, %arg24: memref<1x4x10xf32, #tpu.memory_space<vmem>>, %arg25: memref<1x4x10xf32, #tpu.memory_space<vmem>>, %arg26: memref<160x32xf32, #tpu.memory_space<vmem>>, %arg27: memref<80x64xf32, #tpu.memory_space<vmem>>, %arg28: memref<40x128xf32, #tpu.memory_space<vmem>>) attributes {dimension_semantics = [#tpu.dimension_semantics<parallel>], iteration_bounds = array<i64: 2>, scalar_prefetch = 0 : i64, scratch_operands = 3 : i64, tpu.core_type = #tpu.core_type<tc>, window_params = [{transform_indices = @transform_0, window_bounds = array<i64: 160, 4>}, {pipeline_mode = #tpu.pipeline_mode<synchronous>, transform_indices = @transform_1, window_bounds = array<i64: 160, 1>}, {pipeline_mode = #tpu.pipeline_mode<synchronous>, transform_indices = @transform_2, window_bounds = array<i64: 160, 1>}, {pipeline_mode = #tpu.pipeline_mode<synchronous>, transform_indices = @transform_3, window_bounds = array<i64: 80, 1>}, {pipeline_mode = #tpu.pipeline_mode<synchronous>, transform_indices = @transform_4, window_bounds = array<i64: 80, 1>}, {pipeline_mode = #tpu.pipeline_mode<synchronous>, transform_indices = @transform_5, window_bounds = array<i64: 40, 1>}, {pipeline_mode = #tpu.pipeline_mode<synchronous>, transform_indices = @transform_6, window_bounds = array<i64: 40, 1>}, {pipeline_mode = #tpu.pipeline_mode<synchronous>, transform_indices = @transform_7, window_bounds = array<i64: 12, 32>}, {pipeline_mode = #tpu.pipeline_mode<synchronous>, transform_indices = @transform_8, window_bounds = array<i64: 1, 32>}, {pipeline_mode = #tpu.pipeline_mode<synchronous>, transform_indices = @transform_9, window_bounds = array<i64: 96, 32>}, {pipeline_mode = #tpu.pipeline_mode<synchronous>, transform_indices = @transform_10, window_bounds = array<i64: 1, 32>}, {pipeline_mode = #tpu.pipeline_mode<synchronous>, transform_indices = @transform_11, window_bounds = array<i64: 96, 64>}, {pipeline_mode = #tpu.pipeline_mode<synchronous>, transform_indices = @transform_12, window_bounds = array<i64: 1, 64>}, {pipeline_mode = #tpu.pipeline_mode<synchronous>, transform_indices = @transform_13, window_bounds = array<i64: 192, 64>}, {pipeline_mode = #tpu.pipeline_mode<synchronous>, transform_indices = @transform_14, window_bounds = array<i64: 1, 64>}, {pipeline_mode = #tpu.pipeline_mode<synchronous>, transform_indices = @transform_15, window_bounds = array<i64: 192, 128>}, {pipeline_mode = #tpu.pipeline_mode<synchronous>, transform_indices = @transform_16, window_bounds = array<i64: 1, 128>}, {pipeline_mode = #tpu.pipeline_mode<synchronous>, transform_indices = @transform_17, window_bounds = array<i64: 384, 128>}, {pipeline_mode = #tpu.pipeline_mode<synchronous>, transform_indices = @transform_18, window_bounds = array<i64: 1, 128>}, {pipeline_mode = #tpu.pipeline_mode<synchronous>, transform_indices = @transform_19, window_bounds = array<i64: 640, 160>}, {pipeline_mode = #tpu.pipeline_mode<synchronous>, transform_indices = @transform_20, window_bounds = array<i64: 1, 160>}, {pipeline_mode = #tpu.pipeline_mode<synchronous>, transform_indices = @transform_21, window_bounds = array<i64: 160, 10>}, {pipeline_mode = #tpu.pipeline_mode<synchronous>, transform_indices = @transform_22, window_bounds = array<i64: 1, 10>}, {transform_indices = @transform_23, window_bounds = array<i64: 1, 4, 10>}, {transform_indices = @transform_24, window_bounds = array<i64: 1, 4, 10>}]} {
    %c0 = arith.constant 0 : index
    %c0_0 = arith.constant 0 : index
    %0 = vector.load %arg1[%c0, %c0_0] : memref<160x4xf32, #tpu.memory_space<vmem>>, vector<160x4xf32>
    %c1_i32 = arith.constant 1 : i32
    %1 = tpu.dynamic_rotate %0 by %c1_i32 dim 0 : vector<160x4xf32>, i32 -> vector<160x4xf32>
    %c0_1 = arith.constant 0 : index
    %c0_2 = arith.constant 0 : index
    %2 = vector.load %arg2[%c0_1, %c0_2] : memref<160x1xf32, #tpu.memory_space<vmem>>, vector<160x1xf32>
    %3 = vector.broadcast %2 : vector<160x1xf32> to vector<160x4xf32>
    %4 = arith.mulf %1, %3 : vector<160x4xf32>
    %5 = arith.truncf %4 : vector<160x4xf32> to vector<160x4xbf16>
    %6 = arith.truncf %0 : vector<160x4xf32> to vector<160x4xbf16>
    %c159_i32 = arith.constant 159 : i32
    %7 = tpu.dynamic_rotate %0 by %c159_i32 dim 0 : vector<160x4xf32>, i32 -> vector<160x4xf32>
    %c0_3 = arith.constant 0 : index
    %c0_4 = arith.constant 0 : index
    %8 = vector.load %arg3[%c0_3, %c0_4] : memref<160x1xf32, #tpu.memory_space<vmem>>, vector<160x1xf32>
    %9 = vector.broadcast %8 : vector<160x1xf32> to vector<160x4xf32>
    %10 = arith.mulf %7, %9 : vector<160x4xf32>
    %11 = arith.truncf %10 : vector<160x4xf32> to vector<160x4xbf16>
    %12 = tpu.concatenate %5, %6, %11 in 1 : vector<160x4xbf16>, vector<160x4xbf16>, vector<160x4xbf16> -> vector<160x12xbf16>
    %c0_5 = arith.constant 0 : index
    %c0_6 = arith.constant 0 : index
    %13 = vector.load %arg8[%c0_5, %c0_6] : memref<12x32xbf16, #tpu.memory_space<vmem>>, vector<12x32xbf16>
    %cst = arith.constant dense<0.000000e+00> : vector<160x32xf32>
    %14 = tpu.matmul %12, %13, %cst {dimension_numbers = #tpu.dot_dimension_numbers<[1], [0], [0], [1], [0, 0, 1, 1], [], []>} : vector<160x12xbf16>, vector<12x32xbf16>, vector<160x32xf32> -> vector<160x32xf32>
    %c0_7 = arith.constant 0 : index
    %c0_8 = arith.constant 0 : index
    %15 = vector.load %arg9[%c0_7, %c0_8] : memref<1x32xf32, #tpu.memory_space<vmem>>, vector<1x32xf32>
    %16 = vector.broadcast %15 : vector<1x32xf32> to vector<160x32xf32>
    %17 = arith.addf %14, %16 : vector<160x32xf32>
    %cst_9 = arith.constant 0.000000e+00 : f32
    %18 = vector.broadcast %cst_9 : f32 to vector<160x32xf32>
    %19 = arith.maximumf %17, %18 : vector<160x32xf32>
    %c1_i32_10 = arith.constant 1 : i32
    %20 = tpu.dynamic_rotate %19 by %c1_i32_10 dim 0 : vector<160x32xf32>, i32 -> vector<160x32xf32>
    %c0_11 = arith.constant 0 : index
    %c0_12 = arith.constant 0 : index
    %21 = vector.load %arg2[%c0_11, %c0_12] : memref<160x1xf32, #tpu.memory_space<vmem>>, vector<160x1xf32>
    %22 = vector.broadcast %21 : vector<160x1xf32> to vector<160x32xf32>
    %23 = arith.mulf %20, %22 : vector<160x32xf32>
    %24 = arith.truncf %23 : vector<160x32xf32> to vector<160x32xbf16>
    %25 = arith.truncf %19 : vector<160x32xf32> to vector<160x32xbf16>
    %c159_i32_13 = arith.constant 159 : i32
    %26 = tpu.dynamic_rotate %19 by %c159_i32_13 dim 0 : vector<160x32xf32>, i32 -> vector<160x32xf32>
    %c0_14 = arith.constant 0 : index
    %c0_15 = arith.constant 0 : index
    %27 = vector.load %arg3[%c0_14, %c0_15] : memref<160x1xf32, #tpu.memory_space<vmem>>, vector<160x1xf32>
    %28 = vector.broadcast %27 : vector<160x1xf32> to vector<160x32xf32>
    %29 = arith.mulf %26, %28 : vector<160x32xf32>
    %30 = arith.truncf %29 : vector<160x32xf32> to vector<160x32xbf16>
    %31 = tpu.concatenate %24, %25, %30 in 1 : vector<160x32xbf16>, vector<160x32xbf16>, vector<160x32xbf16> -> vector<160x96xbf16>
    %c0_16 = arith.constant 0 : index
    %c0_17 = arith.constant 0 : index
    %32 = vector.load %arg10[%c0_16, %c0_17] : memref<96x32xbf16, #tpu.memory_space<vmem>>, vector<96x32xbf16>
    %cst_18 = arith.constant dense<0.000000e+00> : vector<160x32xf32>
    %33 = tpu.matmul %31, %32, %cst_18 {dimension_numbers = #tpu.dot_dimension_numbers<[1], [0], [0], [1], [0, 0, 1, 1], [], []>} : vector<160x96xbf16>, vector<96x32xbf16>, vector<160x32xf32> -> vector<160x32xf32>
    %c0_19 = arith.constant 0 : index
    %c0_20 = arith.constant 0 : index
    %34 = vector.load %arg11[%c0_19, %c0_20] : memref<1x32xf32, #tpu.memory_space<vmem>>, vector<1x32xf32>
    %35 = vector.broadcast %34 : vector<1x32xf32> to vector<160x32xf32>
    %36 = arith.addf %33, %35 : vector<160x32xf32>
    %cst_21 = arith.constant 0.000000e+00 : f32
    %37 = vector.broadcast %cst_21 : f32 to vector<160x32xf32>
    %38 = arith.maximumf %36, %37 : vector<160x32xf32>
    %c0_22 = arith.constant 0 : index
    %c0_23 = arith.constant 0 : index
    %39 = vector.load %arg26[%c0_22, %c0_23] : memref<160x32xf32, #tpu.memory_space<vmem>>, vector<160x32xf32>
    tpu.vector_store %arg26[%c0_22, %c0_23], %38 {strides = array<i32>} : memref<160x32xf32, #tpu.memory_space<vmem>>, vector<160x32xf32>,
    %c0_24 = arith.constant 0 : index
    %c0_25 = arith.constant 0 : index
    %40 = tpu.strided_load %arg26[%c0_24, %c0_25] {strides = array<i32: 2, 1>} : memref<160x32xf32, #tpu.memory_space<vmem>>, vector<80x32xf32>
    %c1 = arith.constant 1 : index
    %c0_26 = arith.constant 0 : index
    %41 = tpu.strided_load %arg26[%c1, %c0_26] {strides = array<i32: 2, 1>} : memref<160x32xf32, #tpu.memory_space<vmem>>, vector<80x32xf32>
    %42 = arith.maximumf %40, %41 : vector<80x32xf32>
    %c1_i32_27 = arith.constant 1 : i32
    %43 = tpu.dynamic_rotate %42 by %c1_i32_27 dim 0 : vector<80x32xf32>, i32 -> vector<80x32xf32>
    %c0_28 = arith.constant 0 : index
    %c0_29 = arith.constant 0 : index
    %44 = vector.load %arg4[%c0_28, %c0_29] : memref<80x1xf32, #tpu.memory_space<vmem>>, vector<80x1xf32>
    %45 = vector.broadcast %44 : vector<80x1xf32> to vector<80x32xf32>
    %46 = arith.mulf %43, %45 : vector<80x32xf32>
    %47 = arith.truncf %46 : vector<80x32xf32> to vector<80x32xbf16>
    %48 = arith.truncf %42 : vector<80x32xf32> to vector<80x32xbf16>
    %c79_i32 = arith.constant 79 : i32
    %49 = tpu.dynamic_rotate %42 by %c79_i32 dim 0 : vector<80x32xf32>, i32 -> vector<80x32xf32>
    %c0_30 = arith.constant 0 : index
    %c0_31 = arith.constant 0 : index
    %50 = vector.load %arg5[%c0_30, %c0_31] : memref<80x1xf32, #tpu.memory_space<vmem>>, vector<80x1xf32>
    %51 = vector.broadcast %50 : vector<80x1xf32> to vector<80x32xf32>
    %52 = arith.mulf %49, %51 : vector<80x32xf32>
    %53 = arith.truncf %52 : vector<80x32xf32> to vector<80x32xbf16>
    %54 = tpu.concatenate %47, %48, %53 in 1 : vector<80x32xbf16>, vector<80x32xbf16>, vector<80x32xbf16> -> vector<80x96xbf16>
    %c0_32 = arith.constant 0 : index
    %c0_33 = arith.constant 0 : index
    %55 = vector.load %arg12[%c0_32, %c0_33] : memref<96x64xbf16, #tpu.memory_space<vmem>>, vector<96x64xbf16>
    %cst_34 = arith.constant dense<0.000000e+00> : vector<80x64xf32>
    %56 = tpu.matmul %54, %55, %cst_34 {dimension_numbers = #tpu.dot_dimension_numbers<[1], [0], [0], [1], [0, 0, 1, 1], [], []>} : vector<80x96xbf16>, vector<96x64xbf16>, vector<80x64xf32> -> vector<80x64xf32>
    %c0_35 = arith.constant 0 : index
    %c0_36 = arith.constant 0 : index
    %57 = vector.load %arg13[%c0_35, %c0_36] : memref<1x64xf32, #tpu.memory_space<vmem>>, vector<1x64xf32>
    %58 = vector.broadcast %57 : vector<1x64xf32> to vector<80x64xf32>
    %59 = arith.addf %56, %58 : vector<80x64xf32>
    %cst_37 = arith.constant 0.000000e+00 : f32
    %60 = vector.broadcast %cst_37 : f32 to vector<80x64xf32>
    %61 = arith.maximumf %59, %60 : vector<80x64xf32>
    %c1_i32_38 = arith.constant 1 : i32
    %62 = tpu.dynamic_rotate %61 by %c1_i32_38 dim 0 : vector<80x64xf32>, i32 -> vector<80x64xf32>
    %c0_39 = arith.constant 0 : index
    %c0_40 = arith.constant 0 : index
    %63 = vector.load %arg4[%c0_39, %c0_40] : memref<80x1xf32, #tpu.memory_space<vmem>>, vector<80x1xf32>
    %64 = vector.broadcast %63 : vector<80x1xf32> to vector<80x64xf32>
    %65 = arith.mulf %62, %64 : vector<80x64xf32>
    %66 = arith.truncf %65 : vector<80x64xf32> to vector<80x64xbf16>
    %67 = arith.truncf %61 : vector<80x64xf32> to vector<80x64xbf16>
    %c79_i32_41 = arith.constant 79 : i32
    %68 = tpu.dynamic_rotate %61 by %c79_i32_41 dim 0 : vector<80x64xf32>, i32 -> vector<80x64xf32>
    %c0_42 = arith.constant 0 : index
    %c0_43 = arith.constant 0 : index
    %69 = vector.load %arg5[%c0_42, %c0_43] : memref<80x1xf32, #tpu.memory_space<vmem>>, vector<80x1xf32>
    %70 = vector.broadcast %69 : vector<80x1xf32> to vector<80x64xf32>
    %71 = arith.mulf %68, %70 : vector<80x64xf32>
    %72 = arith.truncf %71 : vector<80x64xf32> to vector<80x64xbf16>
    %73 = tpu.concatenate %66, %67, %72 in 1 : vector<80x64xbf16>, vector<80x64xbf16>, vector<80x64xbf16> -> vector<80x192xbf16>
    %c0_44 = arith.constant 0 : index
    %c0_45 = arith.constant 0 : index
    %74 = vector.load %arg14[%c0_44, %c0_45] : memref<192x64xbf16, #tpu.memory_space<vmem>>, vector<192x64xbf16>
    %cst_46 = arith.constant dense<0.000000e+00> : vector<80x64xf32>
    %75 = tpu.matmul %73, %74, %cst_46 {dimension_numbers = #tpu.dot_dimension_numbers<[1], [0], [0], [1], [0, 0, 1, 1], [], []>} : vector<80x192xbf16>, vector<192x64xbf16>, vector<80x64xf32> -> vector<80x64xf32>
    %c0_47 = arith.constant 0 : index
    %c0_48 = arith.constant 0 : index
    %76 = vector.load %arg15[%c0_47, %c0_48] : memref<1x64xf32, #tpu.memory_space<vmem>>, vector<1x64xf32>
    %77 = vector.broadcast %76 : vector<1x64xf32> to vector<80x64xf32>
    %78 = arith.addf %75, %77 : vector<80x64xf32>
    %cst_49 = arith.constant 0.000000e+00 : f32
    %79 = vector.broadcast %cst_49 : f32 to vector<80x64xf32>
    %80 = arith.maximumf %78, %79 : vector<80x64xf32>
    %c0_50 = arith.constant 0 : index
    %c0_51 = arith.constant 0 : index
    %81 = vector.load %arg27[%c0_50, %c0_51] : memref<80x64xf32, #tpu.memory_space<vmem>>, vector<80x64xf32>
    tpu.vector_store %arg27[%c0_50, %c0_51], %80 {strides = array<i32>} : memref<80x64xf32, #tpu.memory_space<vmem>>, vector<80x64xf32>,
    %c0_52 = arith.constant 0 : index
    %c0_53 = arith.constant 0 : index
    %82 = tpu.strided_load %arg27[%c0_52, %c0_53] {strides = array<i32: 2, 1>} : memref<80x64xf32, #tpu.memory_space<vmem>>, vector<40x64xf32>
    %c1_54 = arith.constant 1 : index
    %c0_55 = arith.constant 0 : index
    %83 = tpu.strided_load %arg27[%c1_54, %c0_55] {strides = array<i32: 2, 1>} : memref<80x64xf32, #tpu.memory_space<vmem>>, vector<40x64xf32>
    %84 = arith.maximumf %82, %83 : vector<40x64xf32>
    %c1_i32_56 = arith.constant 1 : i32
    %85 = tpu.dynamic_rotate %84 by %c1_i32_56 dim 0 : vector<40x64xf32>, i32 -> vector<40x64xf32>
    %c0_57 = arith.constant 0 : index
    %c0_58 = arith.constant 0 : index
    %86 = vector.load %arg6[%c0_57, %c0_58] : memref<40x1xf32, #tpu.memory_space<vmem>>, vector<40x1xf32>
    %87 = vector.broadcast %86 : vector<40x1xf32> to vector<40x64xf32>
    %88 = arith.mulf %85, %87 : vector<40x64xf32>
    %89 = arith.truncf %88 : vector<40x64xf32> to vector<40x64xbf16>
    %90 = arith.truncf %84 : vector<40x64xf32> to vector<40x64xbf16>
    %c39_i32 = arith.constant 39 : i32
    %91 = tpu.dynamic_rotate %84 by %c39_i32 dim 0 : vector<40x64xf32>, i32 -> vector<40x64xf32>
    %c0_59 = arith.constant 0 : index
    %c0_60 = arith.constant 0 : index
    %92 = vector.load %arg7[%c0_59, %c0_60] : memref<40x1xf32, #tpu.memory_space<vmem>>, vector<40x1xf32>
    %93 = vector.broadcast %92 : vector<40x1xf32> to vector<40x64xf32>
    %94 = arith.mulf %91, %93 : vector<40x64xf32>
    %95 = arith.truncf %94 : vector<40x64xf32> to vector<40x64xbf16>
    %96 = tpu.concatenate %89, %90, %95 in 1 : vector<40x64xbf16>, vector<40x64xbf16>, vector<40x64xbf16> -> vector<40x192xbf16>
    %c0_61 = arith.constant 0 : index
    %c0_62 = arith.constant 0 : index
    %97 = vector.load %arg16[%c0_61, %c0_62] : memref<192x128xbf16, #tpu.memory_space<vmem>>, vector<192x128xbf16>
    %cst_63 = arith.constant dense<0.000000e+00> : vector<40x128xf32>
    %98 = tpu.matmul %96, %97, %cst_63 {dimension_numbers = #tpu.dot_dimension_numbers<[1], [0], [0], [1], [0, 0, 1, 1], [], []>} : vector<40x192xbf16>, vector<192x128xbf16>, vector<40x128xf32> -> vector<40x128xf32>
    %c0_64 = arith.constant 0 : index
    %c0_65 = arith.constant 0 : index
    %99 = vector.load %arg17[%c0_64, %c0_65] : memref<1x128xf32, #tpu.memory_space<vmem>>, vector<1x128xf32>
    %100 = vector.broadcast %99 : vector<1x128xf32> to vector<40x128xf32>
    %101 = arith.addf %98, %100 : vector<40x128xf32>
    %cst_66 = arith.constant 0.000000e+00 : f32
    %102 = vector.broadcast %cst_66 : f32 to vector<40x128xf32>
    %103 = arith.maximumf %101, %102 : vector<40x128xf32>
    %c1_i32_67 = arith.constant 1 : i32
    %104 = tpu.dynamic_rotate %103 by %c1_i32_67 dim 0 : vector<40x128xf32>, i32 -> vector<40x128xf32>
    %c0_68 = arith.constant 0 : index
    %c0_69 = arith.constant 0 : index
    %105 = vector.load %arg6[%c0_68, %c0_69] : memref<40x1xf32, #tpu.memory_space<vmem>>, vector<40x1xf32>
    %106 = vector.broadcast %105 : vector<40x1xf32> to vector<40x128xf32>
    %107 = arith.mulf %104, %106 : vector<40x128xf32>
    %108 = arith.truncf %107 : vector<40x128xf32> to vector<40x128xbf16>
    %109 = arith.truncf %103 : vector<40x128xf32> to vector<40x128xbf16>
    %c39_i32_70 = arith.constant 39 : i32
    %110 = tpu.dynamic_rotate %103 by %c39_i32_70 dim 0 : vector<40x128xf32>, i32 -> vector<40x128xf32>
    %c0_71 = arith.constant 0 : index
    %c0_72 = arith.constant 0 : index
    %111 = vector.load %arg7[%c0_71, %c0_72] : memref<40x1xf32, #tpu.memory_space<vmem>>, vector<40x1xf32>
    %112 = vector.broadcast %111 : vector<40x1xf32> to vector<40x128xf32>
    %113 = arith.mulf %110, %112 : vector<40x128xf32>
    %114 = arith.truncf %113 : vector<40x128xf32> to vector<40x128xbf16>
    %115 = tpu.concatenate %108, %109, %114 in 1 : vector<40x128xbf16>, vector<40x128xbf16>, vector<40x128xbf16> -> vector<40x384xbf16>
    %c0_73 = arith.constant 0 : index
    %c0_74 = arith.constant 0 : index
    %116 = vector.load %arg18[%c0_73, %c0_74] : memref<384x128xbf16, #tpu.memory_space<vmem>>, vector<384x128xbf16>
    %cst_75 = arith.constant dense<0.000000e+00> : vector<40x128xf32>
    %117 = tpu.matmul %115, %116, %cst_75 {dimension_numbers = #tpu.dot_dimension_numbers<[1], [0], [0], [1], [0, 0, 1, 1], [], []>} : vector<40x384xbf16>, vector<384x128xbf16>, vector<40x128xf32> -> vector<40x128xf32>
    %c0_76 = arith.constant 0 : index
    %c0_77 = arith.constant 0 : index
    %118 = vector.load %arg19[%c0_76, %c0_77] : memref<1x128xf32, #tpu.memory_space<vmem>>, vector<1x128xf32>
    %119 = vector.broadcast %118 : vector<1x128xf32> to vector<40x128xf32>
    %120 = arith.addf %117, %119 : vector<40x128xf32>
    %cst_78 = arith.constant 0.000000e+00 : f32
    %121 = vector.broadcast %cst_78 : f32 to vector<40x128xf32>
    %122 = arith.maximumf %120, %121 : vector<40x128xf32>
    %c0_79 = arith.constant 0 : index
    %c0_80 = arith.constant 0 : index
    %123 = vector.load %arg28[%c0_79, %c0_80] : memref<40x128xf32, #tpu.memory_space<vmem>>, vector<40x128xf32>
    tpu.vector_store %arg28[%c0_79, %c0_80], %122 {strides = array<i32>} : memref<40x128xf32, #tpu.memory_space<vmem>>, vector<40x128xf32>,
    %c0_81 = arith.constant 0 : index
    %c0_82 = arith.constant 0 : index
    %124 = tpu.strided_load %arg28[%c0_81, %c0_82] {strides = array<i32: 10, 1>} : memref<40x128xf32, #tpu.memory_space<vmem>>, vector<4x128xf32>
    %c1_83 = arith.constant 1 : index
    %c0_84 = arith.constant 0 : index
    %125 = tpu.strided_load %arg28[%c1_83, %c0_84] {strides = array<i32: 10, 1>} : memref<40x128xf32, #tpu.memory_space<vmem>>, vector<4x128xf32>
    %126 = arith.maximumf %124, %125 : vector<4x128xf32>
    %127 = arith.truncf %126 : vector<4x128xf32> to vector<4x128xbf16>
    %c2 = arith.constant 2 : index
    %c0_85 = arith.constant 0 : index
    %128 = tpu.strided_load %arg28[%c2, %c0_85] {strides = array<i32: 10, 1>} : memref<40x128xf32, #tpu.memory_space<vmem>>, vector<4x128xf32>
    %c3 = arith.constant 3 : index
    %c0_86 = arith.constant 0 : index
    %129 = tpu.strided_load %arg28[%c3, %c0_86] {strides = array<i32: 10, 1>} : memref<40x128xf32, #tpu.memory_space<vmem>>, vector<4x128xf32>
    %130 = arith.maximumf %128, %129 : vector<4x128xf32>
    %131 = arith.truncf %130 : vector<4x128xf32> to vector<4x128xbf16>
    %c4 = arith.constant 4 : index
    %c0_87 = arith.constant 0 : index
    %132 = tpu.strided_load %arg28[%c4, %c0_87] {strides = array<i32: 10, 1>} : memref<40x128xf32, #tpu.memory_space<vmem>>, vector<4x128xf32>
    %c5 = arith.constant 5 : index
    %c0_88 = arith.constant 0 : index
    %133 = tpu.strided_load %arg28[%c5, %c0_88] {strides = array<i32: 10, 1>} : memref<40x128xf32, #tpu.memory_space<vmem>>, vector<4x128xf32>
    %134 = arith.maximumf %132, %133 : vector<4x128xf32>
    %135 = arith.truncf %134 : vector<4x128xf32> to vector<4x128xbf16>
    %c6 = arith.constant 6 : index
    %c0_89 = arith.constant 0 : index
    %136 = tpu.strided_load %arg28[%c6, %c0_89] {strides = array<i32: 10, 1>} : memref<40x128xf32, #tpu.memory_space<vmem>>, vector<4x128xf32>
    %c7 = arith.constant 7 : index
    %c0_90 = arith.constant 0 : index
    %137 = tpu.strided_load %arg28[%c7, %c0_90] {strides = array<i32: 10, 1>} : memref<40x128xf32, #tpu.memory_space<vmem>>, vector<4x128xf32>
    %138 = arith.maximumf %136, %137 : vector<4x128xf32>
    %139 = arith.truncf %138 : vector<4x128xf32> to vector<4x128xbf16>
    %c8 = arith.constant 8 : index
    %c0_91 = arith.constant 0 : index
    %140 = tpu.strided_load %arg28[%c8, %c0_91] {strides = array<i32: 10, 1>} : memref<40x128xf32, #tpu.memory_space<vmem>>, vector<4x128xf32>
    %c9 = arith.constant 9 : index
    %c0_92 = arith.constant 0 : index
    %141 = tpu.strided_load %arg28[%c9, %c0_92] {strides = array<i32: 10, 1>} : memref<40x128xf32, #tpu.memory_space<vmem>>, vector<4x128xf32>
    %142 = arith.maximumf %140, %141 : vector<4x128xf32>
    %143 = arith.truncf %142 : vector<4x128xf32> to vector<4x128xbf16>
    %144 = tpu.concatenate %127, %131, %135, %139, %143 in 1 : vector<4x128xbf16>, vector<4x128xbf16>, vector<4x128xbf16>, vector<4x128xbf16>, vector<4x128xbf16> -> vector<4x640xbf16>
    %c0_93 = arith.constant 0 : index
    %c0_94 = arith.constant 0 : index
    %145 = vector.load %arg20[%c0_93, %c0_94] : memref<640x160xbf16, #tpu.memory_space<vmem>>, vector<640x160xbf16>
    %cst_95 = arith.constant dense<0.000000e+00> : vector<4x160xf32>
    %146 = tpu.matmul %144, %145, %cst_95 {dimension_numbers = #tpu.dot_dimension_numbers<[1], [0], [0], [1], [0, 0, 1, 1], [], []>} : vector<4x640xbf16>, vector<640x160xbf16>, vector<4x160xf32> -> vector<4x160xf32>
    %c0_96 = arith.constant 0 : index
    %c0_97 = arith.constant 0 : index
    %147 = vector.load %arg21[%c0_96, %c0_97] : memref<1x160xf32, #tpu.memory_space<vmem>>, vector<1x160xf32>
    %148 = vector.broadcast %147 : vector<1x160xf32> to vector<4x160xf32>
    %149 = arith.addf %146, %148 : vector<4x160xf32>
    %150 = arith.truncf %149 : vector<4x160xf32> to vector<4x160xbf16>
    %c0_98 = arith.constant 0 : index
    %c0_99 = arith.constant 0 : index
    %151 = vector.load %arg22[%c0_98, %c0_99] : memref<160x10xbf16, #tpu.memory_space<vmem>>, vector<160x10xbf16>
    %cst_100 = arith.constant dense<0.000000e+00> : vector<4x10xf32>
    %152 = tpu.matmul %150, %151, %cst_100 {dimension_numbers = #tpu.dot_dimension_numbers<[1], [0], [0], [1], [0, 0, 1, 1], [], []>} : vector<4x160xbf16>, vector<160x10xbf16>, vector<4x10xf32> -> vector<4x10xf32>
    %c0_101 = arith.constant 0 : index
    %c0_102 = arith.constant 0 : index
    %153 = vector.load %arg23[%c0_101, %c0_102] : memref<1x10xf32, #tpu.memory_space<vmem>>, vector<1x10xf32>
    %154 = vector.broadcast %153 : vector<1x10xf32> to vector<4x10xf32>
    %155 = arith.addf %152, %154 : vector<4x10xf32>
    %c0_103 = arith.constant 0 : index
    %c0_104 = arith.constant 0 : index
    %c0_105 = arith.constant 0 : index
    %156 = vector.load %arg24[%c0_103, %c0_104, %c0_105] : memref<1x4x10xf32, #tpu.memory_space<vmem>>, vector<1x4x10xf32>
    %157 = vector.shape_cast %156 : vector<1x4x10xf32> to vector<4x10xf32>
    %158 = vector.shape_cast %155 : vector<4x10xf32> to vector<1x4x10xf32>
    tpu.vector_store %arg24[%c0_103, %c0_104, %c0_105], %158 {strides = array<i32>} : memref<1x4x10xf32, #tpu.memory_space<vmem>>, vector<1x4x10xf32>,
    %cst_106 = arith.constant dense<0xFF800000> : vector<4xf32>
    %159 = vector.multi_reduction <maximumf>, %155, %cst_106 [1] : vector<4x10xf32> to vector<4xf32>
    %160 = vector.shape_cast %159 : vector<4xf32> to vector<4x1xf32>
    %161 = vector.broadcast %160 : vector<4x1xf32> to vector<4x10xf32>
    %162 = arith.subf %155, %161 : vector<4x10xf32>
    %163 = math.exp %162 : vector<4x10xf32>
    %cst_107 = arith.constant dense<0.000000e+00> : vector<4xf32>
    %164 = vector.multi_reduction <add>, %163, %cst_107 [1] : vector<4x10xf32> to vector<4xf32>
    %165 = vector.shape_cast %164 : vector<4xf32> to vector<4x1xf32>
    %166 = math.log %165 : vector<4x1xf32>
    %167 = arith.addf %160, %166 : vector<4x1xf32>
    %168 = vector.broadcast %167 : vector<4x1xf32> to vector<4x10xf32>
    %169 = arith.subf %155, %168 : vector<4x10xf32>
    %c0_108 = arith.constant 0 : index
    %c0_109 = arith.constant 0 : index
    %c0_110 = arith.constant 0 : index
    %170 = vector.load %arg25[%c0_108, %c0_109, %c0_110] : memref<1x4x10xf32, #tpu.memory_space<vmem>>, vector<1x4x10xf32>
    %171 = vector.shape_cast %170 : vector<1x4x10xf32> to vector<4x10xf32>
    %172 = vector.shape_cast %169 : vector<4x10xf32> to vector<1x4x10xf32>
    tpu.vector_store %arg25[%c0_108, %c0_109, %c0_110], %172 {strides = array<i32>} : memref<1x4x10xf32, #tpu.memory_space<vmem>>, vector<1x4x10xf32>,
    return
  }
  func.func @transform_0(%arg0: i32) -> (i32, i32) {
    %c0_i32 = arith.constant 0 : i32
    %c0_i32_0 = arith.constant 0 : i32
    return %arg0, %c0_i32 : i32, i32
  }
  func.func @transform_1(%arg0: i32) -> (i32, i32) {
    %c0_i32 = arith.constant 0 : i32
    %c0_i32_0 = arith.constant 0 : i32
    %c0_i32_1 = arith.constant 0 : i32
    return %c0_i32, %c0_i32_0 : i32, i32
  }
  func.func @transform_2(%arg0: i32) -> (i32, i32) {
    %c0_i32 = arith.constant 0 : i32
    %c0_i32_0 = arith.constant 0 : i32
    %c0_i32_1 = arith.constant 0 : i32
    return %c0_i32, %c0_i32_0 : i32, i32
  }
  func.func @transform_3(%arg0: i32) -> (i32, i32) {
    %c0_i32 = arith.constant 0 : i32
    %c0_i32_0 = arith.constant 0 : i32
    %c0_i32_1 = arith.constant 0 : i32
    return %c0_i32, %c0_i32_0 : i32, i32
  }
  func.func @transform_4(%arg0: i32) -> (i32, i32) {
    %c0_i32 = arith.constant 0 : i32
    %c0_i32_0 = arith.constant 0 : i32
    %c0_i32_1 = arith.constant 0 : i32
    return %c0_i32, %c0_i32_0 : i32, i32
  }
  func.func @transform_5(%arg0: i32) -> (i32, i32) {
    %c0_i32 = arith.constant 0 : i32
    %c0_i32_0 = arith.constant 0 : i32
    %c0_i32_1 = arith.constant 0 : i32
    return %c0_i32, %c0_i32_0 : i32, i32
  }
  func.func @transform_6(%arg0: i32) -> (i32, i32) {
    %c0_i32 = arith.constant 0 : i32
    %c0_i32_0 = arith.constant 0 : i32
    %c0_i32_1 = arith.constant 0 : i32
    return %c0_i32, %c0_i32_0 : i32, i32
  }
  func.func @transform_7(%arg0: i32) -> (i32, i32) {
    %c0_i32 = arith.constant 0 : i32
    %c0_i32_0 = arith.constant 0 : i32
    %c0_i32_1 = arith.constant 0 : i32
    return %c0_i32, %c0_i32_0 : i32, i32
  }
  func.func @transform_8(%arg0: i32) -> (i32, i32) {
    %c0_i32 = arith.constant 0 : i32
    %c0_i32_0 = arith.constant 0 : i32
    %c0_i32_1 = arith.constant 0 : i32
    return %c0_i32, %c0_i32_0 : i32, i32
  }
  func.func @transform_9(%arg0: i32) -> (i32, i32) {
    %c0_i32 = arith.constant 0 : i32
    %c0_i32_0 = arith.constant 0 : i32
    %c0_i32_1 = arith.constant 0 : i32
    return %c0_i32, %c0_i32_0 : i32, i32
  }
  func.func @transform_10(%arg0: i32) -> (i32, i32) {
    %c0_i32 = arith.constant 0 : i32
    %c0_i32_0 = arith.constant 0 : i32
    %c0_i32_1 = arith.constant 0 : i32
    return %c0_i32, %c0_i32_0 : i32, i32
  }
  func.func @transform_11(%arg0: i32) -> (i32, i32) {
    %c0_i32 = arith.constant 0 : i32
    %c0_i32_0 = arith.constant 0 : i32
    %c0_i32_1 = arith.constant 0 : i32
    return %c0_i32, %c0_i32_0 : i32, i32
  }
  func.func @transform_12(%arg0: i32) -> (i32, i32) {
    %c0_i32 = arith.constant 0 : i32
    %c0_i32_0 = arith.constant 0 : i32
    %c0_i32_1 = arith.constant 0 : i32
    return %c0_i32, %c0_i32_0 : i32, i32
  }
  func.func @transform_13(%arg0: i32) -> (i32, i32) {
    %c0_i32 = arith.constant 0 : i32
    %c0_i32_0 = arith.constant 0 : i32
    %c0_i32_1 = arith.constant 0 : i32
    return %c0_i32, %c0_i32_0 : i32, i32
  }
  func.func @transform_14(%arg0: i32) -> (i32, i32) {
    %c0_i32 = arith.constant 0 : i32
    %c0_i32_0 = arith.constant 0 : i32
    %c0_i32_1 = arith.constant 0 : i32
    return %c0_i32, %c0_i32_0 : i32, i32
  }
  func.func @transform_15(%arg0: i32) -> (i32, i32) {
    %c0_i32 = arith.constant 0 : i32
    %c0_i32_0 = arith.constant 0 : i32
    %c0_i32_1 = arith.constant 0 : i32
    return %c0_i32, %c0_i32_0 : i32, i32
  }
  func.func @transform_16(%arg0: i32) -> (i32, i32) {
    %c0_i32 = arith.constant 0 : i32
    %c0_i32_0 = arith.constant 0 : i32
    %c0_i32_1 = arith.constant 0 : i32
    return %c0_i32, %c0_i32_0 : i32, i32
  }
  func.func @transform_17(%arg0: i32) -> (i32, i32) {
    %c0_i32 = arith.constant 0 : i32
    %c0_i32_0 = arith.constant 0 : i32
    %c0_i32_1 = arith.constant 0 : i32
    return %c0_i32, %c0_i32_0 : i32, i32
  }
  func.func @transform_18(%arg0: i32) -> (i32, i32) {
    %c0_i32 = arith.constant 0 : i32
    %c0_i32_0 = arith.constant 0 : i32
    %c0_i32_1 = arith.constant 0 : i32
    return %c0_i32, %c0_i32_0 : i32, i32
  }
  func.func @transform_19(%arg0: i32) -> (i32, i32) {
    %c0_i32 = arith.constant 0 : i32
    %c0_i32_0 = arith.constant 0 : i32
    %c0_i32_1 = arith.constant 0 : i32
    return %c0_i32, %c0_i32_0 : i32, i32
  }
  func.func @transform_20(%arg0: i32) -> (i32, i32) {
    %c0_i32 = arith.constant 0 : i32
    %c0_i32_0 = arith.constant 0 : i32
    %c0_i32_1 = arith.constant 0 : i32
    return %c0_i32, %c0_i32_0 : i32, i32
  }
  func.func @transform_21(%arg0: i32) -> (i32, i32) {
    %c0_i32 = arith.constant 0 : i32
    %c0_i32_0 = arith.constant 0 : i32
    %c0_i32_1 = arith.constant 0 : i32
    return %c0_i32, %c0_i32_0 : i32, i32
  }
  func.func @transform_22(%arg0: i32) -> (i32, i32) {
    %c0_i32 = arith.constant 0 : i32
    %c0_i32_0 = arith.constant 0 : i32
    %c0_i32_1 = arith.constant 0 : i32
    return %c0_i32, %c0_i32_0 : i32, i32
  }
  func.func @transform_23(%arg0: i32) -> (i32, i32, i32) {
    %c0_i32 = arith.constant 0 : i32
    %c0_i32_0 = arith.constant 0 : i32
    %c0_i32_1 = arith.constant 0 : i32
    return %arg0, %c0_i32, %c0_i32_0 : i32, i32, i32
  }
  func.func @transform_24(%arg0: i32) -> (i32, i32, i32) {
    %c0_i32 = arith.constant 0 : i32
    %c0_i32_0 = arith.constant 0 : i32
    %c0_i32_1 = arith.constant 0 : i32
    return %arg0, %c0_i32, %c0_i32_0 : i32, i32, i32
  }
}

</mosaic_0001>

<llo_original>
// kernel: tpu_custom_call.1
$region0: #{tpu_custom_call.1}
  #allocation0 [shape = 'u32[]', space=smem, size = 0x4, offset = 0x4, fixed_abs, tag = 'smem constant byte address 0x4 - core index']
  #allocation1 [shape = 'u32[144,128]{1,0:T(1,128)}', space=vmem, size = 0x12000, scoped, tag = 'internal scratch']
  #allocation2 [shape = 'f32[160,32]{1,0:T(8,128)}', space=vmem, size = 0x14000, scoped, tag = 'scratch operand']
  #allocation3 [shape = 'f32[80,64]{1,0:T(8,128)}', space=vmem, size = 0xa000, scoped, tag = 'scratch operand']
  #allocation4 [shape = 'f32[40,128]{1,0:T(8,128)}', space=vmem, size = 0x5000, scoped, tag = 'scratch operand']
  %s0 = inlined_call_operand.vmem [shape: f32[320,4], index: 0, kind: input, shape index: {}]
  %s1 = inlined_call_operand.vmem [shape: f32[160,1], index: 1, kind: input, shape index: {}]
  %s2 = inlined_call_operand.vmem [shape: f32[160,1], index: 2, kind: input, shape index: {}]
  %s3 = inlined_call_operand.vmem [shape: f32[80,1], index: 3, kind: input, shape index: {}]
  %s4 = inlined_call_operand.vmem [shape: f32[80,1], index: 4, kind: input, shape index: {}]
  %s5 = inlined_call_operand.vmem [shape: f32[40,1], index: 5, kind: input, shape index: {}]
  %s6 = inlined_call_operand.vmem [shape: f32[40,1], index: 6, kind: input, shape index: {}]
  %s7 = inlined_call_operand.vmem [shape: bf16[12,32], index: 7, kind: input, shape index: {}]
  %s8 = inlined_call_operand.vmem [shape: f32[1,32], index: 8, kind: input, shape index: {}]
  %s9 = inlined_call_operand.vmem [shape: bf16[96,32], index: 9, kind: input, shape index: {}]
  %s10 = inlined_call_operand.vmem [shape: f32[1,32], index: 10, kind: input, shape index: {}]
  %s11 = inlined_call_operand.vmem [shape: bf16[96,64], index: 11, kind: input, shape index: {}]
  %s12 = inlined_call_operand.vmem [shape: f32[1,64], index: 12, kind: input, shape index: {}]
  %s13 = inlined_call_operand.vmem [shape: bf16[192,64], index: 13, kind: input, shape index: {}]
  %s14 = inlined_call_operand.vmem [shape: f32[1,64], index: 14, kind: input, shape index: {}]
  %s15 = inlined_call_operand.vmem [shape: bf16[192,128], index: 15, kind: input, shape index: {}]
  %s16 = inlined_call_operand.vmem [shape: f32[1,128], index: 16, kind: input, shape index: {}]
  %s17 = inlined_call_operand.vmem [shape: bf16[384,128], index: 17, kind: input, shape index: {}]
  %s18 = inlined_call_operand.vmem [shape: f32[1,128], index: 18, kind: input, shape index: {}]
  %s19 = inlined_call_operand.vmem [shape: bf16[640,160], index: 19, kind: input, shape index: {}]
  %s20 = inlined_call_operand.vmem [shape: f32[1,160], index: 20, kind: input, shape index: {}]
  %s21 = inlined_call_operand.vmem [shape: bf16[160,10], index: 21, kind: input, shape index: {}]
  %s22 = inlined_call_operand.vmem [shape: f32[1,10], index: 22, kind: input, shape index: {}]
  %s23 = inlined_call_operand.hbm [shape: f32[2,4,10], index: 23, kind: output, shape index: {0}]
  %s24 = inlined_call_operand.hbm [shape: f32[2,4,10], index: 24, kind: output, shape index: {1}]
  %25 = xla_tuple %s23, %s24
  %s26 = sld [smem:[#allocation0]]
  $region133: #{tpu_custom_call.1} parent=0
    _
  %s28 = ssub.s32 1, %s26
  %s29 = scalar_select 0, %s28, %s26
  $region1: #{tpu_custom_call.1} parent=0
    #allocation5 [shape = 'u8[4096]{0}', space=vmem, size = 0x1000, scoped, tag = 'output window, operand 0']
    #allocation6 [shape = 's32[2]{0}', space=sflag, size = 0x8, scoped, tag = 'scoped memory for tpu_custom_call.1']
    #allocation7 [shape = 'u8[4096]{0}', space=vmem, size = 0x1000, scoped, tag = 'output window, operand 1']
    #allocation8 [shape = 's32[2]{0}', space=sflag, size = 0x8, scoped, tag = 'scoped memory for tpu_custom_call.1']
    %30 = vsyncpa [#allocation6], 0
    %s31 = scalar_lea.sflag [#allocation6], 1
    %32 = vsyncpa %s31, 0
    %33 = vsyncpa [#allocation8], 0
    %s34 = scalar_lea.sflag [#allocation8], 1
    %35 = vsyncpa %s34, 0
    loop: start=0, step=1, limit=4
    $region2: #{tpu_custom_call.1} parent=1 // loop_pre_header
      _
    $region3: #{tpu_custom_call.1} parent=1 // loop_header
      %s37 = sphi 0, %s41
      %p38 = scmp.ge.s32.totalorder %s37, 4
      %s47 = sphi 0, %s49
      %s50 = sphi 0, %s47
      %s51 = sphi 0, %s50
      %s67 = sphi 0, %s51
      %s71 = sphi 0, %s71
      %s73 = sphi 0, %s71
      %s74 = sphi 0, %s73
      %s88 = sphi 0, %s74
      %s92 = sphi 0, %s92
      %s94 = sphi 0, %s92
      %s95 = sphi 0, %s94
      %s109 = sphi 0, %s95
      %s113 = sphi 0, %s113
      %s115 = sphi 0, %s113
      %s116 = sphi 0, %s115
      %s130 = sphi 0, %s116
      %s134 = sphi 0, %s134
      %s136 = sphi 0, %s134
      %s137 = sphi 0, %s136
      %s151 = sphi 0, %s137
      %s155 = sphi 0, %s155
      %s157 = sphi 0, %s155
      %s158 = sphi 0, %s157
      %s172 = sphi 0, %s158
      %s176 = sphi 0, %s176
      %s178 = sphi 0, %s176
      %s179 = sphi 0, %s178
      %s193 = sphi 0, %s179
      %s197 = sphi 0, %s197
      %s199 = sphi 0, %s197
      %s200 = sphi 0, %s199
      %s214 = sphi 0, %s200
      %s218 = sphi 0, %s218
      %s220 = sphi 0, %s218
      %s221 = sphi 0, %s220
      %s235 = sphi 0, %s221
      %s239 = sphi 0, %s239
      %s241 = sphi 0, %s239
      %s242 = sphi 0, %s241
      %s256 = sphi 0, %s242
      %s260 = sphi 0, %s260
      %s262 = sphi 0, %s260
      %s263 = sphi 0, %s262
      %s277 = sphi 0, %s263
      %s281 = sphi 0, %s281
      %s283 = sphi 0, %s281
      %s284 = sphi 0, %s283
      %s298 = sphi 0, %s284
      %s302 = sphi 0, %s302
      %s304 = sphi 0, %s302
      %s305 = sphi 0, %s304
      %s319 = sphi 0, %s305
      %s323 = sphi 0, %s323
      %s325 = sphi 0, %s323
      %s326 = sphi 0, %s325
      %s340 = sphi 0, %s326
      %s344 = sphi 0, %s344
      %s346 = sphi 0, %s344
      %s347 = sphi 0, %s346
      %s361 = sphi 0, %s347
      %s365 = sphi 0, %s365
      %s367 = sphi 0, %s365
      %s368 = sphi 0, %s367
      %s382 = sphi 0, %s368
      %s386 = sphi 0, %s386
      %s388 = sphi 0, %s386
      %s389 = sphi 0, %s388
      %s403 = sphi 0, %s389
      %s407 = sphi 0, %s407
      %s409 = sphi 0, %s407
      %s410 = sphi 0, %s409
      %s424 = sphi 0, %s410
      %s428 = sphi 0, %s428
      %s430 = sphi 0, %s428
      %s431 = sphi 0, %s430
      %s445 = sphi 0, %s431
      %s449 = sphi 0, %s449
      %s451 = sphi 0, %s449
      %s452 = sphi 0, %s451
      %s466 = sphi 0, %s452
      %s470 = sphi 0, %s470
      %s472 = sphi 0, %s470
      %s473 = sphi 0, %s472
      %s487 = sphi 0, %s473
      %s491 = sphi 0, %s491
      %s493 = sphi 0, %s491
      %s494 = sphi 0, %s493
      %s508 = sphi 0, %s494
      %s512 = sphi 0, %s512
      %s514 = sphi 0, %s512
      %s515 = sphi 0, %s514
      %s529 = sphi 0, %s515
      %s535 = sphi 0, %s537
      %s538 = sphi 0, %s535
      %s539 = sphi 0, %s538
      %s555 = sphi 0, %s539
      %s561 = sphi 0, %s563
      %s564 = sphi 0, %s561
      %s565 = sphi 0, %s564
      %s581 = sphi 0, %s565
    $region4: #{tpu_custom_call.1} parent=1 // loop_header_branch
      %40 = sbr.rel (%p38) target = $region8
    $region5: #{tpu_custom_call.1} parent=1 // loop_body
      %s42 = ssub.s32 %s37, 1
      %s43 = ssub.s32 %s37, 2
      %s44 = sadd.s32 %s37, 1
      %s45 = ssub.s32 %s37, %s44
      %p46 = scmp.eq.s32.totalorder %s45, 0
      %s48 = sadd.s32 %s47, 1
      %s49 = scalar_select %p46, %s47, %s48
      %p52 = pneg %p46
      %p53 = scmp.eq.s32.totalorder %s37, 1
      %p54 = por %p52, %p53
      %p55 = scmp.ne.s32.totalorder %s47, %s50
      %p56 = scmp.eq.s32.totalorder %s37, 0
      %p57 = por %p55, %p56
      %p58 = scmp.ne.s32.totalorder %s47, %s50
      %p59 = scmp.eq.s32.totalorder %s42, 1
      %p60 = por %p58, %p59
      %p61 = scmp.ne.s32.totalorder %s50, %s51
      %p62 = scmp.eq.s32.totalorder %s42, 0
      %p63 = por %p61, %p62
      %p64 = scmp.ne.s32.totalorder %s50, %s51
      %p65 = scmp.eq.s32.totalorder %s43, 1
      %p66 = por %p64, %p65
      %p68 = scmp.ne.s32.totalorder %s51, %s67
      %p69 = scmp.eq.s32.totalorder %s43, 0
      %p70 = por %p68, %p69
      %s72 = sadd.s32 %s71, 1
      %p75 = scmp.eq.s32.totalorder %s37, 1
      %p76 = scmp.ne.s32.totalorder %s71, %s73
      %p77 = scmp.eq.s32.totalorder %s37, 0
      %p78 = por %p76, %p77
      %p79 = scmp.ne.s32.totalorder %s71, %s73
      %p80 = scmp.eq.s32.totalorder %s42, 1
      %p81 = por %p79, %p80
      %p82 = scmp.ne.s32.totalorder %s73, %s74
      %p83 = scmp.eq.s32.totalorder %s42, 0
      %p84 = por %p82, %p83
      %p85 = scmp.ne.s32.totalorder %s73, %s74
      %p86 = scmp.eq.s32.totalorder %s43, 1
      %p87 = por %p85, %p86
      %p89 = scmp.ne.s32.totalorder %s74, %s88
      %p90 = scmp.eq.s32.totalorder %s43, 0
      %p91 = por %p89, %p90
      %s93 = sadd.s32 %s92, 1
      %p96 = scmp.eq.s32.totalorder %s37, 1
      %p97 = scmp.ne.s32.totalorder %s92, %s94
      %p98 = scmp.eq.s32.totalorder %s37, 0
      %p99 = por %p97, %p98
      %p100 = scmp.ne.s32.totalorder %s92, %s94
      %p101 = scmp.eq.s32.totalorder %s42, 1
      %p102 = por %p100, %p101
      %p103 = scmp.ne.s32.totalorder %s94, %s95
      %p104 = scmp.eq.s32.totalorder %s42, 0
      %p105 = por %p103, %p104
      %p106 = scmp.ne.s32.totalorder %s94, %s95
      %p107 = scmp.eq.s32.totalorder %s43, 1
      %p108 = por %p106, %p107
      %p110 = scmp.ne.s32.totalorder %s95, %s109
      %p111 = scmp.eq.s32.totalorder %s43, 0
      %p112 = por %p110, %p111
      %s114 = sadd.s32 %s113, 1
      %p117 = scmp.eq.s32.totalorder %s37, 1
      %p118 = scmp.ne.s32.totalorder %s113, %s115
      %p119 = scmp.eq.s32.totalorder %s37, 0
      %p120 = por %p118, %p119
      %p121 = scmp.ne.s32.totalorder %s113, %s115
      %p122 = scmp.eq.s32.totalorder %s42, 1
      %p123 = por %p121, %p122
      %p124 = scmp.ne.s32.totalorder %s115, %s116
      %p125 = scmp.eq.s32.totalorder %s42, 0
      %p126 = por %p124, %p125
      %p127 = scmp.ne.s32.totalorder %s115, %s116
      %p128 = scmp.eq.s32.totalorder %s43, 1
      %p129 = por %p127, %p128
      %p131 = scmp.ne.s32.totalorder %s116, %s130
      %p132 = scmp.eq.s32.totalorder %s43, 0
      %p133 = por %p131, %p132
      %s135 = sadd.s32 %s134, 1
      %p138 = scmp.eq.s32.totalorder %s37, 1
      %p139 = scmp.ne.s32.totalorder %s134, %s136
      %p140 = scmp.eq.s32.totalorder %s37, 0
      %p141 = por %p139, %p140
      %p142 = scmp.ne.s32.totalorder %s134, %s136
      %p143 = scmp.eq.s32.totalorder %s42, 1
      %p144 = por %p142, %p143
      %p145 = scmp.ne.s32.totalorder %s136, %s137
      %p146 = scmp.eq.s32.totalorder %s42, 0
      %p147 = por %p145, %p146
      %p148 = scmp.ne.s32.totalorder %s136, %s137
      %p149 = scmp.eq.s32.totalorder %s43, 1
      %p150 = por %p148, %p149
      %p152 = scmp.ne.s32.totalorder %s137, %s151
      %p153 = scmp.eq.s32.totalorder %s43, 0
      %p154 = por %p152, %p153
      %s156 = sadd.s32 %s155, 1
      %p159 = scmp.eq.s32.totalorder %s37, 1
      %p160 = scmp.ne.s32.totalorder %s155, %s157
      %p161 = scmp.eq.s32.totalorder %s37, 0
      %p162 = por %p160, %p161
      %p163 = scmp.ne.s32.totalorder %s155, %s157
      %p164 = scmp.eq.s32.totalorder %s42, 1
      %p165 = por %p163, %p164
      %p166 = scmp.ne.s32.totalorder %s157, %s158
      %p167 = scmp.eq.s32.totalorder %s42, 0
      %p168 = por %p166, %p167
      %p169 = scmp.ne.s32.totalorder %s157, %s158
      %p170 = scmp.eq.s32.totalorder %s43, 1
      %p171 = por %p169, %p170
      %p173 = scmp.ne.s32.totalorder %s158, %s172
      %p174 = scmp.eq.s32.totalorder %s43, 0
      %p175 = por %p173, %p174
      %s177 = sadd.s32 %s176, 1
      %p180 = scmp.eq.s32.totalorder %s37, 1
      %p181 = scmp.ne.s32.totalorder %s176, %s178
      %p182 = scmp.eq.s32.totalorder %s37, 0
      %p183 = por %p181, %p182
      %p184 = scmp.ne.s32.totalorder %s176, %s178
      %p185 = scmp.eq.s32.totalorder %s42, 1
      %p186 = por %p184, %p185
      %p187 = scmp.ne.s32.totalorder %s178, %s179
      %p188 = scmp.eq.s32.totalorder %s42, 0
      %p189 = por %p187, %p188
      %p190 = scmp.ne.s32.totalorder %s178, %s179
      %p191 = scmp.eq.s32.totalorder %s43, 1
      %p192 = por %p190, %p191
      %p194 = scmp.ne.s32.totalorder %s179, %s193
      %p195 = scmp.eq.s32.totalorder %s43, 0
      %p196 = por %p194, %p195
      %s198 = sadd.s32 %s197, 1
      %p201 = scmp.eq.s32.totalorder %s37, 1
      %p202 = scmp.ne.s32.totalorder %s197, %s199
      %p203 = scmp.eq.s32.totalorder %s37, 0
      %p204 = por %p202, %p203
      %p205 = scmp.ne.s32.totalorder %s197, %s199
      %p206 = scmp.eq.s32.totalorder %s42, 1
      %p207 = por %p205, %p206
      %p208 = scmp.ne.s32.totalorder %s199, %s200
      %p209 = scmp.eq.s32.totalorder %s42, 0
      %p210 = por %p208, %p209
      %p211 = scmp.ne.s32.totalorder %s199, %s200
      %p212 = scmp.eq.s32.totalorder %s43, 1
      %p213 = por %p211, %p212
      %p215 = scmp.ne.s32.totalorder %s200, %s214
      %p216 = scmp.eq.s32.totalorder %s43, 0
      %p217 = por %p215, %p216
      %s219 = sadd.s32 %s218, 1
      %p222 = scmp.eq.s32.totalorder %s37, 1
      %p223 = scmp.ne.s32.totalorder %s218, %s220
      %p224 = scmp.eq.s32.totalorder %s37, 0
      %p225 = por %p223, %p224
      %p226 = scmp.ne.s32.totalorder %s218, %s220
      %p227 = scmp.eq.s32.totalorder %s42, 1
      %p228 = por %p226, %p227
      %p229 = scmp.ne.s32.totalorder %s220, %s221
      %p230 = scmp.eq.s32.totalorder %s42, 0
      %p231 = por %p229, %p230
      %p232 = scmp.ne.s32.totalorder %s220, %s221
      %p233 = scmp.eq.s32.totalorder %s43, 1
      %p234 = por %p232, %p233
      %p236 = scmp.ne.s32.totalorder %s221, %s235
      %p237 = scmp.eq.s32.totalorder %s43, 0
      %p238 = por %p236, %p237
      %s240 = sadd.s32 %s239, 1
      %p243 = scmp.eq.s32.totalorder %s37, 1
      %p244 = scmp.ne.s32.totalorder %s239, %s241
      %p245 = scmp.eq.s32.totalorder %s37, 0
      %p246 = por %p244, %p245
      %p247 = scmp.ne.s32.totalorder %s239, %s241
      %p248 = scmp.eq.s32.totalorder %s42, 1
      %p249 = por %p247, %p248
      %p250 = scmp.ne.s32.totalorder %s241, %s242
      %p251 = scmp.eq.s32.totalorder %s42, 0
      %p252 = por %p250, %p251
      %p253 = scmp.ne.s32.totalorder %s241, %s242
      %p254 = scmp.eq.s32.totalorder %s43, 1
      %p255 = por %p253, %p254
      %p257 = scmp.ne.s32.totalorder %s242, %s256
      %p258 = scmp.eq.s32.totalorder %s43, 0
      %p259 = por %p257, %p258
      %s261 = sadd.s32 %s260, 1
      %p264 = scmp.eq.s32.totalorder %s37, 1
      %p265 = scmp.ne.s32.totalorder %s260, %s262
      %p266 = scmp.eq.s32.totalorder %s37, 0
      %p267 = por %p265, %p266
      %p268 = scmp.ne.s32.totalorder %s260, %s262
      %p269 = scmp.eq.s32.totalorder %s42, 1
      %p270 = por %p268, %p269
      %p271 = scmp.ne.s32.totalorder %s262, %s263
      %p272 = scmp.eq.s32.totalorder %s42, 0
      %p273 = por %p271, %p272
      %p274 = scmp.ne.s32.totalorder %s262, %s263
      %p275 = scmp.eq.s32.totalorder %s43, 1
      %p276 = por %p274, %p275
      %p278 = scmp.ne.s32.totalorder %s263, %s277
      %p279 = scmp.eq.s32.totalorder %s43, 0
      %p280 = por %p278, %p279
      %s282 = sadd.s32 %s281, 1
      %p285 = scmp.eq.s32.totalorder %s37, 1
      %p286 = scmp.ne.s32.totalorder %s281, %s283
      %p287 = scmp.eq.s32.totalorder %s37, 0
      %p288 = por %p286, %p287
      %p289 = scmp.ne.s32.totalorder %s281, %s283
      %p290 = scmp.eq.s32.totalorder %s42, 1
      %p291 = por %p289, %p290
      %p292 = scmp.ne.s32.totalorder %s283, %s284
      %p293 = scmp.eq.s32.totalorder %s42, 0
      %p294 = por %p292, %p293
      %p295 = scmp.ne.s32.totalorder %s283, %s284
      %p296 = scmp.eq.s32.totalorder %s43, 1
      %p297 = por %p295, %p296
      %p299 = scmp.ne.s32.totalorder %s284, %s298
      %p300 = scmp.eq.s32.totalorder %s43, 0
      %p301 = por %p299, %p300
      %s303 = sadd.s32 %s302, 1
      %p306 = scmp.eq.s32.totalorder %s37, 1
      %p307 = scmp.ne.s32.totalorder %s302, %s304
      %p308 = scmp.eq.s32.totalorder %s37, 0
      %p309 = por %p307, %p308
      %p310 = scmp.ne.s32.totalorder %s302, %s304
      %p311 = scmp.eq.s32.totalorder %s42, 1
      %p312 = por %p310, %p311
      %p313 = scmp.ne.s32.totalorder %s304, %s305
      %p314 = scmp.eq.s32.totalorder %s42, 0
      %p315 = por %p313, %p314
      %p316 = scmp.ne.s32.totalorder %s304, %s305
      %p317 = scmp.eq.s32.totalorder %s43, 1
      %p318 = por %p316, %p317
      %p320 = scmp.ne.s32.totalorder %s305, %s319
      %p321 = scmp.eq.s32.totalorder %s43, 0
      %p322 = por %p320, %p321
      %s324 = sadd.s32 %s323, 1
      %p327 = scmp.eq.s32.totalorder %s37, 1
      %p328 = scmp.ne.s32.totalorder %s323, %s325
      %p329 = scmp.eq.s32.totalorder %s37, 0
      %p330 = por %p328, %p329
      %p331 = scmp.ne.s32.totalorder %s323, %s325
      %p332 = scmp.eq.s32.totalorder %s42, 1
      %p333 = por %p331, %p332
      %p334 = scmp.ne.s32.totalorder %s325, %s326
      %p335 = scmp.eq.s32.totalorder %s42, 0
      %p336 = por %p334, %p335
      %p337 = scmp.ne.s32.totalorder %s325, %s326
      %p338 = scmp.eq.s32.totalorder %s43, 1
      %p339 = por %p337, %p338
      %p341 = scmp.ne.s32.totalorder %s326, %s340
      %p342 = scmp.eq.s32.totalorder %s43, 0
      %p343 = por %p341, %p342
      %s345 = sadd.s32 %s344, 1
      %p348 = scmp.eq.s32.totalorder %s37, 1
      %p349 = scmp.ne.s32.totalorder %s344, %s346
      %p350 = scmp.eq.s32.totalorder %s37, 0
      %p351 = por %p349, %p350
      %p352 = scmp.ne.s32.totalorder %s344, %s346
      %p353 = scmp.eq.s32.totalorder %s42, 1
      %p354 = por %p352, %p353
      %p355 = scmp.ne.s32.totalorder %s346, %s347
      %p356 = scmp.eq.s32.totalorder %s42, 0
      %p357 = por %p355, %p356
      %p358 = scmp.ne.s32.totalorder %s346, %s347
      %p359 = scmp.eq.s32.totalorder %s43, 1
      %p360 = por %p358, %p359
      %p362 = scmp.ne.s32.totalorder %s347, %s361
      %p363 = scmp.eq.s32.totalorder %s43, 0
      %p364 = por %p362, %p363
      %s366 = sadd.s32 %s365, 1
      %p369 = scmp.eq.s32.totalorder %s37, 1
      %p370 = scmp.ne.s32.totalorder %s365, %s367
      %p371 = scmp.eq.s32.totalorder %s37, 0
      %p372 = por %p370, %p371
      %p373 = scmp.ne.s32.totalorder %s365, %s367
      %p374 = scmp.eq.s32.totalorder %s42, 1
      %p375 = por %p373, %p374
      %p376 = scmp.ne.s32.totalorder %s367, %s368
      %p377 = scmp.eq.s32.totalorder %s42, 0
      %p378 = por %p376, %p377
      %p379 = scmp.ne.s32.totalorder %s367, %s368
      %p380 = scmp.eq.s32.totalorder %s43, 1
      %p381 = por %p379, %p380
      %p383 = scmp.ne.s32.totalorder %s368, %s382
      %p384 = scmp.eq.s32.totalorder %s43, 0
      %p385 = por %p383, %p384
      %s387 = sadd.s32 %s386, 1
      %p390 = scmp.eq.s32.totalorder %s37, 1
      %p391 = scmp.ne.s32.totalorder %s386, %s388
      %p392 = scmp.eq.s32.totalorder %s37, 0
      %p393 = por %p391, %p392
      %p394 = scmp.ne.s32.totalorder %s386, %s388
      %p395 = scmp.eq.s32.totalorder %s42, 1
      %p396 = por %p394, %p395
      %p397 = scmp.ne.s32.totalorder %s388, %s389
      %p398 = scmp.eq.s32.totalorder %s42, 0
      %p399 = por %p397, %p398
      %p400 = scmp.ne.s32.totalorder %s388, %s389
      %p401 = scmp.eq.s32.totalorder %s43, 1
      %p402 = por %p400, %p401
      %p404 = scmp.ne.s32.totalorder %s389, %s403
      %p405 = scmp.eq.s32.totalorder %s43, 0
      %p406 = por %p404, %p405
      %s408 = sadd.s32 %s407, 1
      %p411 = scmp.eq.s32.totalorder %s37, 1
      %p412 = scmp.ne.s32.totalorder %s407, %s409
      %p413 = scmp.eq.s32.totalorder %s37, 0
      %p414 = por %p412, %p413
      %p415 = scmp.ne.s32.totalorder %s407, %s409
      %p416 = scmp.eq.s32.totalorder %s42, 1
      %p417 = por %p415, %p416
      %p418 = scmp.ne.s32.totalorder %s409, %s410
      %p419 = scmp.eq.s32.totalorder %s42, 0
      %p420 = por %p418, %p419
      %p421 = scmp.ne.s32.totalorder %s409, %s410
      %p422 = scmp.eq.s32.totalorder %s43, 1
      %p423 = por %p421, %p422
      %p425 = scmp.ne.s32.totalorder %s410, %s424
      %p426 = scmp.eq.s32.totalorder %s43, 0
      %p427 = por %p425, %p426
      %s429 = sadd.s32 %s428, 1
      %p432 = scmp.eq.s32.totalorder %s37, 1
      %p433 = scmp.ne.s32.totalorder %s428, %s430
      %p434 = scmp.eq.s32.totalorder %s37, 0
      %p435 = por %p433, %p434
      %p436 = scmp.ne.s32.totalorder %s428, %s430
      %p437 = scmp.eq.s32.totalorder %s42, 1
      %p438 = por %p436, %p437
      %p439 = scmp.ne.s32.totalorder %s430, %s431
      %p440 = scmp.eq.s32.totalorder %s42, 0
      %p441 = por %p439, %p440
      %p442 = scmp.ne.s32.totalorder %s430, %s431
      %p443 = scmp.eq.s32.totalorder %s43, 1
      %p444 = por %p442, %p443
      %p446 = scmp.ne.s32.totalorder %s431, %s445
      %p447 = scmp.eq.s32.totalorder %s43, 0
      %p448 = por %p446, %p447
      %s450 = sadd.s32 %s449, 1
      %p453 = scmp.eq.s32.totalorder %s37, 1
      %p454 = scmp.ne.s32.totalorder %s449, %s451
      %p455 = scmp.eq.s32.totalorder %s37, 0
      %p456 = por %p454, %p455
      %p457 = scmp.ne.s32.totalorder %s449, %s451
      %p458 = scmp.eq.s32.totalorder %s42, 1
      %p459 = por %p457, %p458
      %p460 = scmp.ne.s32.totalorder %s451, %s452
      %p461 = scmp.eq.s32.totalorder %s42, 0
      %p462 = por %p460, %p461
      %p463 = scmp.ne.s32.totalorder %s451, %s452
      %p464 = scmp.eq.s32.totalorder %s43, 1
      %p465 = por %p463, %p464
      %p467 = scmp.ne.s32.totalorder %s452, %s466
      %p468 = scmp.eq.s32.totalorder %s43, 0
      %p469 = por %p467, %p468
      %s471 = sadd.s32 %s470, 1
      %p474 = scmp.eq.s32.totalorder %s37, 1
      %p475 = scmp.ne.s32.totalorder %s470, %s472
      %p476 = scmp.eq.s32.totalorder %s37, 0
      %p477 = por %p475, %p476
      %p478 = scmp.ne.s32.totalorder %s470, %s472
      %p479 = scmp.eq.s32.totalorder %s42, 1
      %p480 = por %p478, %p479
      %p481 = scmp.ne.s32.totalorder %s472, %s473
      %p482 = scmp.eq.s32.totalorder %s42, 0
      %p483 = por %p481, %p482
      %p484 = scmp.ne.s32.totalorder %s472, %s473
      %p485 = scmp.eq.s32.totalorder %s43, 1
      %p486 = por %p484, %p485
      %p488 = scmp.ne.s32.totalorder %s473, %s487
      %p489 = scmp.eq.s32.totalorder %s43, 0
      %p490 = por %p488, %p489
      %s492 = sadd.s32 %s491, 1
      %p495 = scmp.eq.s32.totalorder %s37, 1
      %p496 = scmp.ne.s32.totalorder %s491, %s493
      %p497 = scmp.eq.s32.totalorder %s37, 0
      %p498 = por %p496, %p497
      %p499 = scmp.ne.s32.totalorder %s491, %s493
      %p500 = scmp.eq.s32.totalorder %s42, 1
      %p501 = por %p499, %p500
      %p502 = scmp.ne.s32.totalorder %s493, %s494
      %p503 = scmp.eq.s32.totalorder %s42, 0
      %p504 = por %p502, %p503
      %p505 = scmp.ne.s32.totalorder %s493, %s494
      %p506 = scmp.eq.s32.totalorder %s43, 1
      %p507 = por %p505, %p506
      %p509 = scmp.ne.s32.totalorder %s494, %s508
      %p510 = scmp.eq.s32.totalorder %s43, 0
      %p511 = por %p509, %p510
      %s513 = sadd.s32 %s512, 1
      %p516 = scmp.eq.s32.totalorder %s37, 1
      %p517 = scmp.ne.s32.totalorder %s512, %s514
      %p518 = scmp.eq.s32.totalorder %s37, 0
      %p519 = por %p517, %p518
      %p520 = scmp.ne.s32.totalorder %s512, %s514
      %p521 = scmp.eq.s32.totalorder %s42, 1
      %p522 = por %p520, %p521
      %p523 = scmp.ne.s32.totalorder %s514, %s515
      %p524 = scmp.eq.s32.totalorder %s42, 0
      %p525 = por %p523, %p524
      %p526 = scmp.ne.s32.totalorder %s514, %s515
      %p527 = scmp.eq.s32.totalorder %s43, 1
      %p528 = por %p526, %p527
      %p530 = scmp.ne.s32.totalorder %s515, %s529
      %p531 = scmp.eq.s32.totalorder %s43, 0
      %p532 = por %p530, %p531
      %s533 = ssub.s32 %s37, %s44
      %p534 = scmp.eq.s32.totalorder %s533, 0
      %s536 = sadd.s32 %s535, 1
      %s537 = scalar_select %p534, %s535, %s536
      %p540 = pneg %p534
      %p541 = scmp.eq.s32.totalorder %s37, 1
      %p542 = por %p540, %p541
      %p543 = scmp.ne.s32.totalorder %s535, %s538
      %p544 = scmp.eq.s32.totalorder %s37, 0
      %p545 = por %p543, %p544
      %p546 = scmp.ne.s32.totalorder %s535, %s538
      %p547 = scmp.eq.s32.totalorder %s42, 1
      %p548 = por %p546, %p547
      %p549 = scmp.ne.s32.totalorder %s538, %s539
      %p550 = scmp.eq.s32.totalorder %s42, 0
      %p551 = por %p549, %p550
      %p552 = scmp.ne.s32.totalorder %s538, %s539
      %p553 = scmp.eq.s32.totalorder %s43, 1
      %p554 = por %p552, %p553
      %p556 = scmp.ne.s32.totalorder %s539, %s555
      %p557 = scmp.eq.s32.totalorder %s43, 0
      %p558 = por %p556, %p557
      %s559 = ssub.s32 %s37, %s44
      %p560 = scmp.eq.s32.totalorder %s559, 0
      %s562 = sadd.s32 %s561, 1
      %s563 = scalar_select %p560, %s561, %s562
      %p566 = pneg %p560
      %p567 = scmp.eq.s32.totalorder %s37, 1
      %p568 = por %p566, %p567
      %p569 = scmp.ne.s32.totalorder %s561, %s564
      %p570 = scmp.eq.s32.totalorder %s37, 0
      %p571 = por %p569, %p570
      %p572 = scmp.ne.s32.totalorder %s561, %s564
      %p573 = scmp.eq.s32.totalorder %s42, 1
      %p574 = por %p572, %p573
      %p575 = scmp.ne.s32.totalorder %s564, %s565
      %p576 = scmp.eq.s32.totalorder %s42, 0
      %p577 = por %p575, %p576
      %p578 = scmp.ne.s32.totalorder %s564, %s565
      %p579 = scmp.eq.s32.totalorder %s43, 1
      %p580 = por %p578, %p579
      %p582 = scmp.ne.s32.totalorder %s565, %s581
      %p583 = scmp.eq.s32.totalorder %s43, 0
      %p584 = por %p582, %p583
      %p585 = scmp.le.s32.totalorder 1, %s37
      %p586 = scmp.lt.s32.totalorder %s37, 3
      %p587 = pnand %p585, %p586
      %p588 = pneg %p587
      // Predicated region
      $region9: #{tpu_custom_call.1} parent=5 // pred_check
        _
      $region10: #{tpu_custom_call.1} parent=5 // pred_check_branch
        %590 = sbr.rel (%p587) target = $region12
      $region11: #{tpu_custom_call.1} parent=5 // pred_region
        %s591 = ssub.s32 %s37, 1
        // Predicated region
        $region13: #{tpu_custom_call.1} parent=11 // pred_check
          %p592 = pneg %p84
        $region14: #{tpu_custom_call.1} parent=11 // pred_check_branch
          %594 = sbr.rel (%p592) target = $region16
        $region15: #{tpu_custom_call.1} parent=11 // pred_region
          _
        $region16: #{tpu_custom_call.1} parent=11 // pred_fallthru
          _
        // Predicated region
        $region17: #{tpu_custom_call.1} parent=11 // pred_check
          %p595 = pneg %p105
        $region18: #{tpu_custom_call.1} parent=11 // pred_check_branch
          %597 = sbr.rel (%p595) target = $region20
        $region19: #{tpu_custom_call.1} parent=11 // pred_region
          _
        $region20: #{tpu_custom_call.1} parent=11 // pred_fallthru
          _
        // Predicated region
        $region21: #{tpu_custom_call.1} parent=11 // pred_check
          %p598 = pneg %p126
        $region22: #{tpu_custom_call.1} parent=11 // pred_check_branch
          %600 = sbr.rel (%p598) target = $region24
        $region23: #{tpu_custom_call.1} parent=11 // pred_region
          _
        $region24: #{tpu_custom_call.1} parent=11 // pred_fallthru
          _
        // Predicated region
        $region25: #{tpu_custom_call.1} parent=11 // pred_check
          %p601 = pneg %p147
        $region26: #{tpu_custom_call.1} parent=11 // pred_check_branch
          %603 = sbr.rel (%p601) target = $region28
        $region27: #{tpu_custom_call.1} parent=11 // pred_region
          _
        $region28: #{tpu_custom_call.1} parent=11 // pred_fallthru
          _
        // Predicated region
        $region29: #{tpu_custom_call.1} parent=11 // pred_check
          %p604 = pneg %p168
        $region30: #{tpu_custom_call.1} parent=11 // pred_check_branch
          %606 = sbr.rel (%p604) target = $region32
        $region31: #{tpu_custom_call.1} parent=11 // pred_region
          _
        $region32: #{tpu_custom_call.1} parent=11 // pred_fallthru
          _
        // Predicated region
        $region33: #{tpu_custom_call.1} parent=11 // pred_check
          %p607 = pneg %p189
        $region34: #{tpu_custom_call.1} parent=11 // pred_check_branch
          %609 = sbr.rel (%p607) target = $region36
        $region35: #{tpu_custom_call.1} parent=11 // pred_region
          _
        $region36: #{tpu_custom_call.1} parent=11 // pred_fallthru
          _
        // Predicated region
        $region37: #{tpu_custom_call.1} parent=11 // pred_check
          %p610 = pneg %p210
        $region38: #{tpu_custom_call.1} parent=11 // pred_check_branch
          %612 = sbr.rel (%p610) target = $region40
        $region39: #{tpu_custom_call.1} parent=11 // pred_region
          _
        $region40: #{tpu_custom_call.1} parent=11 // pred_fallthru
          _
        // Predicated region
        $region41: #{tpu_custom_call.1} parent=11 // pred_check
          %p613 = pneg %p231
        $region42: #{tpu_custom_call.1} parent=11 // pred_check_branch
          %615 = sbr.rel (%p613) target = $region44
        $region43: #{tpu_custom_call.1} parent=11 // pred_region
          _
        $region44: #{tpu_custom_call.1} parent=11 // pred_fallthru
          _
        // Predicated region
        $region45: #{tpu_custom_call.1} parent=11 // pred_check
          %p616 = pneg %p252
        $region46: #{tpu_custom_call.1} parent=11 // pred_check_branch
          %618 = sbr.rel (%p616) target = $region48
        $region47: #{tpu_custom_call.1} parent=11 // pred_region
          _
        $region48: #{tpu_custom_call.1} parent=11 // pred_fallthru
          _
        // Predicated region
        $region49: #{tpu_custom_call.1} parent=11 // pred_check
          %p619 = pneg %p273
        $region50: #{tpu_custom_call.1} parent=11 // pred_check_branch
          %621 = sbr.rel (%p619) target = $region52
        $region51: #{tpu_custom_call.1} parent=11 // pred_region
          _
        $region52: #{tpu_custom_call.1} parent=11 // pred_fallthru
          _
        // Predicated region
        $region53: #{tpu_custom_call.1} parent=11 // pred_check
          %p622 = pneg %p294
        $region54: #{tpu_custom_call.1} parent=11 // pred_check_branch
          %624 = sbr.rel (%p622) target = $region56
        $region55: #{tpu_custom_call.1} parent=11 // pred_region
          _
        $region56: #{tpu_custom_call.1} parent=11 // pred_fallthru
          _
        // Predicated region
        $region57: #{tpu_custom_call.1} parent=11 // pred_check
          %p625 = pneg %p315
        $region58: #{tpu_custom_call.1} parent=11 // pred_check_branch
          %627 = sbr.rel (%p625) target = $region60
        $region59: #{tpu_custom_call.1} parent=11 // pred_region
          _
        $region60: #{tpu_custom_call.1} parent=11 // pred_fallthru
          _
        // Predicated region
        $region61: #{tpu_custom_call.1} parent=11 // pred_check
          %p628 = pneg %p336
        $region62: #{tpu_custom_call.1} parent=11 // pred_check_branch
          %630 = sbr.rel (%p628) target = $region64
        $region63: #{tpu_custom_call.1} parent=11 // pred_region
          _
        $region64: #{tpu_custom_call.1} parent=11 // pred_fallthru
          _
        // Predicated region
        $region65: #{tpu_custom_call.1} parent=11 // pred_check
          %p631 = pneg %p357
        $region66: #{tpu_custom_call.1} parent=11 // pred_check_branch
          %633 = sbr.rel (%p631) target = $region68
        $region67: #{tpu_custom_call.1} parent=11 // pred_region
          _
        $region68: #{tpu_custom_call.1} parent=11 // pred_fallthru
          _
        // Predicated region
        $region69: #{tpu_custom_call.1} parent=11 // pred_check
          %p634 = pneg %p378
        $region70: #{tpu_custom_call.1} parent=11 // pred_check_branch
          %636 = sbr.rel (%p634) target = $region72
        $region71: #{tpu_custom_call.1} parent=11 // pred_region
          _
        $region72: #{tpu_custom_call.1} parent=11 // pred_fallthru
          _
        // Predicated region
        $region73: #{tpu_custom_call.1} parent=11 // pred_check
          %p637 = pneg %p399
        $region74: #{tpu_custom_call.1} parent=11 // pred_check_branch
          %639 = sbr.rel (%p637) target = $region76
        $region75: #{tpu_custom_call.1} parent=11 // pred_region
          _
        $region76: #{tpu_custom_call.1} parent=11 // pred_fallthru
          _
        // Predicated region
        $region77: #{tpu_custom_call.1} parent=11 // pred_check
          %p640 = pneg %p420
        $region78: #{tpu_custom_call.1} parent=11 // pred_check_branch
          %642 = sbr.rel (%p640) target = $region80
        $region79: #{tpu_custom_call.1} parent=11 // pred_region
          _
        $region80: #{tpu_custom_call.1} parent=11 // pred_fallthru
          _
        // Predicated region
        $region81: #{tpu_custom_call.1} parent=11 // pred_check
          %p643 = pneg %p441
        $region82: #{tpu_custom_call.1} parent=11 // pred_check_branch
          %645 = sbr.rel (%p643) target = $region84
        $region83: #{tpu_custom_call.1} parent=11 // pred_region
          _
        $region84: #{tpu_custom_call.1} parent=11 // pred_fallthru
          _
        // Predicated region
        $region85: #{tpu_custom_call.1} parent=11 // pred_check
          %p646 = pneg %p462
        $region86: #{tpu_custom_call.1} parent=11 // pred_check_branch
          %648 = sbr.rel (%p646) target = $region88
        $region87: #{tpu_custom_call.1} parent=11 // pred_region
          _
        $region88: #{tpu_custom_call.1} parent=11 // pred_fallthru
          _
        // Predicated region
        $region89: #{tpu_custom_call.1} parent=11 // pred_check
          %p649 = pneg %p483
        $region90: #{tpu_custom_call.1} parent=11 // pred_check_branch
          %651 = sbr.rel (%p649) target = $region92
        $region91: #{tpu_custom_call.1} parent=11 // pred_region
          _
        $region92: #{tpu_custom_call.1} parent=11 // pred_fallthru
          _
        // Predicated region
        $region93: #{tpu_custom_call.1} parent=11 // pred_check
          %p652 = pneg %p504
        $region94: #{tpu_custom_call.1} parent=11 // pred_check_branch
          %654 = sbr.rel (%p652) target = $region96
        $region95: #{tpu_custom_call.1} parent=11 // pred_region
          _
        $region96: #{tpu_custom_call.1} parent=11 // pred_fallthru
          _
        // Predicated region
        $region97: #{tpu_custom_call.1} parent=11 // pred_check
          %p655 = pneg %p525
        $region98: #{tpu_custom_call.1} parent=11 // pred_check_branch
          %657 = sbr.rel (%p655) target = $region100
        $region99: #{tpu_custom_call.1} parent=11 // pred_region
          _
        $region100: #{tpu_custom_call.1} parent=11 // pred_fallthru
          _
      $region12: #{tpu_custom_call.1} parent=5 // pred_fallthru
        _
      %p658 = scmp.lt.s32.totalorder %s37, 2
      // Predicated region
      $region101: #{tpu_custom_call.1} parent=5 // pred_check
        %p659 = pneg %p658
      $region102: #{tpu_custom_call.1} parent=5 // pred_check_branch
        %661 = sbr.rel (%p659) target = $region104
      $region103: #{tpu_custom_call.1} parent=5 // pred_region
        // Predicated region
        $region105: #{tpu_custom_call.1} parent=103 // pred_check
          %p662 = pneg %p57
        $region106: #{tpu_custom_call.1} parent=103 // pred_check_branch
          %664 = sbr.rel (%p662) target = $region108
        $region107: #{tpu_custom_call.1} parent=103 // pred_region
          %s665 = smul.u32 20, %s37
          %p666 = scmp.lt.s32.totalorder %s665, 39
          %s667 = scalar_select %p666, %s665, 39
          %s668 = smul.addr %s667, 8
          %s669 = scalar_lea.vmem %s0, %s668
          %s670 = smul.u32 20, %s37
        $region108: #{tpu_custom_call.1} parent=103 // pred_fallthru
          _
      $region104: #{tpu_custom_call.1} parent=5 // pred_fallthru
        _
      %p671 = scmp.le.s32.totalorder 1, %s37
      %p672 = scmp.lt.s32.totalorder %s37, 3
      %p673 = pnand %p671, %p672
      %p674 = pneg %p673
      // Predicated region
      $region109: #{tpu_custom_call.1} parent=5 // pred_check
        _
      $region110: #{tpu_custom_call.1} parent=5 // pred_check_branch
        %676 = sbr.rel (%p673) target = $region112
      $region111: #{tpu_custom_call.1} parent=5 // pred_region
        %s677 = ssub.s32 %s37, 1
        %s678 = smul.u32 20, %s42
        %p679 = scmp.lt.s32.totalorder %s678, 39
        %s680 = scalar_select %p679, %s678, 39
        %s681 = smul.addr %s680, 8
        %s682 = scalar_lea.vmem %s0, %s681
        %p683 = pneg %p63
        %p684 = pneg %p60
        %p685 = pneg %p84
        %p686 = pneg %p81
        %p687 = pneg %p105
        %p688 = pneg %p102
        %p689 = pneg %p126
        %p690 = pneg %p123
        %p691 = pneg %p147
        %p692 = pneg %p144
        %p693 = pneg %p168
        %p694 = pneg %p165
        %p695 = pneg %p189
        %p696 = pneg %p186
        %p697 = pneg %p210
        %p698 = pneg %p207
        %p699 = pneg %p231
        %p700 = pneg %p228
        %p701 = pneg %p252
        %p702 = pneg %p249
        %p703 = pneg %p273
        %p704 = pneg %p270
        %p705 = pneg %p294
        %p706 = pneg %p291
        %p707 = pneg %p315
        %p708 = pneg %p312
        %p709 = pneg %p336
        %p710 = pneg %p333
        %p711 = pneg %p357
        %p712 = pneg %p354
        %p713 = pneg %p378
        %p714 = pneg %p375
        %p715 = pneg %p399
        %p716 = pneg %p396
        %p717 = pneg %p420
        %p718 = pneg %p417
        %p719 = pneg %p441
        %p720 = pneg %p438
        %p721 = pneg %p462
        %p722 = pneg %p459
        %p723 = pneg %p483
        %p724 = pneg %p480
        %p725 = pneg %p504
        %p726 = pneg %p501
        %p727 = pneg %p525
        %p728 = pneg %p522
        %p729 = pneg %p551
        %p730 = pneg %p548
        %s731 = sand.u32 %s538, 1
        %s732 = scalar_lea.sflag [#allocation6], %s731
        %s733 = sand.u32 %s538, 1
        %s734 = smul.addr %s733, 4
        %s735 = scalar_lea.vmem [#allocation5], %s734
        %p736 = pneg %p577
        %p737 = pneg %p574
        %s738 = sand.u32 %s564, 1
        %s739 = scalar_lea.sflag [#allocation8], %s738
        %s740 = sand.u32 %s564, 1
        %s741 = smul.addr %s740, 4
        %s742 = scalar_lea.vmem [#allocation7], %s741
        %s743 = smul.u32 20, %s42
        %p744 = scmp.lt.s32.totalorder %s743, 39
        %s745 = scalar_select %p744, %s743, 39
        %s746 = smul.addr %s745, 8
        %s747 = scalar_lea.vmem %s0, %s746
        %s748 = smul.u32 20, %s42
        %v750 = vld [vmem:[%s747] sm:$0xff]
        %v751 = vld [vmem:[%s747 + $0x8] sm:$0xff]
        %v752 = vld [vmem:[%s747 + $0x10] sm:$0xff]
        %v753 = vld [vmem:[%s747 + $0x18] sm:$0xff]
        %v754 = vld [vmem:[%s747 + $0x20] sm:$0xff]
        %v755 = vld [vmem:[%s747 + $0x28] sm:$0xff]
        %v756 = vld [vmem:[%s747 + $0x30] sm:$0xff]
        %v757 = vld [vmem:[%s747 + $0x38] sm:$0xff]
        %v758 = vld [vmem:[%s747 + $0x40] sm:$0xff]
        %v759 = vld [vmem:[%s747 + $0x48] sm:$0xff]
        %v760 = vld [vmem:[%s747 + $0x50] sm:$0xff]
        %v761 = vld [vmem:[%s747 + $0x58] sm:$0xff]
        %v762 = vld [vmem:[%s747 + $0x60] sm:$0xff]
        %v763 = vld [vmem:[%s747 + $0x68] sm:$0xff]
        %v764 = vld [vmem:[%s747 + $0x70] sm:$0xff]
        %v765 = vld [vmem:[%s747 + $0x78] sm:$0xff]
        %v766 = vld [vmem:[%s747 + $0x80] sm:$0xff]
        %v767 = vld [vmem:[%s747 + $0x88] sm:$0xff]
        %v768 = vld [vmem:[%s747 + $0x90] sm:$0xff]
        %v769 = vld [vmem:[%s747 + $0x98] sm:$0xff]
        %v770 = vrot.slane %v750, 7
        %v771 = vrot.slane %v751, 7
        %v772 = vrot.slane %v752, 7
        %v773 = vrot.slane %v753, 7
        %v774 = vrot.slane %v754, 7
        %v775 = vrot.slane %v755, 7
        %v776 = vrot.slane %v756, 7
        %v777 = vrot.slane %v757, 7
        %v778 = vrot.slane %v758, 7
        %v779 = vrot.slane %v759, 7
        %v780 = vrot.slane %v760, 7
        %v781 = vrot.slane %v761, 7
        %v782 = vrot.slane %v762, 7
        %v783 = vrot.slane %v763, 7
        %v784 = vrot.slane %v764, 7
        %v785 = vrot.slane %v765, 7
        %v786 = vrot.slane %v766, 7
        %v787 = vrot.slane %v767, 7
        %v788 = vrot.slane %v768, 7
        %v789 = vrot.slane %v769, 7
        %v790 = vlaneseq
        %v791 = vshrl.u32 %v790, 7
        %vm792 = vcmp.lt.s32.totalorder %v791, 1
        %v793 = vsel %vm792, %v788, %v789
        %v794 = vsel %vm792, %v787, %v788
        %v795 = vsel %vm792, %v786, %v787
        %v796 = vsel %vm792, %v785, %v786
        %v797 = vsel %vm792, %v784, %v785
        %v798 = vsel %vm792, %v783, %v784
        %v799 = vsel %vm792, %v782, %v783
        %v800 = vsel %vm792, %v781, %v782
        %v801 = vsel %vm792, %v780, %v781
        %v802 = vsel %vm792, %v779, %v780
        %v803 = vsel %vm792, %v778, %v779
        %v804 = vsel %vm792, %v777, %v778
        %v805 = vsel %vm792, %v776, %v777
        %v806 = vsel %vm792, %v775, %v776
        %v807 = vsel %vm792, %v774, %v775
        %v808 = vsel %vm792, %v773, %v774
        %v809 = vsel %vm792, %v772, %v773
        %v810 = vsel %vm792, %v771, %v772
        %v811 = vsel %vm792, %v770, %v771
        %v812 = vsel %vm792, %v789, %v770
        %v813 = vld [vmem:[%s1] sm:$0xff]
        %v814 = vld [vmem:[%s1 + $0x8] sm:$0xff]
        %v815 = vld [vmem:[%s1 + $0x10] sm:$0xff]
        %v816 = vld [vmem:[%s1 + $0x18] sm:$0xff]
        %v817 = vld [vmem:[%s1 + $0x20] sm:$0xff]
        %v818 = vld [vmem:[%s1 + $0x28] sm:$0xff]
        %v819 = vld [vmem:[%s1 + $0x30] sm:$0xff]
        %v820 = vld [vmem:[%s1 + $0x38] sm:$0xff]
        %v821 = vld [vmem:[%s1 + $0x40] sm:$0xff]
        %v822 = vld [vmem:[%s1 + $0x48] sm:$0xff]
        %v823 = vld [vmem:[%s1 + $0x50] sm:$0xff]
        %v824 = vld [vmem:[%s1 + $0x58] sm:$0xff]
        %v825 = vld [vmem:[%s1 + $0x60] sm:$0xff]
        %v826 = vld [vmem:[%s1 + $0x68] sm:$0xff]
        %v827 = vld [vmem:[%s1 + $0x70] sm:$0xff]
        %v828 = vld [vmem:[%s1 + $0x78] sm:$0xff]
        %v829 = vld [vmem:[%s1 + $0x80] sm:$0xff]
        %v830 = vld [vmem:[%s1 + $0x88] sm:$0xff]
        %v831 = vld [vmem:[%s1 + $0x90] sm:$0xff]
        %v832 = vld [vmem:[%s1 + $0x98] sm:$0xff]
        %834 = vset.pattern.permute.xlu0 0
        %835 = vperm.xlu0 %834, %v813
        %v836 = vpop.permute.xlu0 %835
        %839 = vset.pattern.permute.xlu0 0
        %840 = vperm.xlu0 %839, %v814
        %v841 = vpop.permute.xlu0 %840
        %844 = vset.pattern.permute.xlu0 0
        %845 = vperm.xlu0 %844, %v815
        %v846 = vpop.permute.xlu0 %845
        %849 = vset.pattern.permute.xlu0 0
        %850 = vperm.xlu0 %849, %v816
        %v851 = vpop.permute.xlu0 %850
        %854 = vset.pattern.permute.xlu0 0
        %855 = vperm.xlu0 %854, %v817
        %v856 = vpop.permute.xlu0 %855
        %859 = vset.pattern.permute.xlu0 0
        %860 = vperm.xlu0 %859, %v818
        %v861 = vpop.permute.xlu0 %860
        %864 = vset.pattern.permute.xlu0 0
        %865 = vperm.xlu0 %864, %v819
        %v866 = vpop.permute.xlu0 %865
        %869 = vset.pattern.permute.xlu0 0
        %870 = vperm.xlu0 %869, %v820
        %v871 = vpop.permute.xlu0 %870
        %874 = vset.pattern.permute.xlu0 0
        %875 = vperm.xlu0 %874, %v821
        %v876 = vpop.permute.xlu0 %875
        %879 = vset.pattern.permute.xlu0 0
        %880 = vperm.xlu0 %879, %v822
        %v881 = vpop.permute.xlu0 %880
        %884 = vset.pattern.permute.xlu0 0
        %885 = vperm.xlu0 %884, %v823
        %v886 = vpop.permute.xlu0 %885
        %889 = vset.pattern.permute.xlu0 0
        %890 = vperm.xlu0 %889, %v824
        %v891 = vpop.permute.xlu0 %890
        %894 = vset.pattern.permute.xlu0 0
        %895 = vperm.xlu0 %894, %v825
        %v896 = vpop.permute.xlu0 %895
        %899 = vset.pattern.permute.xlu0 0
        %900 = vperm.xlu0 %899, %v826
        %v901 = vpop.permute.xlu0 %900
        %904 = vset.pattern.permute.xlu0 0
        %905 = vperm.xlu0 %904, %v827
        %v906 = vpop.permute.xlu0 %905
        %909 = vset.pattern.permute.xlu0 0
        %910 = vperm.xlu0 %909, %v828
        %v911 = vpop.permute.xlu0 %910
        %914 = vset.pattern.permute.xlu0 0
        %915 = vperm.xlu0 %914, %v829
        %v916 = vpop.permute.xlu0 %915
        %919 = vset.pattern.permute.xlu0 0
        %920 = vperm.xlu0 %919, %v830
        %v921 = vpop.permute.xlu0 %920
        %924 = vset.pattern.permute.xlu0 0
        %925 = vperm.xlu0 %924, %v831
        %v926 = vpop.permute.xlu0 %925
        %929 = vset.pattern.permute.xlu0 0
        %930 = vperm.xlu0 %929, %v832
        %v931 = vpop.permute.xlu0 %930
        %v933 = vmul.f32 %v812, %v836
        %v934 = vmul.f32 %v811, %v841
        %v935 = vmul.f32 %v810, %v846
        %v936 = vmul.f32 %v809, %v851
        %v937 = vmul.f32 %v808, %v856
        %v938 = vmul.f32 %v807, %v861
        %v939 = vmul.f32 %v806, %v866
        %v940 = vmul.f32 %v805, %v871
        %v941 = vmul.f32 %v804, %v876
        %v942 = vmul.f32 %v803, %v881
        %v943 = vmul.f32 %v802, %v886
        %v944 = vmul.f32 %v801, %v891
        %v945 = vmul.f32 %v800, %v896
        %v946 = vmul.f32 %v799, %v901
        %v947 = vmul.f32 %v798, %v906
        %v948 = vmul.f32 %v797, %v911
        %v949 = vmul.f32 %v796, %v916
        %v950 = vmul.f32 %v795, %v921
        %v951 = vmul.f32 %v794, %v926
        %v952 = vmul.f32 %v793, %v931
        %v953 = vpack.c.bf16 %v934, %v933
        %v954 = vpack.c.bf16 %v936, %v935
        %v955 = vpack.c.bf16 %v938, %v937
        %v956 = vpack.c.bf16 %v940, %v939
        %v957 = vpack.c.bf16 %v942, %v941
        %v958 = vpack.c.bf16 %v944, %v943
        %v959 = vpack.c.bf16 %v946, %v945
        %v960 = vpack.c.bf16 %v948, %v947
        %v961 = vpack.c.bf16 %v950, %v949
        %v962 = vpack.c.bf16 %v952, %v951
        %v963 = vpack.c.bf16 %v751, %v750
        %v964 = vpack.c.bf16 %v753, %v752
        %v965 = vpack.c.bf16 %v755, %v754
        %v966 = vpack.c.bf16 %v757, %v756
        %v967 = vpack.c.bf16 %v759, %v758
        %v968 = vpack.c.bf16 %v761, %v760
        %v969 = vpack.c.bf16 %v763, %v762
        %v970 = vpack.c.bf16 %v765, %v764
        %v971 = vpack.c.bf16 %v767, %v766
        %v972 = vpack.c.bf16 %v769, %v768
        %v973 = vrot.slane %v750, 1
        %v974 = vrot.slane %v751, 1
        %v975 = vrot.slane %v752, 1
        %v976 = vrot.slane %v753, 1
        %v977 = vrot.slane %v754, 1
        %v978 = vrot.slane %v755, 1
        %v979 = vrot.slane %v756, 1
        %v980 = vrot.slane %v757, 1
        %v981 = vrot.slane %v758, 1
        %v982 = vrot.slane %v759, 1
        %v983 = vrot.slane %v760, 1
        %v984 = vrot.slane %v761, 1
        %v985 = vrot.slane %v762, 1
        %v986 = vrot.slane %v763, 1
        %v987 = vrot.slane %v764, 1
        %v988 = vrot.slane %v765, 1
        %v989 = vrot.slane %v766, 1
        %v990 = vrot.slane %v767, 1
        %v991 = vrot.slane %v768, 1
        %v992 = vrot.slane %v769, 1
        %vm993 = vcmp.lt.s32.totalorder %v791, 7
        %v994 = vsel %vm993, %v991, %v992
        %v995 = vsel %vm993, %v990, %v991
        %v996 = vsel %vm993, %v989, %v990
        %v997 = vsel %vm993, %v988, %v989
        %v998 = vsel %vm993, %v987, %v988
        %v999 = vsel %vm993, %v986, %v987
        %v1000 = vsel %vm993, %v985, %v986
        %v1001 = vsel %vm993, %v984, %v985
        %v1002 = vsel %vm993, %v983, %v984
        %v1003 = vsel %vm993, %v982, %v983
        %v1004 = vsel %vm993, %v981, %v982
        %v1005 = vsel %vm993, %v980, %v981
        %v1006 = vsel %vm993, %v979, %v980
        %v1007 = vsel %vm993, %v978, %v979
        %v1008 = vsel %vm993, %v977, %v978
        %v1009 = vsel %vm993, %v976, %v977
        %v1010 = vsel %vm993, %v975, %v976
        %v1011 = vsel %vm993, %v974, %v975
        %v1012 = vsel %vm993, %v973, %v974
        %v1013 = vsel %vm993, %v992, %v973
        %v1014 = vld [vmem:[%s2] sm:$0xff]
        %v1015 = vld [vmem:[%s2 + $0x8] sm:$0xff]
        %v1016 = vld [vmem:[%s2 + $0x10] sm:$0xff]
        %v1017 = vld [vmem:[%s2 + $0x18] sm:$0xff]
        %v1018 = vld [vmem:[%s2 + $0x20] sm:$0xff]
        %v1019 = vld [vmem:[%s2 + $0x28] sm:$0xff]
        %v1020 = vld [vmem:[%s2 + $0x30] sm:$0xff]
        %v1021 = vld [vmem:[%s2 + $0x38] sm:$0xff]
        %v1022 = vld [vmem:[%s2 + $0x40] sm:$0xff]
        %v1023 = vld [vmem:[%s2 + $0x48] sm:$0xff]
        %v1024 = vld [vmem:[%s2 + $0x50] sm:$0xff]
        %v1025 = vld [vmem:[%s2 + $0x58] sm:$0xff]
        %v1026 = vld [vmem:[%s2 + $0x60] sm:$0xff]
        %v1027 = vld [vmem:[%s2 + $0x68] sm:$0xff]
        %v1028 = vld [vmem:[%s2 + $0x70] sm:$0xff]
        %v1029 = vld [vmem:[%s2 + $0x78] sm:$0xff]
        %v1030 = vld [vmem:[%s2 + $0x80] sm:$0xff]
        %v1031 = vld [vmem:[%s2 + $0x88] sm:$0xff]
        %v1032 = vld [vmem:[%s2 + $0x90] sm:$0xff]
        %v1033 = vld [vmem:[%s2 + $0x98] sm:$0xff]
        %1035 = vset.pattern.permute.xlu0 0
        %1036 = vperm.xlu0 %1035, %v1014
        %v1037 = vpop.permute.xlu0 %1036
        %1040 = vset.pattern.permute.xlu0 0
        %1041 = vperm.xlu0 %1040, %v1015
        %v1042 = vpop.permute.xlu0 %1041
        %1045 = vset.pattern.permute.xlu0 0
        %1046 = vperm.xlu0 %1045, %v1016
        %v1047 = vpop.permute.xlu0 %1046
        %1050 = vset.pattern.permute.xlu0 0
        %1051 = vperm.xlu0 %1050, %v1017
        %v1052 = vpop.permute.xlu0 %1051
        %1055 = vset.pattern.permute.xlu0 0
        %1056 = vperm.xlu0 %1055, %v1018
        %v1057 = vpop.permute.xlu0 %1056
        %1060 = vset.pattern.permute.xlu0 0
        %1061 = vperm.xlu0 %1060, %v1019
        %v1062 = vpop.permute.xlu0 %1061
        %1065 = vset.pattern.permute.xlu0 0
        %1066 = vperm.xlu0 %1065, %v1020
        %v1067 = vpop.permute.xlu0 %1066
        %1070 = vset.pattern.permute.xlu0 0
        %1071 = vperm.xlu0 %1070, %v1021
        %v1072 = vpop.permute.xlu0 %1071
        %1075 = vset.pattern.permute.xlu0 0
        %1076 = vperm.xlu0 %1075, %v1022
        %v1077 = vpop.permute.xlu0 %1076
        %1080 = vset.pattern.permute.xlu0 0
        %1081 = vperm.xlu0 %1080, %v1023
        %v1082 = vpop.permute.xlu0 %1081
        %1085 = vset.pattern.permute.xlu0 0
        %1086 = vperm.xlu0 %1085, %v1024
        %v1087 = vpop.permute.xlu0 %1086
        %1090 = vset.pattern.permute.xlu0 0
        %1091 = vperm.xlu0 %1090, %v1025
        %v1092 = vpop.permute.xlu0 %1091
        %1095 = vset.pattern.permute.xlu0 0
        %1096 = vperm.xlu0 %1095, %v1026
        %v1097 = vpop.permute.xlu0 %1096
        %1100 = vset.pattern.permute.xlu0 0
        %1101 = vperm.xlu0 %1100, %v1027
        %v1102 = vpop.permute.xlu0 %1101
        %1105 = vset.pattern.permute.xlu0 0
        %1106 = vperm.xlu0 %1105, %v1028
        %v1107 = vpop.permute.xlu0 %1106
        %1110 = vset.pattern.permute.xlu0 0
        %1111 = vperm.xlu0 %1110, %v1029
        %v1112 = vpop.permute.xlu0 %1111
        %1115 = vset.pattern.permute.xlu0 0
        %1116 = vperm.xlu0 %1115, %v1030
        %v1117 = vpop.permute.xlu0 %1116
        %1120 = vset.pattern.permute.xlu0 0
        %1121 = vperm.xlu0 %1120, %v1031
        %v1122 = vpop.permute.xlu0 %1121
        %1125 = vset.pattern.permute.xlu0 0
        %1126 = vperm.xlu0 %1125, %v1032
        %v1127 = vpop.permute.xlu0 %1126
        %1130 = vset.pattern.permute.xlu0 0
        %1131 = vperm.xlu0 %1130, %v1033
        %v1132 = vpop.permute.xlu0 %1131
        %v1134 = vmul.f32 %v1012, %v1037
        %v1135 = vmul.f32 %v1011, %v1042
        %v1136 = vmul.f32 %v1010, %v1047
        %v1137 = vmul.f32 %v1009, %v1052
        %v1138 = vmul.f32 %v1008, %v1057
        %v1139 = vmul.f32 %v1007, %v1062
        %v1140 = vmul.f32 %v1006, %v1067
        %v1141 = vmul.f32 %v1005, %v1072
        %v1142 = vmul.f32 %v1004, %v1077
        %v1143 = vmul.f32 %v1003, %v1082
        %v1144 = vmul.f32 %v1002, %v1087
        %v1145 = vmul.f32 %v1001, %v1092
        %v1146 = vmul.f32 %v1000, %v1097
        %v1147 = vmul.f32 %v999, %v1102
        %v1148 = vmul.f32 %v998, %v1107
        %v1149 = vmul.f32 %v997, %v1112
        %v1150 = vmul.f32 %v996, %v1117
        %v1151 = vmul.f32 %v995, %v1122
        %v1152 = vmul.f32 %v994, %v1127
        %v1153 = vmul.f32 %v1013, %v1132
        %v1154 = vpack.c.bf16 %v1135, %v1134
        %v1155 = vpack.c.bf16 %v1137, %v1136
        %v1156 = vpack.c.bf16 %v1139, %v1138
        %v1157 = vpack.c.bf16 %v1141, %v1140
        %v1158 = vpack.c.bf16 %v1143, %v1142
        %v1159 = vpack.c.bf16 %v1145, %v1144
        %v1160 = vpack.c.bf16 %v1147, %v1146
        %v1161 = vpack.c.bf16 %v1149, %v1148
        %v1162 = vpack.c.bf16 %v1151, %v1150
        %v1163 = vpack.c.bf16 %v1153, %v1152
        %1174 = vrot.lane.b32.xlu0 %v963, 4
        %v1175 = vpop.permute.xlu0 %1174
        %1176 = vrot.lane.b32.xlu0 %v964, 4
        %v1177 = vpop.permute.xlu0 %1176
        %1178 = vrot.lane.b32.xlu0 %v965, 4
        %v1179 = vpop.permute.xlu0 %1178
        %1180 = vrot.lane.b32.xlu0 %v966, 4
        %v1181 = vpop.permute.xlu0 %1180
        %1182 = vrot.lane.b32.xlu0 %v967, 4
        %v1183 = vpop.permute.xlu0 %1182
        %1184 = vrot.lane.b32.xlu0 %v968, 4
        %v1185 = vpop.permute.xlu0 %1184
        %1186 = vrot.lane.b32.xlu0 %v969, 4
        %v1187 = vpop.permute.xlu0 %1186
        %1188 = vrot.lane.b32.xlu0 %v970, 4
        %v1189 = vpop.permute.xlu0 %1188
        %1190 = vrot.lane.b32.xlu0 %v971, 4
        %v1191 = vpop.permute.xlu0 %1190
        %1192 = vrot.lane.b32.xlu0 %v972, 4
        %v1193 = vpop.permute.xlu0 %1192
        %1204 = vrot.lane.b32.xlu0 %v1154, 8
        %v1205 = vpop.permute.xlu0 %1204
        %1206 = vrot.lane.b32.xlu0 %v1155, 8
        %v1207 = vpop.permute.xlu0 %1206
        %1208 = vrot.lane.b32.xlu0 %v1156, 8
        %v1209 = vpop.permute.xlu0 %1208
        %1210 = vrot.lane.b32.xlu0 %v1157, 8
        %v1211 = vpop.permute.xlu0 %1210
        %1212 = vrot.lane.b32.xlu0 %v1158, 8
        %v1213 = vpop.permute.xlu0 %1212
        %1214 = vrot.lane.b32.xlu0 %v1159, 8
        %v1215 = vpop.permute.xlu0 %1214
        %1216 = vrot.lane.b32.xlu0 %v1160, 8
        %v1217 = vpop.permute.xlu0 %1216
        %1218 = vrot.lane.b32.xlu0 %v1161, 8
        %v1219 = vpop.permute.xlu0 %1218
        %1220 = vrot.lane.b32.xlu0 %v1162, 8
        %v1221 = vpop.permute.xlu0 %1220
        %1222 = vrot.lane.b32.xlu0 %v1163, 8
        %v1223 = vpop.permute.xlu0 %1222
        %vm1224 = vcmask 31744
        %v1227 = vsel %vm1224, %v953, %v1175
        %v1230 = vsel %vm1224, %v954, %v1177
        %v1233 = vsel %vm1224, %v955, %v1179
        %v1236 = vsel %vm1224, %v956, %v1181
        %v1239 = vsel %vm1224, %v957, %v1183
        %v1242 = vsel %vm1224, %v958, %v1185
        %v1245 = vsel %vm1224, %v959, %v1187
        %v1248 = vsel %vm1224, %v960, %v1189
        %v1251 = vsel %vm1224, %v961, %v1191
        %v1254 = vsel %vm1224, %v962, %v1193
        %vm1255 = vcmask 64512
        %v1257 = vsel %vm1255, %v1227, %v1205
        %v1259 = vsel %vm1255, %v1230, %v1207
        %v1261 = vsel %vm1255, %v1233, %v1209
        %v1263 = vsel %vm1255, %v1236, %v1211
        %v1265 = vsel %vm1255, %v1239, %v1213
        %v1267 = vsel %vm1255, %v1242, %v1215
        %v1269 = vsel %vm1255, %v1245, %v1217
        %v1271 = vsel %vm1255, %v1248, %v1219
        %v1273 = vsel %vm1255, %v1251, %v1221
        %v1275 = vsel %vm1255, %v1254, %v1223
        %v1276 = vld [vmem:[%s7] sm:$0xf]
        %v1277 = vld [vmem:[%s7 + $0x4] sm:$0x3]
        %v1278 = vld [vmem:[%s8] sm:$0x1]
        %v1280 = vlaneseq
        %v1281 = vshrl.u32 %v1280, 7
        %v1282 = vsub.s32 0, %v1281
        %v1283 = vrot.slane %v1278, %v1282
        %v1287 = vunpack.c.l.b16 %v1276
        %v1288 = vunpack.c.l.b16 %v1277
        %v1289 = vpack.c.b16 %v1288, %v1287
        %vm1290 = vcmask 97280
        %v1291 = vsel %vm1290, %v1257, 0
        %v1293 = vsel %vm1290, %v1259, 0
        %v1295 = vsel %vm1290, %v1261, 0
        %v1297 = vsel %vm1290, %v1263, 0
        %v1299 = vsel %vm1290, %v1265, 0
        %v1301 = vsel %vm1290, %v1267, 0
        %v1303 = vsel %vm1290, %v1269, 0
        %v1305 = vsel %vm1290, %v1271, 0
        %v1307 = vsel %vm1290, %v1273, 0
        %v1309 = vsel %vm1290, %v1275, 0
        %vm1311 = vcmask 1045504
        %v1313 = vsel %vm1311, %v1289, 0
        %1315 = vmatprep.subr.bf16.mxu0 0
        %1316 = vmatpush1.bf16.msra.mxu0 0
        %1317 = vmatprep.subr.bf16.mxu0 0
        %1318 = vmatpush1.bf16.msra.mxu0 0
        %1319 = vmatprep.subr.bf16.mxu0 0
        %1320 = vmatpush1.bf16.msra.mxu0 0
        %1321 = vmatprep.subr.bf16.mxu0 0
        %1322 = vmatpush1.bf16.msra.mxu0 0
        %1323 = vmatprep.subr.bf16.mxu0 0
        %1324 = vmatpush1.bf16.msra.mxu0 0
        %1325 = vmatprep.subr.bf16.mxu0 0
        %1326 = vmatpush1.bf16.msra.mxu0 0
        %1327 = vmatprep.subr.bf16.mxu0 0
        %1328 = vmatpush1.bf16.msra.mxu0 0
        %1329 = vmatprep.subr.bf16.mxu0 0
        %1330 = vmatpush1.bf16.msra.mxu0 %v1313
        %1331 = vmatprep.subr.bf16.mxu0 0
        %1332 = vmatpush2.bf16.msra.mxu0 0
        %1333 = vmatprep.subr.bf16.mxu0 0
        %1334 = vmatpush2.bf16.msra.mxu0 0
        %1335 = vmatprep.subr.bf16.mxu0 0
        %1336 = vmatpush2.bf16.msra.mxu0 0
        %1337 = vmatprep.subr.bf16.mxu0 0
        %1338 = vmatpush2.bf16.msra.mxu0 0
        %1339 = vmatprep.subr.bf16.mxu0 0
        %1340 = vmatpush2.bf16.msra.mxu0 0
        %1341 = vmatprep.subr.bf16.mxu0 0
        %1342 = vmatpush2.bf16.msra.mxu0 0
        %1343 = vmatprep.subr.bf16.mxu0 0
        %1344 = vmatpush2.bf16.msra.mxu0 0
        %1345 = vmatprep.subr.bf16.mxu0 0
        %1346 = vmatpush2.bf16.msra.mxu0 0
        %1347 = vmatprep.mubr.bf16.mxu0 0
        %1348 = vmatmul.mubr.bf16.gmra.mxu0 %v1291
        %v1349 = vpop.f32.mrf.mxu0
        %v1350 = vadd.f32 %v1283, %v1349
        %v1351 = vpop.f32.mrf.mxu0
        %v1352 = vpop.f32.mrf.mxu0
        %v1353 = vadd.f32 %v1283, %v1352
        %v1354 = vpop.f32.mrf.mxu0
        %1355 = vmatprep.mubr.bf16.mxu0 0
        %1356 = vmatmul.mubr.bf16.gmra.mxu0 %v1293
        %v1357 = vpop.f32.mrf.mxu0
        %v1358 = vadd.f32 %v1283, %v1357
        %v1359 = vpop.f32.mrf.mxu0
        %v1360 = vpop.f32.mrf.mxu0
        %v1361 = vadd.f32 %v1283, %v1360
        %v1362 = vpop.f32.mrf.mxu0
        %1363 = vmatprep.mubr.bf16.mxu0 0
        %1364 = vmatmul.mubr.bf16.gmra.mxu0 %v1295
        %v1365 = vpop.f32.mrf.mxu0
        %v1366 = vadd.f32 %v1283, %v1365
        %v1367 = vpop.f32.mrf.mxu0
        %v1368 = vpop.f32.mrf.mxu0
        %v1369 = vadd.f32 %v1283, %v1368
        %v1370 = vpop.f32.mrf.mxu0
        %1371 = vmatprep.mubr.bf16.mxu0 0
        %1372 = vmatmul.mubr.bf16.gmra.mxu0 %v1297
        %v1373 = vpop.f32.mrf.mxu0
        %v1374 = vadd.f32 %v1283, %v1373
        %v1375 = vpop.f32.mrf.mxu0
        %v1376 = vpop.f32.mrf.mxu0
        %v1377 = vadd.f32 %v1283, %v1376
        %v1378 = vpop.f32.mrf.mxu0
        %1379 = vmatprep.mubr.bf16.mxu0 0
        %1380 = vmatmul.mubr.bf16.gmra.mxu0 %v1299
        %v1381 = vpop.f32.mrf.mxu0
        %v1382 = vadd.f32 %v1283, %v1381
        %v1383 = vpop.f32.mrf.mxu0
        %v1384 = vpop.f32.mrf.mxu0
        %v1385 = vadd.f32 %v1283, %v1384
        %v1386 = vpop.f32.mrf.mxu0
        %1387 = vmatprep.mubr.bf16.mxu0 0
        %1388 = vmatmul.mubr.bf16.gmra.mxu0 %v1301
        %v1389 = vpop.f32.mrf.mxu0
        %v1390 = vadd.f32 %v1283, %v1389
        %v1391 = vpop.f32.mrf.mxu0
        %v1392 = vpop.f32.mrf.mxu0
        %v1393 = vadd.f32 %v1283, %v1392
        %v1394 = vpop.f32.mrf.mxu0
        %1395 = vmatprep.mubr.bf16.mxu0 0
        %1396 = vmatmul.mubr.bf16.gmra.mxu0 %v1303
        %v1397 = vpop.f32.mrf.mxu0
        %v1398 = vadd.f32 %v1283, %v1397
        %v1399 = vpop.f32.mrf.mxu0
        %v1400 = vpop.f32.mrf.mxu0
        %v1401 = vadd.f32 %v1283, %v1400
        %v1402 = vpop.f32.mrf.mxu0
        %1403 = vmatprep.mubr.bf16.mxu0 0
        %1404 = vmatmul.mubr.bf16.gmra.mxu0 %v1305
        %v1405 = vpop.f32.mrf.mxu0
        %v1406 = vadd.f32 %v1283, %v1405
        %v1407 = vpop.f32.mrf.mxu0
        %v1408 = vpop.f32.mrf.mxu0
        %v1409 = vadd.f32 %v1283, %v1408
        %v1410 = vpop.f32.mrf.mxu0
        %1411 = vmatprep.mubr.bf16.mxu0 0
        %1412 = vmatmul.mubr.bf16.gmra.mxu0 %v1307
        %v1413 = vpop.f32.mrf.mxu0
        %v1414 = vadd.f32 %v1283, %v1413
        %v1415 = vpop.f32.mrf.mxu0
        %v1416 = vpop.f32.mrf.mxu0
        %v1417 = vadd.f32 %v1283, %v1416
        %v1418 = vpop.f32.mrf.mxu0
        %1419 = vmatprep.mubr.bf16.mxu0 0
        %1420 = vmatmul.mubr.bf16.gmra.mxu0 %v1309
        %v1421 = vpop.f32.mrf.mxu0
        %v1422 = vadd.f32 %v1283, %v1421
        %v1423 = vpop.f32.mrf.mxu0
        %v1424 = vpop.f32.mrf.mxu0
        %v1425 = vadd.f32 %v1283, %v1424
        %v1426 = vpop.f32.mrf.mxu0
        %1427 = vdwg.mxu0
        %v1428 = vmax.f32 %v1350, 0.0
        %v1429 = vmax.f32 %v1353, 0.0
        %v1430 = vmax.f32 %v1358, 0.0
        %v1431 = vmax.f32 %v1361, 0.0
        %v1432 = vmax.f32 %v1366, 0.0
        %v1433 = vmax.f32 %v1369, 0.0
        %v1434 = vmax.f32 %v1374, 0.0
        %v1435 = vmax.f32 %v1377, 0.0
        %v1436 = vmax.f32 %v1382, 0.0
        %v1437 = vmax.f32 %v1385, 0.0
        %v1438 = vmax.f32 %v1390, 0.0
        %v1439 = vmax.f32 %v1393, 0.0
        %v1440 = vmax.f32 %v1398, 0.0
        %v1441 = vmax.f32 %v1401, 0.0
        %v1442 = vmax.f32 %v1406, 0.0
        %v1443 = vmax.f32 %v1409, 0.0
        %v1444 = vmax.f32 %v1414, 0.0
        %v1445 = vmax.f32 %v1417, 0.0
        %v1446 = vmax.f32 %v1422, 0.0
        %v1447 = vmax.f32 %v1425, 0.0
        %v1448 = vrot.slane %v1428, 7
        %v1449 = vrot.slane %v1429, 7
        %v1450 = vrot.slane %v1430, 7
        %v1451 = vrot.slane %v1431, 7
        %v1452 = vrot.slane %v1432, 7
        %v1453 = vrot.slane %v1433, 7
        %v1454 = vrot.slane %v1434, 7
        %v1455 = vrot.slane %v1435, 7
        %v1456 = vrot.slane %v1436, 7
        %v1457 = vrot.slane %v1437, 7
        %v1458 = vrot.slane %v1438, 7
        %v1459 = vrot.slane %v1439, 7
        %v1460 = vrot.slane %v1440, 7
        %v1461 = vrot.slane %v1441, 7
        %v1462 = vrot.slane %v1442, 7
        %v1463 = vrot.slane %v1443, 7
        %v1464 = vrot.slane %v1444, 7
        %v1465 = vrot.slane %v1445, 7
        %v1466 = vrot.slane %v1446, 7
        %v1467 = vrot.slane %v1447, 7
        %v1468 = vsel %vm792, %v1466, %v1467
        %v1469 = vsel %vm792, %v1465, %v1466
        %v1470 = vsel %vm792, %v1464, %v1465
        %v1471 = vsel %vm792, %v1463, %v1464
        %v1472 = vsel %vm792, %v1462, %v1463
        %v1473 = vsel %vm792, %v1461, %v1462
        %v1474 = vsel %vm792, %v1460, %v1461
        %v1475 = vsel %vm792, %v1459, %v1460
        %v1476 = vsel %vm792, %v1458, %v1459
        %v1477 = vsel %vm792, %v1457, %v1458
        %v1478 = vsel %vm792, %v1456, %v1457
        %v1479 = vsel %vm792, %v1455, %v1456
        %v1480 = vsel %vm792, %v1454, %v1455
        %v1481 = vsel %vm792, %v1453, %v1454
        %v1482 = vsel %vm792, %v1452, %v1453
        %v1483 = vsel %vm792, %v1451, %v1452
        %v1484 = vsel %vm792, %v1450, %v1451
        %v1485 = vsel %vm792, %v1449, %v1450
        %v1486 = vsel %vm792, %v1448, %v1449
        %v1487 = vsel %vm792, %v1467, %v1448
        %v1488 = vmul.f32 %v1487, %v836
        %v1489 = vmul.f32 %v1486, %v841
        %v1490 = vmul.f32 %v1485, %v846
        %v1491 = vmul.f32 %v1484, %v851
        %v1492 = vmul.f32 %v1483, %v856
        %v1493 = vmul.f32 %v1482, %v861
        %v1494 = vmul.f32 %v1481, %v866
        %v1495 = vmul.f32 %v1480, %v871
        %v1496 = vmul.f32 %v1479, %v876
        %v1497 = vmul.f32 %v1478, %v881
        %v1498 = vmul.f32 %v1477, %v886
        %v1499 = vmul.f32 %v1476, %v891
        %v1500 = vmul.f32 %v1475, %v896
        %v1501 = vmul.f32 %v1474, %v901
        %v1502 = vmul.f32 %v1473, %v906
        %v1503 = vmul.f32 %v1472, %v911
        %v1504 = vmul.f32 %v1471, %v916
        %v1505 = vmul.f32 %v1470, %v921
        %v1506 = vmul.f32 %v1469, %v926
        %v1507 = vmul.f32 %v1468, %v931
        %v1508 = vpack.c.bf16 %v1489, %v1488
        %v1509 = vpack.c.bf16 %v1491, %v1490
        %v1510 = vpack.c.bf16 %v1493, %v1492
        %v1511 = vpack.c.bf16 %v1495, %v1494
        %v1512 = vpack.c.bf16 %v1497, %v1496
        %v1513 = vpack.c.bf16 %v1499, %v1498
        %v1514 = vpack.c.bf16 %v1501, %v1500
        %v1515 = vpack.c.bf16 %v1503, %v1502
        %v1516 = vpack.c.bf16 %v1505, %v1504
        %v1517 = vpack.c.bf16 %v1507, %v1506
        %v1518 = vpack.c.bf16 %v1429, %v1428
        %v1519 = vpack.c.bf16 %v1431, %v1430
        %v1520 = vpack.c.bf16 %v1433, %v1432
        %v1521 = vpack.c.bf16 %v1435, %v1434
        %v1522 = vpack.c.bf16 %v1437, %v1436
        %v1523 = vpack.c.bf16 %v1439, %v1438
        %v1524 = vpack.c.bf16 %v1441, %v1440
        %v1525 = vpack.c.bf16 %v1443, %v1442
        %v1526 = vpack.c.bf16 %v1445, %v1444
        %v1527 = vpack.c.bf16 %v1447, %v1446
        %v1528 = vrot.slane %v1428, 1
        %v1529 = vrot.slane %v1429, 1
        %v1530 = vrot.slane %v1430, 1
        %v1531 = vrot.slane %v1431, 1
        %v1532 = vrot.slane %v1432, 1
        %v1533 = vrot.slane %v1433, 1
        %v1534 = vrot.slane %v1434, 1
        %v1535 = vrot.slane %v1435, 1
        %v1536 = vrot.slane %v1436, 1
        %v1537 = vrot.slane %v1437, 1
        %v1538 = vrot.slane %v1438, 1
        %v1539 = vrot.slane %v1439, 1
        %v1540 = vrot.slane %v1440, 1
        %v1541 = vrot.slane %v1441, 1
        %v1542 = vrot.slane %v1442, 1
        %v1543 = vrot.slane %v1443, 1
        %v1544 = vrot.slane %v1444, 1
        %v1545 = vrot.slane %v1445, 1
        %v1546 = vrot.slane %v1446, 1
        %v1547 = vrot.slane %v1447, 1
        %v1548 = vsel %vm993, %v1546, %v1547
        %v1549 = vsel %vm993, %v1545, %v1546
        %v1550 = vsel %vm993, %v1544, %v1545
        %v1551 = vsel %vm993, %v1543, %v1544
        %v1552 = vsel %vm993, %v1542, %v1543
        %v1553 = vsel %vm993, %v1541, %v1542
        %v1554 = vsel %vm993, %v1540, %v1541
        %v1555 = vsel %vm993, %v1539, %v1540
        %v1556 = vsel %vm993, %v1538, %v1539
        %v1557 = vsel %vm993, %v1537, %v1538
        %v1558 = vsel %vm993, %v1536, %v1537
        %v1559 = vsel %vm993, %v1535, %v1536
        %v1560 = vsel %vm993, %v1534, %v1535
        %v1561 = vsel %vm993, %v1533, %v1534
        %v1562 = vsel %vm993, %v1532, %v1533
        %v1563 = vsel %vm993, %v1531, %v1532
        %v1564 = vsel %vm993, %v1530, %v1531
        %v1565 = vsel %vm993, %v1529, %v1530
        %v1566 = vsel %vm993, %v1528, %v1529
        %v1567 = vsel %vm993, %v1547, %v1528
        %v1568 = vmul.f32 %v1566, %v1037
        %v1569 = vmul.f32 %v1565, %v1042
        %v1570 = vmul.f32 %v1564, %v1047
        %v1571 = vmul.f32 %v1563, %v1052
        %v1572 = vmul.f32 %v1562, %v1057
        %v1573 = vmul.f32 %v1561, %v1062
        %v1574 = vmul.f32 %v1560, %v1067
        %v1575 = vmul.f32 %v1559, %v1072
        %v1576 = vmul.f32 %v1558, %v1077
        %v1577 = vmul.f32 %v1557, %v1082
        %v1578 = vmul.f32 %v1556, %v1087
        %v1579 = vmul.f32 %v1555, %v1092
        %v1580 = vmul.f32 %v1554, %v1097
        %v1581 = vmul.f32 %v1553, %v1102
        %v1582 = vmul.f32 %v1552, %v1107
        %v1583 = vmul.f32 %v1551, %v1112
        %v1584 = vmul.f32 %v1550, %v1117
        %v1585 = vmul.f32 %v1549, %v1122
        %v1586 = vmul.f32 %v1548, %v1127
        %v1587 = vmul.f32 %v1567, %v1132
        %v1588 = vpack.c.bf16 %v1569, %v1568
        %v1589 = vpack.c.bf16 %v1571, %v1570
        %v1590 = vpack.c.bf16 %v1573, %v1572
        %v1591 = vpack.c.bf16 %v1575, %v1574
        %v1592 = vpack.c.bf16 %v1577, %v1576
        %v1593 = vpack.c.bf16 %v1579, %v1578
        %v1594 = vpack.c.bf16 %v1581, %v1580
        %v1595 = vpack.c.bf16 %v1583, %v1582
        %v1596 = vpack.c.bf16 %v1585, %v1584
        %v1597 = vpack.c.bf16 %v1587, %v1586
        %1608 = vrot.lane.b32.xlu0 %v1518, 32
        %v1609 = vpop.permute.xlu0 %1608
        %1610 = vrot.lane.b32.xlu0 %v1519, 32
        %v1611 = vpop.permute.xlu0 %1610
        %1612 = vrot.lane.b32.xlu0 %v1520, 32
        %v1613 = vpop.permute.xlu0 %1612
        %1614 = vrot.lane.b32.xlu0 %v1521, 32
        %v1615 = vpop.permute.xlu0 %1614
        %1616 = vrot.lane.b32.xlu0 %v1522, 32
        %v1617 = vpop.permute.xlu0 %1616
        %1618 = vrot.lane.b32.xlu0 %v1523, 32
        %v1619 = vpop.permute.xlu0 %1618
        %1620 = vrot.lane.b32.xlu0 %v1524, 32
        %v1621 = vpop.permute.xlu0 %1620
        %1622 = vrot.lane.b32.xlu0 %v1525, 32
        %v1623 = vpop.permute.xlu0 %1622
        %1624 = vrot.lane.b32.xlu0 %v1526, 32
        %v1625 = vpop.permute.xlu0 %1624
        %1626 = vrot.lane.b32.xlu0 %v1527, 32
        %v1627 = vpop.permute.xlu0 %1626
        %1638 = vrot.lane.b32.xlu0 %v1588, 64
        %v1639 = vpop.permute.xlu0 %1638
        %1640 = vrot.lane.b32.xlu0 %v1589, 64
        %v1641 = vpop.permute.xlu0 %1640
        %1642 = vrot.lane.b32.xlu0 %v1590, 64
        %v1643 = vpop.permute.xlu0 %1642
        %1644 = vrot.lane.b32.xlu0 %v1591, 64
        %v1645 = vpop.permute.xlu0 %1644
        %1646 = vrot.lane.b32.xlu0 %v1592, 64
        %v1647 = vpop.permute.xlu0 %1646
        %1648 = vrot.lane.b32.xlu0 %v1593, 64
        %v1649 = vpop.permute.xlu0 %1648
        %1650 = vrot.lane.b32.xlu0 %v1594, 64
        %v1651 = vpop.permute.xlu0 %1650
        %1652 = vrot.lane.b32.xlu0 %v1595, 64
        %v1653 = vpop.permute.xlu0 %1652
        %1654 = vrot.lane.b32.xlu0 %v1596, 64
        %v1655 = vpop.permute.xlu0 %1654
        %1656 = vrot.lane.b32.xlu0 %v1597, 64
        %v1657 = vpop.permute.xlu0 %1656
        %vm1658 = vcmask 261120
        %v1661 = vsel %vm1658, %v1508, %v1609
        %v1664 = vsel %vm1658, %v1509, %v1611
        %v1667 = vsel %vm1658, %v1510, %v1613
        %v1670 = vsel %vm1658, %v1511, %v1615
        %v1673 = vsel %vm1658, %v1512, %v1617
        %v1676 = vsel %vm1658, %v1513, %v1619
        %v1679 = vsel %vm1658, %v1514, %v1621
        %v1682 = vsel %vm1658, %v1515, %v1623
        %v1685 = vsel %vm1658, %v1516, %v1625
        %v1688 = vsel %vm1658, %v1517, %v1627
        %vm1689 = vcmask 523264
        %v1691 = vsel %vm1689, %v1661, %v1639
        %v1693 = vsel %vm1689, %v1664, %v1641
        %v1695 = vsel %vm1689, %v1667, %v1643
        %v1697 = vsel %vm1689, %v1670, %v1645
        %v1699 = vsel %vm1689, %v1673, %v1647
        %v1701 = vsel %vm1689, %v1676, %v1649
        %v1703 = vsel %vm1689, %v1679, %v1651
        %v1705 = vsel %vm1689, %v1682, %v1653
        %v1707 = vsel %vm1689, %v1685, %v1655
        %v1709 = vsel %vm1689, %v1688, %v1657
        %v1710 = vld [vmem:[%s9] sm:$0xf]
        %v1711 = vld [vmem:[%s9 + $0x4] sm:$0xf]
        %v1712 = vld [vmem:[%s9 + $0x8] sm:$0xf]
        %v1713 = vld [vmem:[%s9 + $0xc] sm:$0xf]
        %v1714 = vld [vmem:[%s9 + $0x10] sm:$0xf]
        %v1715 = vld [vmem:[%s9 + $0x14] sm:$0xf]
        %v1716 = vld [vmem:[%s9 + $0x18] sm:$0xf]
        %v1717 = vld [vmem:[%s9 + $0x1c] sm:$0xf]
        %v1718 = vld [vmem:[%s9 + $0x20] sm:$0xf]
        %v1719 = vld [vmem:[%s9 + $0x24] sm:$0xf]
        %v1720 = vld [vmem:[%s9 + $0x28] sm:$0xf]
        %v1721 = vld [vmem:[%s9 + $0x2c] sm:$0xf]
        %v1722 = vld [vmem:[%s10] sm:$0x1]
        %v1724 = vlaneseq
        %v1725 = vshrl.u32 %v1724, 7
        %v1726 = vsub.s32 0, %v1725
        %v1727 = vrot.slane %v1722, %v1726
        %v1741 = vunpack.c.l.b16 %v1710
        %v1742 = vunpack.c.l.b16 %v1711
        %v1743 = vunpack.c.l.b16 %v1712
        %v1744 = vunpack.c.l.b16 %v1713
        %v1745 = vunpack.c.l.b16 %v1714
        %v1746 = vunpack.c.l.b16 %v1715
        %v1747 = vunpack.c.l.b16 %v1716
        %v1748 = vunpack.c.l.b16 %v1717
        %v1749 = vunpack.c.l.b16 %v1718
        %v1750 = vunpack.c.l.b16 %v1719
        %v1751 = vunpack.c.l.b16 %v1720
        %v1752 = vunpack.c.l.b16 %v1721
        %v1753 = vpack.c.b16 %v1742, %v1741
        %v1754 = vpack.c.b16 %v1744, %v1743
        %v1755 = vpack.c.b16 %v1746, %v1745
        %v1756 = vpack.c.b16 %v1748, %v1747
        %v1757 = vpack.c.b16 %v1750, %v1749
        %v1758 = vpack.c.b16 %v1752, %v1751
        %vm1765 = vcmask 785408
        %v1766 = vsel %vm1765, %v1691, 0
        %v1768 = vsel %vm1765, %v1693, 0
        %v1770 = vsel %vm1765, %v1695, 0
        %v1772 = vsel %vm1765, %v1697, 0
        %v1774 = vsel %vm1765, %v1699, 0
        %v1776 = vsel %vm1765, %v1701, 0
        %v1778 = vsel %vm1765, %v1703, 0
        %v1780 = vsel %vm1765, %v1705, 0
        %v1782 = vsel %vm1765, %v1707, 0
        %v1784 = vsel %vm1765, %v1709, 0
        %1786 = vmatprep.subr.bf16.mxu0 0
        %1787 = vmatpush1.bf16.msra.mxu0 0
        %1788 = vmatprep.subr.bf16.mxu0 0
        %1789 = vmatpush1.bf16.msra.mxu0 0
        %1790 = vmatprep.subr.bf16.mxu0 0
        %1791 = vmatpush1.bf16.msra.mxu0 %v1758
        %1792 = vmatprep.subr.bf16.mxu0 0
        %1793 = vmatpush1.bf16.msra.mxu0 %v1757
        %1794 = vmatprep.subr.bf16.mxu0 0
        %1795 = vmatpush1.bf16.msra.mxu0 %v1756
        %1796 = vmatprep.subr.bf16.mxu0 0
        %1797 = vmatpush1.bf16.msra.mxu0 %v1755
        %1798 = vmatprep.subr.bf16.mxu0 0
        %1799 = vmatpush1.bf16.msra.mxu0 %v1754
        %1800 = vmatprep.subr.bf16.mxu0 0
        %1801 = vmatpush1.bf16.msra.mxu0 %v1753
        %1802 = vmatprep.subr.bf16.mxu0 0
        %1803 = vmatpush2.bf16.msra.mxu0 0
        %1804 = vmatprep.subr.bf16.mxu0 0
        %1805 = vmatpush2.bf16.msra.mxu0 0
        %1806 = vmatprep.subr.bf16.mxu0 0
        %1807 = vmatpush2.bf16.msra.mxu0 0
        %1808 = vmatprep.subr.bf16.mxu0 0
        %1809 = vmatpush2.bf16.msra.mxu0 0
        %1810 = vmatprep.subr.bf16.mxu0 0
        %1811 = vmatpush2.bf16.msra.mxu0 0
        %1812 = vmatprep.subr.bf16.mxu0 0
        %1813 = vmatpush2.bf16.msra.mxu0 0
        %1814 = vmatprep.subr.bf16.mxu0 0
        %1815 = vmatpush2.bf16.msra.mxu0 0
        %1816 = vmatprep.subr.bf16.mxu0 0
        %1817 = vmatpush2.bf16.msra.mxu0 0
        %1818 = vmatprep.mubr.bf16.mxu0 0
        %1819 = vmatmul.mubr.bf16.gmra.mxu0 %v1766
        %v1820 = vpop.f32.mrf.mxu0
        %v1821 = vadd.f32 %v1727, %v1820
        %v1822 = vpop.f32.mrf.mxu0
        %v1823 = vpop.f32.mrf.mxu0
        %v1824 = vadd.f32 %v1727, %v1823
        %v1825 = vpop.f32.mrf.mxu0
        %1826 = vmatprep.mubr.bf16.mxu0 0
        %1827 = vmatmul.mubr.bf16.gmra.mxu0 %v1768
        %v1828 = vpop.f32.mrf.mxu0
        %v1829 = vadd.f32 %v1727, %v1828
        %v1830 = vpop.f32.mrf.mxu0
        %v1831 = vpop.f32.mrf.mxu0
        %v1832 = vadd.f32 %v1727, %v1831
        %v1833 = vpop.f32.mrf.mxu0
        %1834 = vmatprep.mubr.bf16.mxu0 0
        %1835 = vmatmul.mubr.bf16.gmra.mxu0 %v1770
        %v1836 = vpop.f32.mrf.mxu0
        %v1837 = vadd.f32 %v1727, %v1836
        %v1838 = vpop.f32.mrf.mxu0
        %v1839 = vpop.f32.mrf.mxu0
        %v1840 = vadd.f32 %v1727, %v1839
        %v1841 = vpop.f32.mrf.mxu0
        %1842 = vmatprep.mubr.bf16.mxu0 0
        %1843 = vmatmul.mubr.bf16.gmra.mxu0 %v1772
        %v1844 = vpop.f32.mrf.mxu0
        %v1845 = vadd.f32 %v1727, %v1844
        %v1846 = vpop.f32.mrf.mxu0
        %v1847 = vpop.f32.mrf.mxu0
        %v1848 = vadd.f32 %v1727, %v1847
        %v1849 = vpop.f32.mrf.mxu0
        %1850 = vmatprep.mubr.bf16.mxu0 0
        %1851 = vmatmul.mubr.bf16.gmra.mxu0 %v1774
        %v1852 = vpop.f32.mrf.mxu0
        %v1853 = vadd.f32 %v1727, %v1852
        %v1854 = vpop.f32.mrf.mxu0
        %v1855 = vpop.f32.mrf.mxu0
        %v1856 = vadd.f32 %v1727, %v1855
        %v1857 = vpop.f32.mrf.mxu0
        %1858 = vmatprep.mubr.bf16.mxu0 0
        %1859 = vmatmul.mubr.bf16.gmra.mxu0 %v1776
        %v1860 = vpop.f32.mrf.mxu0
        %v1861 = vadd.f32 %v1727, %v1860
        %v1862 = vpop.f32.mrf.mxu0
        %v1863 = vpop.f32.mrf.mxu0
        %v1864 = vadd.f32 %v1727, %v1863
        %v1865 = vpop.f32.mrf.mxu0
        %1866 = vmatprep.mubr.bf16.mxu0 0
        %1867 = vmatmul.mubr.bf16.gmra.mxu0 %v1778
        %v1868 = vpop.f32.mrf.mxu0
        %v1869 = vadd.f32 %v1727, %v1868
        %v1870 = vpop.f32.mrf.mxu0
        %v1871 = vpop.f32.mrf.mxu0
        %v1872 = vadd.f32 %v1727, %v1871
        %v1873 = vpop.f32.mrf.mxu0
        %1874 = vmatprep.mubr.bf16.mxu0 0
        %1875 = vmatmul.mubr.bf16.gmra.mxu0 %v1780
        %v1876 = vpop.f32.mrf.mxu0
        %v1877 = vadd.f32 %v1727, %v1876
        %v1878 = vpop.f32.mrf.mxu0
        %v1879 = vpop.f32.mrf.mxu0
        %v1880 = vadd.f32 %v1727, %v1879
        %v1881 = vpop.f32.mrf.mxu0
        %1882 = vmatprep.mubr.bf16.mxu0 0
        %1883 = vmatmul.mubr.bf16.gmra.mxu0 %v1782
        %v1884 = vpop.f32.mrf.mxu0
        %v1885 = vadd.f32 %v1727, %v1884
        %v1886 = vpop.f32.mrf.mxu0
        %v1887 = vpop.f32.mrf.mxu0
        %v1888 = vadd.f32 %v1727, %v1887
        %v1889 = vpop.f32.mrf.mxu0
        %1890 = vmatprep.mubr.bf16.mxu0 0
        %1891 = vmatmul.mubr.bf16.gmra.mxu0 %v1784
        %v1892 = vpop.f32.mrf.mxu0
        %v1893 = vadd.f32 %v1727, %v1892
        %v1894 = vpop.f32.mrf.mxu0
        %v1895 = vpop.f32.mrf.mxu0
        %v1896 = vadd.f32 %v1727, %v1895
        %v1897 = vpop.f32.mrf.mxu0
        %1898 = vdwg.mxu0
        %v1899 = vmax.f32 %v1821, 0.0
        %v1900 = vmax.f32 %v1824, 0.0
        %v1901 = vmax.f32 %v1829, 0.0
        %v1902 = vmax.f32 %v1832, 0.0
        %v1903 = vmax.f32 %v1837, 0.0
        %v1904 = vmax.f32 %v1840, 0.0
        %v1905 = vmax.f32 %v1845, 0.0
        %v1906 = vmax.f32 %v1848, 0.0
        %v1907 = vmax.f32 %v1853, 0.0
        %v1908 = vmax.f32 %v1856, 0.0
        %v1909 = vmax.f32 %v1861, 0.0
        %v1910 = vmax.f32 %v1864, 0.0
        %v1911 = vmax.f32 %v1869, 0.0
        %v1912 = vmax.f32 %v1872, 0.0
        %v1913 = vmax.f32 %v1877, 0.0
        %v1914 = vmax.f32 %v1880, 0.0
        %v1915 = vmax.f32 %v1885, 0.0
        %v1916 = vmax.f32 %v1888, 0.0
        %v1917 = vmax.f32 %v1893, 0.0
        %v1918 = vmax.f32 %v1896, 0.0
        %1919 = vst.msk [vmem:[#allocation2] sm:$0xff] %vm1658, %v1899
        %1920 = vst.msk [vmem:[#allocation2 + $0x8] sm:$0xff] %vm1658, %v1900
        %1921 = vst.msk [vmem:[#allocation2 + $0x10] sm:$0xff] %vm1658, %v1901
        %1922 = vst.msk [vmem:[#allocation2 + $0x18] sm:$0xff] %vm1658, %v1902
        %1923 = vst.msk [vmem:[#allocation2 + $0x20] sm:$0xff] %vm1658, %v1903
        %1924 = vst.msk [vmem:[#allocation2 + $0x28] sm:$0xff] %vm1658, %v1904
        %1925 = vst.msk [vmem:[#allocation2 + $0x30] sm:$0xff] %vm1658, %v1905
        %1926 = vst.msk [vmem:[#allocation2 + $0x38] sm:$0xff] %vm1658, %v1906
        %1927 = vst.msk [vmem:[#allocation2 + $0x40] sm:$0xff] %vm1658, %v1907
        %1928 = vst.msk [vmem:[#allocation2 + $0x48] sm:$0xff] %vm1658, %v1908
        %1929 = vst.msk [vmem:[#allocation2 + $0x50] sm:$0xff] %vm1658, %v1909
        %1930 = vst.msk [vmem:[#allocation2 + $0x58] sm:$0xff] %vm1658, %v1910
        %1931 = vst.msk [vmem:[#allocation2 + $0x60] sm:$0xff] %vm1658, %v1911
        %1932 = vst.msk [vmem:[#allocation2 + $0x68] sm:$0xff] %vm1658, %v1912
        %1933 = vst.msk [vmem:[#allocation2 + $0x70] sm:$0xff] %vm1658, %v1913
        %1934 = vst.msk [vmem:[#allocation2 + $0x78] sm:$0xff] %vm1658, %v1914
        %1935 = vst.msk [vmem:[#allocation2 + $0x80] sm:$0xff] %vm1658, %v1915
        %1936 = vst.msk [vmem:[#allocation2 + $0x88] sm:$0xff] %vm1658, %v1916
        %1937 = vst.msk [vmem:[#allocation2 + $0x90] sm:$0xff] %vm1658, %v1917
        %1938 = vst.msk [vmem:[#allocation2 + $0x98] sm:$0xff] %vm1658, %v1918
        %v1939 = vld [vmem:[#allocation2] ss:$2 sm:$0xff]
        %s1940 = scalar_lea.vmem [#allocation2], 16
        %v1941 = vld [vmem:[%s1940] ss:$2 sm:$0xff]
        %s1942 = scalar_lea.vmem [#allocation2], 32
        %v1943 = vld [vmem:[%s1942] ss:$2 sm:$0xff]
        %s1944 = scalar_lea.vmem [#allocation2], 48
        %v1945 = vld [vmem:[%s1944] ss:$2 sm:$0xff]
        %s1946 = scalar_lea.vmem [#allocation2], 64
        %v1947 = vld [vmem:[%s1946] ss:$2 sm:$0xff]
        %s1948 = scalar_lea.vmem [#allocation2], 80
        %v1949 = vld [vmem:[%s1948] ss:$2 sm:$0xff]
        %s1950 = scalar_lea.vmem [#allocation2], 96
        %v1951 = vld [vmem:[%s1950] ss:$2 sm:$0xff]
        %s1952 = scalar_lea.vmem [#allocation2], 112
        %v1953 = vld [vmem:[%s1952] ss:$2 sm:$0xff]
        %s1954 = scalar_lea.vmem [#allocation2], 128
        %v1955 = vld [vmem:[%s1954] ss:$2 sm:$0xff]
        %s1956 = scalar_lea.vmem [#allocation2], 144
        %v1957 = vld [vmem:[%s1956] ss:$2 sm:$0xff]
        %s1958 = scalar_lea.vmem [#allocation2], 1
        %v1959 = vld [vmem:[%s1958] ss:$2 sm:$0xff]
        %s1960 = scalar_lea.vmem [#allocation2], 17
        %v1961 = vld [vmem:[%s1960] ss:$2 sm:$0xff]
        %s1962 = scalar_lea.vmem [#allocation2], 33
        %v1963 = vld [vmem:[%s1962] ss:$2 sm:$0xff]
        %s1964 = scalar_lea.vmem [#allocation2], 49
        %v1965 = vld [vmem:[%s1964] ss:$2 sm:$0xff]
        %s1966 = scalar_lea.vmem [#allocation2], 65
        %v1967 = vld [vmem:[%s1966] ss:$2 sm:$0xff]
        %s1968 = scalar_lea.vmem [#allocation2], 81
        %v1969 = vld [vmem:[%s1968] ss:$2 sm:$0xff]
        %s1970 = scalar_lea.vmem [#allocation2], 97
        %v1971 = vld [vmem:[%s1970] ss:$2 sm:$0xff]
        %s1972 = scalar_lea.vmem [#allocation2], 113
        %v1973 = vld [vmem:[%s1972] ss:$2 sm:$0xff]
        %s1974 = scalar_lea.vmem [#allocation2], 129
        %v1975 = vld [vmem:[%s1974] ss:$2 sm:$0xff]
        %s1976 = scalar_lea.vmem [#allocation2], 145
        %v1977 = vld [vmem:[%s1976] ss:$2 sm:$0xff]
        %v1978 = vmax.f32 %v1939, %v1959
        %v1979 = vmax.f32 %v1941, %v1961
        %v1980 = vmax.f32 %v1943, %v1963
        %v1981 = vmax.f32 %v1945, %v1965
        %v1982 = vmax.f32 %v1947, %v1967
        %v1983 = vmax.f32 %v1949, %v1969
        %v1984 = vmax.f32 %v1951, %v1971
        %v1985 = vmax.f32 %v1953, %v1973
        %v1986 = vmax.f32 %v1955, %v1975
        %v1987 = vmax.f32 %v1957, %v1977
        %v1988 = vrot.slane %v1978, 7
        %v1989 = vrot.slane %v1979, 7
        %v1990 = vrot.slane %v1980, 7
        %v1991 = vrot.slane %v1981, 7
        %v1992 = vrot.slane %v1982, 7
        %v1993 = vrot.slane %v1983, 7
        %v1994 = vrot.slane %v1984, 7
        %v1995 = vrot.slane %v1985, 7
        %v1996 = vrot.slane %v1986, 7
        %v1997 = vrot.slane %v1987, 7
        %v1998 = vsel %vm792, %v1996, %v1997
        %v1999 = vsel %vm792, %v1995, %v1996
        %v2000 = vsel %vm792, %v1994, %v1995
        %v2001 = vsel %vm792, %v1993, %v1994
        %v2002 = vsel %vm792, %v1992, %v1993
        %v2003 = vsel %vm792, %v1991, %v1992
        %v2004 = vsel %vm792, %v1990, %v1991
        %v2005 = vsel %vm792, %v1989, %v1990
        %v2006 = vsel %vm792, %v1988, %v1989
        %v2007 = vsel %vm792, %v1997, %v1988
        %v2008 = vld [vmem:[%s3] sm:$0xff]
        %v2009 = vld [vmem:[%s3 + $0x8] sm:$0xff]
        %v2010 = vld [vmem:[%s3 + $0x10] sm:$0xff]
        %v2011 = vld [vmem:[%s3 + $0x18] sm:$0xff]
        %v2012 = vld [vmem:[%s3 + $0x20] sm:$0xff]
        %v2013 = vld [vmem:[%s3 + $0x28] sm:$0xff]
        %v2014 = vld [vmem:[%s3 + $0x30] sm:$0xff]
        %v2015 = vld [vmem:[%s3 + $0x38] sm:$0xff]
        %v2016 = vld [vmem:[%s3 + $0x40] sm:$0xff]
        %v2017 = vld [vmem:[%s3 + $0x48] sm:$0xff]
        %2019 = vset.pattern.permute.xlu0 0
        %2020 = vperm.xlu0 %2019, %v2008
        %v2021 = vpop.permute.xlu0 %2020
        %2024 = vset.pattern.permute.xlu0 0
        %2025 = vperm.xlu0 %2024, %v2009
        %v2026 = vpop.permute.xlu0 %2025
        %2029 = vset.pattern.permute.xlu0 0
        %2030 = vperm.xlu0 %2029, %v2010
        %v2031 = vpop.permute.xlu0 %2030
        %2034 = vset.pattern.permute.xlu0 0
        %2035 = vperm.xlu0 %2034, %v2011
        %v2036 = vpop.permute.xlu0 %2035
        %2039 = vset.pattern.permute.xlu0 0
        %2040 = vperm.xlu0 %2039, %v2012
        %v2041 = vpop.permute.xlu0 %2040
        %2044 = vset.pattern.permute.xlu0 0
        %2045 = vperm.xlu0 %2044, %v2013
        %v2046 = vpop.permute.xlu0 %2045
        %2049 = vset.pattern.permute.xlu0 0
        %2050 = vperm.xlu0 %2049, %v2014
        %v2051 = vpop.permute.xlu0 %2050
        %2054 = vset.pattern.permute.xlu0 0
        %2055 = vperm.xlu0 %2054, %v2015
        %v2056 = vpop.permute.xlu0 %2055
        %2059 = vset.pattern.permute.xlu0 0
        %2060 = vperm.xlu0 %2059, %v2016
        %v2061 = vpop.permute.xlu0 %2060
        %2064 = vset.pattern.permute.xlu0 0
        %2065 = vperm.xlu0 %2064, %v2017
        %v2066 = vpop.permute.xlu0 %2065
        %v2068 = vmul.f32 %v2007, %v2021
        %v2069 = vmul.f32 %v2006, %v2026
        %v2070 = vmul.f32 %v2005, %v2031
        %v2071 = vmul.f32 %v2004, %v2036
        %v2072 = vmul.f32 %v2003, %v2041
        %v2073 = vmul.f32 %v2002, %v2046
        %v2074 = vmul.f32 %v2001, %v2051
        %v2075 = vmul.f32 %v2000, %v2056
        %v2076 = vmul.f32 %v1999, %v2061
        %v2077 = vmul.f32 %v1998, %v2066
        %v2078 = vpack.c.bf16 %v2069, %v2068
        %v2079 = vpack.c.bf16 %v2071, %v2070
        %v2080 = vpack.c.bf16 %v2073, %v2072
        %v2081 = vpack.c.bf16 %v2075, %v2074
        %v2082 = vpack.c.bf16 %v2077, %v2076
        %v2083 = vpack.c.bf16 %v1979, %v1978
        %v2084 = vpack.c.bf16 %v1981, %v1980
        %v2085 = vpack.c.bf16 %v1983, %v1982
        %v2086 = vpack.c.bf16 %v1985, %v1984
        %v2087 = vpack.c.bf16 %v1987, %v1986
        %v2088 = vrot.slane %v1978, 1
        %v2089 = vrot.slane %v1979, 1
        %v2090 = vrot.slane %v1980, 1
        %v2091 = vrot.slane %v1981, 1
        %v2092 = vrot.slane %v1982, 1
        %v2093 = vrot.slane %v1983, 1
        %v2094 = vrot.slane %v1984, 1
        %v2095 = vrot.slane %v1985, 1
        %v2096 = vrot.slane %v1986, 1
        %v2097 = vrot.slane %v1987, 1
        %v2098 = vsel %vm993, %v2096, %v2097
        %v2099 = vsel %vm993, %v2095, %v2096
        %v2100 = vsel %vm993, %v2094, %v2095
        %v2101 = vsel %vm993, %v2093, %v2094
        %v2102 = vsel %vm993, %v2092, %v2093
        %v2103 = vsel %vm993, %v2091, %v2092
        %v2104 = vsel %vm993, %v2090, %v2091
        %v2105 = vsel %vm993, %v2089, %v2090
        %v2106 = vsel %vm993, %v2088, %v2089
        %v2107 = vsel %vm993, %v2097, %v2088
        %v2108 = vld [vmem:[%s4] sm:$0xff]
        %v2109 = vld [vmem:[%s4 + $0x8] sm:$0xff]
        %v2110 = vld [vmem:[%s4 + $0x10] sm:$0xff]
        %v2111 = vld [vmem:[%s4 + $0x18] sm:$0xff]
        %v2112 = vld [vmem:[%s4 + $0x20] sm:$0xff]
        %v2113 = vld [vmem:[%s4 + $0x28] sm:$0xff]
        %v2114 = vld [vmem:[%s4 + $0x30] sm:$0xff]
        %v2115 = vld [vmem:[%s4 + $0x38] sm:$0xff]
        %v2116 = vld [vmem:[%s4 + $0x40] sm:$0xff]
        %v2117 = vld [vmem:[%s4 + $0x48] sm:$0xff]
        %2119 = vset.pattern.permute.xlu0 0
        %2120 = vperm.xlu0 %2119, %v2108
        %v2121 = vpop.permute.xlu0 %2120
        %2124 = vset.pattern.permute.xlu0 0
        %2125 = vperm.xlu0 %2124, %v2109
        %v2126 = vpop.permute.xlu0 %2125
        %2129 = vset.pattern.permute.xlu0 0
        %2130 = vperm.xlu0 %2129, %v2110
        %v2131 = vpop.permute.xlu0 %2130
        %2134 = vset.pattern.permute.xlu0 0
        %2135 = vperm.xlu0 %2134, %v2111
        %v2136 = vpop.permute.xlu0 %2135
        %2139 = vset.pattern.permute.xlu0 0
        %2140 = vperm.xlu0 %2139, %v2112
        %v2141 = vpop.permute.xlu0 %2140
        %2144 = vset.pattern.permute.xlu0 0
        %2145 = vperm.xlu0 %2144, %v2113
        %v2146 = vpop.permute.xlu0 %2145
        %2149 = vset.pattern.permute.xlu0 0
        %2150 = vperm.xlu0 %2149, %v2114
        %v2151 = vpop.permute.xlu0 %2150
        %2154 = vset.pattern.permute.xlu0 0
        %2155 = vperm.xlu0 %2154, %v2115
        %v2156 = vpop.permute.xlu0 %2155
        %2159 = vset.pattern.permute.xlu0 0
        %2160 = vperm.xlu0 %2159, %v2116
        %v2161 = vpop.permute.xlu0 %2160
        %2164 = vset.pattern.permute.xlu0 0
        %2165 = vperm.xlu0 %2164, %v2117
        %v2166 = vpop.permute.xlu0 %2165
        %v2168 = vmul.f32 %v2106, %v2121
        %v2169 = vmul.f32 %v2105, %v2126
        %v2170 = vmul.f32 %v2104, %v2131
        %v2171 = vmul.f32 %v2103, %v2136
        %v2172 = vmul.f32 %v2102, %v2141
        %v2173 = vmul.f32 %v2101, %v2146
        %v2174 = vmul.f32 %v2100, %v2151
        %v2175 = vmul.f32 %v2099, %v2156
        %v2176 = vmul.f32 %v2098, %v2161
        %v2177 = vmul.f32 %v2107, %v2166
        %v2178 = vpack.c.bf16 %v2169, %v2168
        %v2179 = vpack.c.bf16 %v2171, %v2170
        %v2180 = vpack.c.bf16 %v2173, %v2172
        %v2181 = vpack.c.bf16 %v2175, %v2174
        %v2182 = vpack.c.bf16 %v2177, %v2176
        %2188 = vrot.lane.b32.xlu0 %v2083, 32
        %v2189 = vpop.permute.xlu0 %2188
        %2190 = vrot.lane.b32.xlu0 %v2084, 32
        %v2191 = vpop.permute.xlu0 %2190
        %2192 = vrot.lane.b32.xlu0 %v2085, 32
        %v2193 = vpop.permute.xlu0 %2192
        %2194 = vrot.lane.b32.xlu0 %v2086, 32
        %v2195 = vpop.permute.xlu0 %2194
        %2196 = vrot.lane.b32.xlu0 %v2087, 32
        %v2197 = vpop.permute.xlu0 %2196
        %2203 = vrot.lane.b32.xlu0 %v2178, 64
        %v2204 = vpop.permute.xlu0 %2203
        %2205 = vrot.lane.b32.xlu0 %v2179, 64
        %v2206 = vpop.permute.xlu0 %2205
        %2207 = vrot.lane.b32.xlu0 %v2180, 64
        %v2208 = vpop.permute.xlu0 %2207
        %2209 = vrot.lane.b32.xlu0 %v2181, 64
        %v2210 = vpop.permute.xlu0 %2209
        %2211 = vrot.lane.b32.xlu0 %v2182, 64
        %v2212 = vpop.permute.xlu0 %2211
        %v2215 = vsel %vm1658, %v2078, %v2189
        %v2218 = vsel %vm1658, %v2079, %v2191
        %v2221 = vsel %vm1658, %v2080, %v2193
        %v2224 = vsel %vm1658, %v2081, %v2195
        %v2227 = vsel %vm1658, %v2082, %v2197
        %v2229 = vsel %vm1689, %v2215, %v2204
        %v2231 = vsel %vm1689, %v2218, %v2206
        %v2233 = vsel %vm1689, %v2221, %v2208
        %v2235 = vsel %vm1689, %v2224, %v2210
        %v2237 = vsel %vm1689, %v2227, %v2212
        %v2238 = vld [vmem:[%s11] sm:$0xf]
        %v2239 = vld [vmem:[%s11 + $0x4] sm:$0xf]
        %v2240 = vld [vmem:[%s11 + $0x8] sm:$0xf]
        %v2241 = vld [vmem:[%s11 + $0xc] sm:$0xf]
        %v2242 = vld [vmem:[%s11 + $0x10] sm:$0xf]
        %v2243 = vld [vmem:[%s11 + $0x14] sm:$0xf]
        %v2244 = vld [vmem:[%s11 + $0x18] sm:$0xf]
        %v2245 = vld [vmem:[%s11 + $0x1c] sm:$0xf]
        %v2246 = vld [vmem:[%s11 + $0x20] sm:$0xf]
        %v2247 = vld [vmem:[%s11 + $0x24] sm:$0xf]
        %v2248 = vld [vmem:[%s11 + $0x28] sm:$0xf]
        %v2249 = vld [vmem:[%s11 + $0x2c] sm:$0xf]
        %v2250 = vld [vmem:[%s12] sm:$0x1]
        %v2252 = vlaneseq
        %v2253 = vshrl.u32 %v2252, 7
        %v2254 = vsub.s32 0, %v2253
        %v2255 = vrot.slane %v2250, %v2254
        %v2269 = vunpack.c.l.b16 %v2238
        %v2270 = vunpack.c.l.b16 %v2239
        %v2271 = vunpack.c.l.b16 %v2240
        %v2272 = vunpack.c.l.b16 %v2241
        %v2273 = vunpack.c.l.b16 %v2242
        %v2274 = vunpack.c.l.b16 %v2243
        %v2275 = vunpack.c.l.b16 %v2244
        %v2276 = vunpack.c.l.b16 %v2245
        %v2277 = vunpack.c.l.b16 %v2246
        %v2278 = vunpack.c.l.b16 %v2247
        %v2279 = vunpack.c.l.b16 %v2248
        %v2280 = vunpack.c.l.b16 %v2249
        %v2281 = vpack.c.b16 %v2270, %v2269
        %v2282 = vpack.c.b16 %v2272, %v2271
        %v2283 = vpack.c.b16 %v2274, %v2273
        %v2284 = vpack.c.b16 %v2276, %v2275
        %v2285 = vpack.c.b16 %v2278, %v2277
        %v2286 = vpack.c.b16 %v2280, %v2279
        %v2293 = vsel %vm1765, %v2229, 0
        %v2295 = vsel %vm1765, %v2231, 0
        %v2297 = vsel %vm1765, %v2233, 0
        %v2299 = vsel %vm1765, %v2235, 0
        %v2301 = vsel %vm1765, %v2237, 0
        %2303 = vmatprep.subr.bf16.mxu0 0
        %2304 = vmatpush1.bf16.msra.mxu0 0
        %2305 = vmatprep.subr.bf16.mxu0 0
        %2306 = vmatpush1.bf16.msra.mxu0 0
        %2307 = vmatprep.subr.bf16.mxu0 0
        %2308 = vmatpush1.bf16.msra.mxu0 %v2286
        %2309 = vmatprep.subr.bf16.mxu0 0
        %2310 = vmatpush1.bf16.msra.mxu0 %v2285
        %2311 = vmatprep.subr.bf16.mxu0 0
        %2312 = vmatpush1.bf16.msra.mxu0 %v2284
        %2313 = vmatprep.subr.bf16.mxu0 0
        %2314 = vmatpush1.bf16.msra.mxu0 %v2283
        %2315 = vmatprep.subr.bf16.mxu0 0
        %2316 = vmatpush1.bf16.msra.mxu0 %v2282
        %2317 = vmatprep.subr.bf16.mxu0 0
        %2318 = vmatpush1.bf16.msra.mxu0 %v2281
        %2319 = vmatprep.subr.bf16.mxu0 0
        %2320 = vmatpush2.bf16.msra.mxu0 0
        %2321 = vmatprep.subr.bf16.mxu0 0
        %2322 = vmatpush2.bf16.msra.mxu0 0
        %2323 = vmatprep.subr.bf16.mxu0 0
        %2324 = vmatpush2.bf16.msra.mxu0 0
        %2325 = vmatprep.subr.bf16.mxu0 0
        %2326 = vmatpush2.bf16.msra.mxu0 0
        %2327 = vmatprep.subr.bf16.mxu0 0
        %2328 = vmatpush2.bf16.msra.mxu0 0
        %2329 = vmatprep.subr.bf16.mxu0 0
        %2330 = vmatpush2.bf16.msra.mxu0 0
        %2331 = vmatprep.subr.bf16.mxu0 0
        %2332 = vmatpush2.bf16.msra.mxu0 0
        %2333 = vmatprep.subr.bf16.mxu0 0
        %2334 = vmatpush2.bf16.msra.mxu0 0
        %2335 = vmatprep.mubr.bf16.mxu0 0
        %2336 = vmatmul.mubr.bf16.gmra.mxu0 %v2293
        %v2337 = vpop.f32.mrf.mxu0
        %v2338 = vadd.f32 %v2255, %v2337
        %v2339 = vpop.f32.mrf.mxu0
        %v2340 = vpop.f32.mrf.mxu0
        %v2341 = vadd.f32 %v2255, %v2340
        %v2342 = vpop.f32.mrf.mxu0
        %2343 = vmatprep.mubr.bf16.mxu0 0
        %2344 = vmatmul.mubr.bf16.gmra.mxu0 %v2295
        %v2345 = vpop.f32.mrf.mxu0
        %v2346 = vadd.f32 %v2255, %v2345
        %v2347 = vpop.f32.mrf.mxu0
        %v2348 = vpop.f32.mrf.mxu0
        %v2349 = vadd.f32 %v2255, %v2348
        %v2350 = vpop.f32.mrf.mxu0
        %2351 = vmatprep.mubr.bf16.mxu0 0
        %2352 = vmatmul.mubr.bf16.gmra.mxu0 %v2297
        %v2353 = vpop.f32.mrf.mxu0
        %v2354 = vadd.f32 %v2255, %v2353
        %v2355 = vpop.f32.mrf.mxu0
        %v2356 = vpop.f32.mrf.mxu0
        %v2357 = vadd.f32 %v2255, %v2356
        %v2358 = vpop.f32.mrf.mxu0
        %2359 = vmatprep.mubr.bf16.mxu0 0
        %2360 = vmatmul.mubr.bf16.gmra.mxu0 %v2299
        %v2361 = vpop.f32.mrf.mxu0
        %v2362 = vadd.f32 %v2255, %v2361
        %v2363 = vpop.f32.mrf.mxu0
        %v2364 = vpop.f32.mrf.mxu0
        %v2365 = vadd.f32 %v2255, %v2364
        %v2366 = vpop.f32.mrf.mxu0
        %2367 = vmatprep.mubr.bf16.mxu0 0
        %2368 = vmatmul.mubr.bf16.gmra.mxu0 %v2301
        %v2369 = vpop.f32.mrf.mxu0
        %v2370 = vadd.f32 %v2255, %v2369
        %v2371 = vpop.f32.mrf.mxu0
        %v2372 = vpop.f32.mrf.mxu0
        %v2373 = vadd.f32 %v2255, %v2372
        %v2374 = vpop.f32.mrf.mxu0
        %2375 = vdwg.mxu0
        %v2376 = vmax.f32 %v2338, 0.0
        %v2377 = vmax.f32 %v2341, 0.0
        %v2378 = vmax.f32 %v2346, 0.0
        %v2379 = vmax.f32 %v2349, 0.0
        %v2380 = vmax.f32 %v2354, 0.0
        %v2381 = vmax.f32 %v2357, 0.0
        %v2382 = vmax.f32 %v2362, 0.0
        %v2383 = vmax.f32 %v2365, 0.0
        %v2384 = vmax.f32 %v2370, 0.0
        %v2385 = vmax.f32 %v2373, 0.0
        %v2386 = vrot.slane %v2376, 7
        %v2387 = vrot.slane %v2377, 7
        %v2388 = vrot.slane %v2378, 7
        %v2389 = vrot.slane %v2379, 7
        %v2390 = vrot.slane %v2380, 7
        %v2391 = vrot.slane %v2381, 7
        %v2392 = vrot.slane %v2382, 7
        %v2393 = vrot.slane %v2383, 7
        %v2394 = vrot.slane %v2384, 7
        %v2395 = vrot.slane %v2385, 7
        %v2396 = vsel %vm792, %v2394, %v2395
        %v2397 = vsel %vm792, %v2393, %v2394
        %v2398 = vsel %vm792, %v2392, %v2393
        %v2399 = vsel %vm792, %v2391, %v2392
        %v2400 = vsel %vm792, %v2390, %v2391
        %v2401 = vsel %vm792, %v2389, %v2390
        %v2402 = vsel %vm792, %v2388, %v2389
        %v2403 = vsel %vm792, %v2387, %v2388
        %v2404 = vsel %vm792, %v2386, %v2387
        %v2405 = vsel %vm792, %v2395, %v2386
        %v2406 = vmul.f32 %v2405, %v2021
        %v2407 = vmul.f32 %v2404, %v2026
        %v2408 = vmul.f32 %v2403, %v2031
        %v2409 = vmul.f32 %v2402, %v2036
        %v2410 = vmul.f32 %v2401, %v2041
        %v2411 = vmul.f32 %v2400, %v2046
        %v2412 = vmul.f32 %v2399, %v2051
        %v2413 = vmul.f32 %v2398, %v2056
        %v2414 = vmul.f32 %v2397, %v2061
        %v2415 = vmul.f32 %v2396, %v2066
        %v2416 = vpack.c.bf16 %v2407, %v2406
        %v2417 = vpack.c.bf16 %v2409, %v2408
        %v2418 = vpack.c.bf16 %v2411, %v2410
        %v2419 = vpack.c.bf16 %v2413, %v2412
        %v2420 = vpack.c.bf16 %v2415, %v2414
        %v2421 = vpack.c.bf16 %v2377, %v2376
        %v2422 = vpack.c.bf16 %v2379, %v2378
        %v2423 = vpack.c.bf16 %v2381, %v2380
        %v2424 = vpack.c.bf16 %v2383, %v2382
        %v2425 = vpack.c.bf16 %v2385, %v2384
        %v2426 = vrot.slane %v2376, 1
        %v2427 = vrot.slane %v2377, 1
        %v2428 = vrot.slane %v2378, 1
        %v2429 = vrot.slane %v2379, 1
        %v2430 = vrot.slane %v2380, 1
        %v2431 = vrot.slane %v2381, 1
        %v2432 = vrot.slane %v2382, 1
        %v2433 = vrot.slane %v2383, 1
        %v2434 = vrot.slane %v2384, 1
        %v2435 = vrot.slane %v2385, 1
        %v2436 = vsel %vm993, %v2434, %v2435
        %v2437 = vsel %vm993, %v2433, %v2434
        %v2438 = vsel %vm993, %v2432, %v2433
        %v2439 = vsel %vm993, %v2431, %v2432
        %v2440 = vsel %vm993, %v2430, %v2431
        %v2441 = vsel %vm993, %v2429, %v2430
        %v2442 = vsel %vm993, %v2428, %v2429
        %v2443 = vsel %vm993, %v2427, %v2428
        %v2444 = vsel %vm993, %v2426, %v2427
        %v2445 = vsel %vm993, %v2435, %v2426
        %v2446 = vmul.f32 %v2444, %v2121
        %v2447 = vmul.f32 %v2443, %v2126
        %v2448 = vmul.f32 %v2442, %v2131
        %v2449 = vmul.f32 %v2441, %v2136
        %v2450 = vmul.f32 %v2440, %v2141
        %v2451 = vmul.f32 %v2439, %v2146
        %v2452 = vmul.f32 %v2438, %v2151
        %v2453 = vmul.f32 %v2437, %v2156
        %v2454 = vmul.f32 %v2436, %v2161
        %v2455 = vmul.f32 %v2445, %v2166
        %v2456 = vpack.c.bf16 %v2447, %v2446
        %v2457 = vpack.c.bf16 %v2449, %v2448
        %v2458 = vpack.c.bf16 %v2451, %v2450
        %v2459 = vpack.c.bf16 %v2453, %v2452
        %v2460 = vpack.c.bf16 %v2455, %v2454
        %2466 = vrot.lane.b32.xlu0 %v2421, 64
        %v2467 = vpop.permute.xlu0 %2466
        %2468 = vrot.lane.b32.xlu0 %v2422, 64
        %v2469 = vpop.permute.xlu0 %2468
        %2470 = vrot.lane.b32.xlu0 %v2423, 64
        %v2471 = vpop.permute.xlu0 %2470
        %2472 = vrot.lane.b32.xlu0 %v2424, 64
        %v2473 = vpop.permute.xlu0 %2472
        %2474 = vrot.lane.b32.xlu0 %v2425, 64
        %v2475 = vpop.permute.xlu0 %2474
        %v2478 = vsel %vm1689, %v2416, %v2467
        %v2482 = vsel %vm1689, %v2417, %v2469
        %v2486 = vsel %vm1689, %v2418, %v2471
        %v2490 = vsel %vm1689, %v2419, %v2473
        %v2494 = vsel %vm1689, %v2420, %v2475
        %v2496 = vld [vmem:[%s13] sm:$0xf]
        %v2497 = vld [vmem:[%s13 + $0x4] sm:$0xf]
        %v2498 = vld [vmem:[%s13 + $0x8] sm:$0xf]
        %v2499 = vld [vmem:[%s13 + $0xc] sm:$0xf]
        %v2500 = vld [vmem:[%s13 + $0x10] sm:$0xf]
        %v2501 = vld [vmem:[%s13 + $0x14] sm:$0xf]
        %v2502 = vld [vmem:[%s13 + $0x18] sm:$0xf]
        %v2503 = vld [vmem:[%s13 + $0x1c] sm:$0xf]
        %v2504 = vld [vmem:[%s13 + $0x20] sm:$0xf]
        %v2505 = vld [vmem:[%s13 + $0x24] sm:$0xf]
        %v2506 = vld [vmem:[%s13 + $0x28] sm:$0xf]
        %v2507 = vld [vmem:[%s13 + $0x2c] sm:$0xf]
        %v2508 = vld [vmem:[%s13 + $0x30] sm:$0xf]
        %v2509 = vld [vmem:[%s13 + $0x34] sm:$0xf]
        %v2510 = vld [vmem:[%s13 + $0x38] sm:$0xf]
        %v2511 = vld [vmem:[%s13 + $0x3c] sm:$0xf]
        %v2512 = vld [vmem:[%s13 + $0x40] sm:$0xf]
        %v2513 = vld [vmem:[%s13 + $0x44] sm:$0xf]
        %v2514 = vld [vmem:[%s13 + $0x48] sm:$0xf]
        %v2515 = vld [vmem:[%s13 + $0x4c] sm:$0xf]
        %v2516 = vld [vmem:[%s13 + $0x50] sm:$0xf]
        %v2517 = vld [vmem:[%s13 + $0x54] sm:$0xf]
        %v2518 = vld [vmem:[%s13 + $0x58] sm:$0xf]
        %v2519 = vld [vmem:[%s13 + $0x5c] sm:$0xf]
        %v2520 = vld [vmem:[%s14] sm:$0x1]
        %v2522 = vlaneseq
        %v2523 = vshrl.u32 %v2522, 7
        %v2524 = vsub.s32 0, %v2523
        %v2525 = vrot.slane %v2520, %v2524
        %v2551 = vunpack.c.l.b16 %v2496
        %v2552 = vunpack.c.l.b16 %v2497
        %v2553 = vunpack.c.l.b16 %v2498
        %v2554 = vunpack.c.l.b16 %v2499
        %v2555 = vunpack.c.l.b16 %v2500
        %v2556 = vunpack.c.l.b16 %v2501
        %v2557 = vunpack.c.l.b16 %v2502
        %v2558 = vunpack.c.l.b16 %v2503
        %v2559 = vunpack.c.l.b16 %v2504
        %v2560 = vunpack.c.l.b16 %v2505
        %v2561 = vunpack.c.l.b16 %v2506
        %v2562 = vunpack.c.l.b16 %v2507
        %v2563 = vunpack.c.l.b16 %v2508
        %v2564 = vunpack.c.l.b16 %v2509
        %v2565 = vunpack.c.l.b16 %v2510
        %v2566 = vunpack.c.l.b16 %v2511
        %v2567 = vunpack.c.l.b16 %v2512
        %v2568 = vunpack.c.l.b16 %v2513
        %v2569 = vunpack.c.l.b16 %v2514
        %v2570 = vunpack.c.l.b16 %v2515
        %v2571 = vunpack.c.l.b16 %v2516
        %v2572 = vunpack.c.l.b16 %v2517
        %v2573 = vunpack.c.l.b16 %v2518
        %v2574 = vunpack.c.l.b16 %v2519
        %v2575 = vpack.c.b16 %v2552, %v2551
        %v2576 = vpack.c.b16 %v2554, %v2553
        %v2577 = vpack.c.b16 %v2556, %v2555
        %v2578 = vpack.c.b16 %v2558, %v2557
        %v2579 = vpack.c.b16 %v2560, %v2559
        %v2580 = vpack.c.b16 %v2562, %v2561
        %v2581 = vpack.c.b16 %v2564, %v2563
        %v2582 = vpack.c.b16 %v2566, %v2565
        %v2583 = vpack.c.b16 %v2568, %v2567
        %v2584 = vpack.c.b16 %v2570, %v2569
        %v2585 = vpack.c.b16 %v2572, %v2571
        %v2586 = vpack.c.b16 %v2574, %v2573
        %v2600 = vsel %vm1689, %v2456, 0
        %v2603 = vsel %vm1689, %v2457, 0
        %v2606 = vsel %vm1689, %v2458, 0
        %v2609 = vsel %vm1689, %v2459, 0
        %v2612 = vsel %vm1689, %v2460, 0
        %2614 = vmatprep.subr.bf16.mxu0 0
        %2615 = vmatpush1.bf16.msra.mxu0 %v2582
        %2616 = vmatprep.subr.bf16.mxu0 0
        %2617 = vmatpush1.bf16.msra.mxu0 %v2581
        %2618 = vmatprep.subr.bf16.mxu0 0
        %2619 = vmatpush1.bf16.msra.mxu0 %v2580
        %2620 = vmatprep.subr.bf16.mxu0 0
        %2621 = vmatpush1.bf16.msra.mxu0 %v2579
        %2622 = vmatprep.subr.bf16.mxu0 0
        %2623 = vmatpush1.bf16.msra.mxu0 %v2578
        %2624 = vmatprep.subr.bf16.mxu0 0
        %2625 = vmatpush1.bf16.msra.mxu0 %v2577
        %2626 = vmatprep.subr.bf16.mxu0 0
        %2627 = vmatpush1.bf16.msra.mxu0 %v2576
        %2628 = vmatprep.subr.bf16.mxu0 0
        %2629 = vmatpush1.bf16.msra.mxu0 %v2575
        %2630 = vmatprep.subr.bf16.mxu0 0
        %2631 = vmatpush2.bf16.msra.mxu0 0
        %2632 = vmatprep.subr.bf16.mxu0 0
        %2633 = vmatpush2.bf16.msra.mxu0 0
        %2634 = vmatprep.subr.bf16.mxu0 0
        %2635 = vmatpush2.bf16.msra.mxu0 0
        %2636 = vmatprep.subr.bf16.mxu0 0
        %2637 = vmatpush2.bf16.msra.mxu0 0
        %2638 = vmatprep.subr.bf16.mxu0 0
        %2639 = vmatpush2.bf16.msra.mxu0 %v2586
        %2640 = vmatprep.subr.bf16.mxu0 0
        %2641 = vmatpush2.bf16.msra.mxu0 %v2585
        %2642 = vmatprep.subr.bf16.mxu0 0
        %2643 = vmatpush2.bf16.msra.mxu0 %v2584
        %2644 = vmatprep.subr.bf16.mxu0 0
        %2645 = vmatpush2.bf16.msra.mxu0 %v2583
        %2646 = vmatprep.mubr.bf16.mxu0 %v2600
        %2647 = vmatmul.mubr.bf16.gmra.mxu0 %v2478
        %v2648 = vpop.f32.mrf.mxu0
        %v2649 = vadd.f32 %v2525, %v2648
        %v2650 = vpop.f32.mrf.mxu0
        %v2651 = vpop.f32.mrf.mxu0
        %v2652 = vadd.f32 %v2525, %v2651
        %v2653 = vpop.f32.mrf.mxu0
        %2654 = vmatprep.mubr.bf16.mxu0 %v2603
        %2655 = vmatmul.mubr.bf16.gmra.mxu0 %v2482
        %v2656 = vpop.f32.mrf.mxu0
        %v2657 = vadd.f32 %v2525, %v2656
        %v2658 = vpop.f32.mrf.mxu0
        %v2659 = vpop.f32.mrf.mxu0
        %v2660 = vadd.f32 %v2525, %v2659
        %v2661 = vpop.f32.mrf.mxu0
        %2662 = vmatprep.mubr.bf16.mxu0 %v2606
        %2663 = vmatmul.mubr.bf16.gmra.mxu0 %v2486
        %v2664 = vpop.f32.mrf.mxu0
        %v2665 = vadd.f32 %v2525, %v2664
        %v2666 = vpop.f32.mrf.mxu0
        %v2667 = vpop.f32.mrf.mxu0
        %v2668 = vadd.f32 %v2525, %v2667
        %v2669 = vpop.f32.mrf.mxu0
        %2670 = vmatprep.mubr.bf16.mxu0 %v2609
        %2671 = vmatmul.mubr.bf16.gmra.mxu0 %v2490
        %v2672 = vpop.f32.mrf.mxu0
        %v2673 = vadd.f32 %v2525, %v2672
        %v2674 = vpop.f32.mrf.mxu0
        %v2675 = vpop.f32.mrf.mxu0
        %v2676 = vadd.f32 %v2525, %v2675
        %v2677 = vpop.f32.mrf.mxu0
        %2678 = vmatprep.mubr.bf16.mxu0 %v2612
        %2679 = vmatmul.mubr.bf16.gmra.mxu0 %v2494
        %v2680 = vpop.f32.mrf.mxu0
        %v2681 = vadd.f32 %v2525, %v2680
        %v2682 = vpop.f32.mrf.mxu0
        %v2683 = vpop.f32.mrf.mxu0
        %v2684 = vadd.f32 %v2525, %v2683
        %v2685 = vpop.f32.mrf.mxu0
        %2686 = vdwg.mxu0
        %v2687 = vmax.f32 %v2649, 0.0
        %v2688 = vmax.f32 %v2652, 0.0
        %v2689 = vmax.f32 %v2657, 0.0
        %v2690 = vmax.f32 %v2660, 0.0
        %v2691 = vmax.f32 %v2665, 0.0
        %v2692 = vmax.f32 %v2668, 0.0
        %v2693 = vmax.f32 %v2673, 0.0
        %v2694 = vmax.f32 %v2676, 0.0
        %v2695 = vmax.f32 %v2681, 0.0
        %v2696 = vmax.f32 %v2684, 0.0
        %2697 = vst.msk [vmem:[#allocation3] sm:$0xff] %vm1689, %v2687
        %2698 = vst.msk [vmem:[#allocation3 + $0x8] sm:$0xff] %vm1689, %v2688
        %2699 = vst.msk [vmem:[#allocation3 + $0x10] sm:$0xff] %vm1689, %v2689
        %2700 = vst.msk [vmem:[#allocation3 + $0x18] sm:$0xff] %vm1689, %v2690
        %2701 = vst.msk [vmem:[#allocation3 + $0x20] sm:$0xff] %vm1689, %v2691
        %2702 = vst.msk [vmem:[#allocation3 + $0x28] sm:$0xff] %vm1689, %v2692
        %2703 = vst.msk [vmem:[#allocation3 + $0x30] sm:$0xff] %vm1689, %v2693
        %2704 = vst.msk [vmem:[#allocation3 + $0x38] sm:$0xff] %vm1689, %v2694
        %2705 = vst.msk [vmem:[#allocation3 + $0x40] sm:$0xff] %vm1689, %v2695
        %2706 = vst.msk [vmem:[#allocation3 + $0x48] sm:$0xff] %vm1689, %v2696
        %v2707 = vld [vmem:[#allocation3] ss:$2 sm:$0xff]
        %s2708 = scalar_lea.vmem [#allocation3], 16
        %v2709 = vld [vmem:[%s2708] ss:$2 sm:$0xff]
        %s2710 = scalar_lea.vmem [#allocation3], 32
        %v2711 = vld [vmem:[%s2710] ss:$2 sm:$0xff]
        %s2712 = scalar_lea.vmem [#allocation3], 48
        %v2713 = vld [vmem:[%s2712] ss:$2 sm:$0xff]
        %s2714 = scalar_lea.vmem [#allocation3], 64
        %v2715 = vld [vmem:[%s2714] ss:$2 sm:$0xff]
        %s2716 = scalar_lea.vmem [#allocation3], 1
        %v2717 = vld [vmem:[%s2716] ss:$2 sm:$0xff]
        %s2718 = scalar_lea.vmem [#allocation3], 17
        %v2719 = vld [vmem:[%s2718] ss:$2 sm:$0xff]
        %s2720 = scalar_lea.vmem [#allocation3], 33
        %v2721 = vld [vmem:[%s2720] ss:$2 sm:$0xff]
        %s2722 = scalar_lea.vmem [#allocation3], 49
        %v2723 = vld [vmem:[%s2722] ss:$2 sm:$0xff]
        %s2724 = scalar_lea.vmem [#allocation3], 65
        %v2725 = vld [vmem:[%s2724] ss:$2 sm:$0xff]
        %v2726 = vmax.f32 %v2707, %v2717
        %v2727 = vmax.f32 %v2709, %v2719
        %v2728 = vmax.f32 %v2711, %v2721
        %v2729 = vmax.f32 %v2713, %v2723
        %v2730 = vmax.f32 %v2715, %v2725
        %v2731 = vrot.slane %v2726, 7
        %v2732 = vrot.slane %v2727, 7
        %v2733 = vrot.slane %v2728, 7
        %v2734 = vrot.slane %v2729, 7
        %v2735 = vrot.slane %v2730, 7
        %v2736 = vsel %vm792, %v2734, %v2735
        %v2737 = vsel %vm792, %v2733, %v2734
        %v2738 = vsel %vm792, %v2732, %v2733
        %v2739 = vsel %vm792, %v2731, %v2732
        %v2740 = vsel %vm792, %v2735, %v2731
        %v2741 = vld [vmem:[%s5] sm:$0xff]
        %v2742 = vld [vmem:[%s5 + $0x8] sm:$0xff]
        %v2743 = vld [vmem:[%s5 + $0x10] sm:$0xff]
        %v2744 = vld [vmem:[%s5 + $0x18] sm:$0xff]
        %v2745 = vld [vmem:[%s5 + $0x20] sm:$0xff]
        %2747 = vset.pattern.permute.xlu0 0
        %2748 = vperm.xlu0 %2747, %v2741
        %v2749 = vpop.permute.xlu0 %2748
        %2752 = vset.pattern.permute.xlu0 0
        %2753 = vperm.xlu0 %2752, %v2742
        %v2754 = vpop.permute.xlu0 %2753
        %2757 = vset.pattern.permute.xlu0 0
        %2758 = vperm.xlu0 %2757, %v2743
        %v2759 = vpop.permute.xlu0 %2758
        %2762 = vset.pattern.permute.xlu0 0
        %2763 = vperm.xlu0 %2762, %v2744
        %v2764 = vpop.permute.xlu0 %2763
        %2767 = vset.pattern.permute.xlu0 0
        %2768 = vperm.xlu0 %2767, %v2745
        %v2769 = vpop.permute.xlu0 %2768
        %v2771 = vmul.f32 %v2740, %v2749
        %v2772 = vmul.f32 %v2739, %v2754
        %v2773 = vmul.f32 %v2738, %v2759
        %v2774 = vmul.f32 %v2737, %v2764
        %v2775 = vmul.f32 %v2736, %v2769
        %v2776 = vpack.c.bf16 %v2772, %v2771
        %v2777 = vpack.c.bf16 %v2774, %v2773
        %v2778 = vpack.c.bf16 %v2775, %v2775
        %v2779 = vpack.c.bf16 %v2727, %v2726
        %v2780 = vpack.c.bf16 %v2729, %v2728
        %v2781 = vpack.c.bf16 %v2730, %v2730
        %v2782 = vrot.slane %v2726, 1
        %v2783 = vrot.slane %v2727, 1
        %v2784 = vrot.slane %v2728, 1
        %v2785 = vrot.slane %v2729, 1
        %v2786 = vrot.slane %v2730, 1
        %v2787 = vsel %vm993, %v2785, %v2786
        %v2788 = vsel %vm993, %v2784, %v2785
        %v2789 = vsel %vm993, %v2783, %v2784
        %v2790 = vsel %vm993, %v2782, %v2783
        %v2791 = vsel %vm993, %v2786, %v2782
        %v2792 = vld [vmem:[%s6] sm:$0xff]
        %v2793 = vld [vmem:[%s6 + $0x8] sm:$0xff]
        %v2794 = vld [vmem:[%s6 + $0x10] sm:$0xff]
        %v2795 = vld [vmem:[%s6 + $0x18] sm:$0xff]
        %v2796 = vld [vmem:[%s6 + $0x20] sm:$0xff]
        %2798 = vset.pattern.permute.xlu0 0
        %2799 = vperm.xlu0 %2798, %v2792
        %v2800 = vpop.permute.xlu0 %2799
        %2803 = vset.pattern.permute.xlu0 0
        %2804 = vperm.xlu0 %2803, %v2793
        %v2805 = vpop.permute.xlu0 %2804
        %2808 = vset.pattern.permute.xlu0 0
        %2809 = vperm.xlu0 %2808, %v2794
        %v2810 = vpop.permute.xlu0 %2809
        %2813 = vset.pattern.permute.xlu0 0
        %2814 = vperm.xlu0 %2813, %v2795
        %v2815 = vpop.permute.xlu0 %2814
        %2818 = vset.pattern.permute.xlu0 0
        %2819 = vperm.xlu0 %2818, %v2796
        %v2820 = vpop.permute.xlu0 %2819
        %v2822 = vmul.f32 %v2790, %v2800
        %v2823 = vmul.f32 %v2789, %v2805
        %v2824 = vmul.f32 %v2788, %v2810
        %v2825 = vmul.f32 %v2787, %v2815
        %v2826 = vmul.f32 %v2791, %v2820
        %v2827 = vpack.c.bf16 %v2823, %v2822
        %v2828 = vpack.c.bf16 %v2825, %v2824
        %v2829 = vpack.c.bf16 %v2826, %v2826
        %2833 = vrot.lane.b32.xlu0 %v2779, 64
        %v2834 = vpop.permute.xlu0 %2833
        %2835 = vrot.lane.b32.xlu0 %v2780, 64
        %v2836 = vpop.permute.xlu0 %2835
        %2837 = vrot.lane.b32.xlu0 %v2781, 64
        %v2838 = vpop.permute.xlu0 %2837
        %v2841 = vsel %vm1689, %v2776, %v2834
        %v2845 = vsel %vm1689, %v2777, %v2836
        %v2849 = vsel %vm1689, %v2778, %v2838
        %v2851 = vld [vmem:[%s15] sm:$0xf]
        %v2852 = vld [vmem:[%s15 + $0x4] sm:$0xf]
        %v2853 = vld [vmem:[%s15 + $0x8] sm:$0xf]
        %v2854 = vld [vmem:[%s15 + $0xc] sm:$0xf]
        %v2855 = vld [vmem:[%s15 + $0x10] sm:$0xf]
        %v2856 = vld [vmem:[%s15 + $0x14] sm:$0xf]
        %v2857 = vld [vmem:[%s15 + $0x18] sm:$0xf]
        %v2858 = vld [vmem:[%s15 + $0x1c] sm:$0xf]
        %v2859 = vld [vmem:[%s15 + $0x20] sm:$0xf]
        %v2860 = vld [vmem:[%s15 + $0x24] sm:$0xf]
        %v2861 = vld [vmem:[%s15 + $0x28] sm:$0xf]
        %v2862 = vld [vmem:[%s15 + $0x2c] sm:$0xf]
        %v2863 = vld [vmem:[%s15 + $0x30] sm:$0xf]
        %v2864 = vld [vmem:[%s15 + $0x34] sm:$0xf]
        %v2865 = vld [vmem:[%s15 + $0x38] sm:$0xf]
        %v2866 = vld [vmem:[%s15 + $0x3c] sm:$0xf]
        %v2867 = vld [vmem:[%s15 + $0x40] sm:$0xf]
        %v2868 = vld [vmem:[%s15 + $0x44] sm:$0xf]
        %v2869 = vld [vmem:[%s15 + $0x48] sm:$0xf]
        %v2870 = vld [vmem:[%s15 + $0x4c] sm:$0xf]
        %v2871 = vld [vmem:[%s15 + $0x50] sm:$0xf]
        %v2872 = vld [vmem:[%s15 + $0x54] sm:$0xf]
        %v2873 = vld [vmem:[%s15 + $0x58] sm:$0xf]
        %v2874 = vld [vmem:[%s15 + $0x5c] sm:$0xf]
        %v2875 = vld [vmem:[%s16] sm:$0x1]
        %v2877 = vlaneseq
        %v2878 = vshrl.u32 %v2877, 7
        %v2879 = vsub.s32 0, %v2878
        %v2880 = vrot.slane %v2875, %v2879
        %v2906 = vunpack.c.l.b16 %v2851
        %v2907 = vunpack.c.l.b16 %v2852
        %v2908 = vunpack.c.l.b16 %v2853
        %v2909 = vunpack.c.l.b16 %v2854
        %v2910 = vunpack.c.l.b16 %v2855
        %v2911 = vunpack.c.l.b16 %v2856
        %v2912 = vunpack.c.l.b16 %v2857
        %v2913 = vunpack.c.l.b16 %v2858
        %v2914 = vunpack.c.l.b16 %v2859
        %v2915 = vunpack.c.l.b16 %v2860
        %v2916 = vunpack.c.l.b16 %v2861
        %v2917 = vunpack.c.l.b16 %v2862
        %v2918 = vunpack.c.l.b16 %v2863
        %v2919 = vunpack.c.l.b16 %v2864
        %v2920 = vunpack.c.l.b16 %v2865
        %v2921 = vunpack.c.l.b16 %v2866
        %v2922 = vunpack.c.l.b16 %v2867
        %v2923 = vunpack.c.l.b16 %v2868
        %v2924 = vunpack.c.l.b16 %v2869
        %v2925 = vunpack.c.l.b16 %v2870
        %v2926 = vunpack.c.l.b16 %v2871
        %v2927 = vunpack.c.l.b16 %v2872
        %v2928 = vunpack.c.l.b16 %v2873
        %v2929 = vunpack.c.l.b16 %v2874
        %v2930 = vpack.c.b16 %v2907, %v2906
        %v2931 = vpack.c.b16 %v2909, %v2908
        %v2932 = vpack.c.b16 %v2911, %v2910
        %v2933 = vpack.c.b16 %v2913, %v2912
        %v2934 = vpack.c.b16 %v2915, %v2914
        %v2935 = vpack.c.b16 %v2917, %v2916
        %v2936 = vpack.c.b16 %v2919, %v2918
        %v2937 = vpack.c.b16 %v2921, %v2920
        %v2938 = vpack.c.b16 %v2923, %v2922
        %v2939 = vpack.c.b16 %v2925, %v2924
        %v2940 = vpack.c.b16 %v2927, %v2926
        %v2941 = vpack.c.b16 %v2929, %v2928
        %v2955 = vsel %vm1689, %v2827, 0
        %v2958 = vsel %vm1689, %v2828, 0
        %v2961 = vsel %vm1689, %v2829, 0
        %2963 = vmatprep.subr.bf16.mxu0 0
        %2964 = vmatpush1.bf16.msra.mxu0 %v2937
        %2965 = vmatprep.subr.bf16.mxu0 0
        %2966 = vmatpush1.bf16.msra.mxu0 %v2936
        %2967 = vmatprep.subr.bf16.mxu0 0
        %2968 = vmatpush1.bf16.msra.mxu0 %v2935
        %2969 = vmatprep.subr.bf16.mxu0 0
        %2970 = vmatpush1.bf16.msra.mxu0 %v2934
        %2971 = vmatprep.subr.bf16.mxu0 0
        %2972 = vmatpush1.bf16.msra.mxu0 %v2933
        %2973 = vmatprep.subr.bf16.mxu0 0
        %2974 = vmatpush1.bf16.msra.mxu0 %v2932
        %2975 = vmatprep.subr.bf16.mxu0 0
        %2976 = vmatpush1.bf16.msra.mxu0 %v2931
        %2977 = vmatprep.subr.bf16.mxu0 0
        %2978 = vmatpush1.bf16.msra.mxu0 %v2930
        %2979 = vmatprep.subr.bf16.mxu0 0
        %2980 = vmatpush2.bf16.msra.mxu0 0
        %2981 = vmatprep.subr.bf16.mxu0 0
        %2982 = vmatpush2.bf16.msra.mxu0 0
        %2983 = vmatprep.subr.bf16.mxu0 0
        %2984 = vmatpush2.bf16.msra.mxu0 0
        %2985 = vmatprep.subr.bf16.mxu0 0
        %2986 = vmatpush2.bf16.msra.mxu0 0
        %2987 = vmatprep.subr.bf16.mxu0 0
        %2988 = vmatpush2.bf16.msra.mxu0 %v2941
        %2989 = vmatprep.subr.bf16.mxu0 0
        %2990 = vmatpush2.bf16.msra.mxu0 %v2940
        %2991 = vmatprep.subr.bf16.mxu0 0
        %2992 = vmatpush2.bf16.msra.mxu0 %v2939
        %2993 = vmatprep.subr.bf16.mxu0 0
        %2994 = vmatpush2.bf16.msra.mxu0 %v2938
        %2995 = vmatprep.mubr.bf16.mxu0 %v2955
        %2996 = vmatmul.mubr.bf16.gmra.mxu0 %v2841
        %v2997 = vpop.f32.mrf.mxu0
        %v2998 = vadd.f32 %v2880, %v2997
        %v2999 = vpop.f32.mrf.mxu0
        %v3000 = vpop.f32.mrf.mxu0
        %v3001 = vadd.f32 %v2880, %v3000
        %v3002 = vpop.f32.mrf.mxu0
        %3003 = vmatprep.mubr.bf16.mxu0 %v2958
        %3004 = vmatmul.mubr.bf16.gmra.mxu0 %v2845
        %v3005 = vpop.f32.mrf.mxu0
        %v3006 = vadd.f32 %v2880, %v3005
        %v3007 = vpop.f32.mrf.mxu0
        %v3008 = vpop.f32.mrf.mxu0
        %v3009 = vadd.f32 %v2880, %v3008
        %v3010 = vpop.f32.mrf.mxu0
        %3011 = vmatprep.mubr.bf16.mxu0 %v2961
        %3012 = vmatmul.mubr.bf16.gmra.mxu0 %v2849
        %v3013 = vpop.f32.mrf.mxu0
        %v3014 = vadd.f32 %v2880, %v3013
        %v3015 = vpop.f32.mrf.mxu0
        %v3016 = vpop.f32.mrf.mxu0
        %v3017 = vpop.f32.mrf.mxu0
        %3018 = vdwg.mxu0
        %v3019 = vmax.f32 %v2998, 0.0
        %v3020 = vmax.f32 %v3001, 0.0
        %v3021 = vmax.f32 %v3006, 0.0
        %v3022 = vmax.f32 %v3009, 0.0
        %v3023 = vmax.f32 %v3014, 0.0
        %v3024 = vrot.slane %v3019, 7
        %v3025 = vrot.slane %v3020, 7
        %v3026 = vrot.slane %v3021, 7
        %v3027 = vrot.slane %v3022, 7
        %v3028 = vrot.slane %v3023, 7
        %v3029 = vsel %vm792, %v3027, %v3028
        %v3030 = vsel %vm792, %v3026, %v3027
        %v3031 = vsel %vm792, %v3025, %v3026
        %v3032 = vsel %vm792, %v3024, %v3025
        %v3033 = vsel %vm792, %v3028, %v3024
        %v3034 = vmul.f32 %v3033, %v2749
        %v3035 = vmul.f32 %v3032, %v2754
        %v3036 = vmul.f32 %v3031, %v2759
        %v3037 = vmul.f32 %v3030, %v2764
        %v3038 = vmul.f32 %v3029, %v2769
        %v3039 = vpack.c.bf16 %v3035, %v3034
        %v3040 = vpack.c.bf16 %v3037, %v3036
        %v3041 = vpack.c.bf16 %v3038, %v3038
        %v3042 = vpack.c.bf16 %v3020, %v3019
        %v3043 = vpack.c.bf16 %v3022, %v3021
        %v3044 = vpack.c.bf16 %v3023, %v3023
        %v3045 = vrot.slane %v3019, 1
        %v3046 = vrot.slane %v3020, 1
        %v3047 = vrot.slane %v3021, 1
        %v3048 = vrot.slane %v3022, 1
        %v3049 = vrot.slane %v3023, 1
        %v3050 = vsel %vm993, %v3048, %v3049
        %v3051 = vsel %vm993, %v3047, %v3048
        %v3052 = vsel %vm993, %v3046, %v3047
        %v3053 = vsel %vm993, %v3045, %v3046
        %v3054 = vsel %vm993, %v3049, %v3045
        %v3055 = vmul.f32 %v3053, %v2800
        %v3056 = vmul.f32 %v3052, %v2805
        %v3057 = vmul.f32 %v3051, %v2810
        %v3058 = vmul.f32 %v3050, %v2815
        %v3059 = vmul.f32 %v3054, %v2820
        %v3060 = vpack.c.bf16 %v3056, %v3055
        %v3061 = vpack.c.bf16 %v3058, %v3057
        %v3062 = vpack.c.bf16 %v3059, %v3059
        %v3063 = vld [vmem:[%s17] sm:$0xf]
        %v3064 = vld [vmem:[%s17 + $0x4] sm:$0xf]
        %v3065 = vld [vmem:[%s17 + $0x8] sm:$0xf]
        %v3066 = vld [vmem:[%s17 + $0xc] sm:$0xf]
        %v3067 = vld [vmem:[%s17 + $0x10] sm:$0xf]
        %v3068 = vld [vmem:[%s17 + $0x14] sm:$0xf]
        %v3069 = vld [vmem:[%s17 + $0x18] sm:$0xf]
        %v3070 = vld [vmem:[%s17 + $0x1c] sm:$0xf]
        %v3071 = vld [vmem:[%s17 + $0x20] sm:$0xf]
        %v3072 = vld [vmem:[%s17 + $0x24] sm:$0xf]
        %v3073 = vld [vmem:[%s17 + $0x28] sm:$0xf]
        %v3074 = vld [vmem:[%s17 + $0x2c] sm:$0xf]
        %v3075 = vld [vmem:[%s17 + $0x30] sm:$0xf]
        %v3076 = vld [vmem:[%s17 + $0x34] sm:$0xf]
        %v3077 = vld [vmem:[%s17 + $0x38] sm:$0xf]
        %v3078 = vld [vmem:[%s17 + $0x3c] sm:$0xf]
        %v3079 = vld [vmem:[%s17 + $0x40] sm:$0xf]
        %v3080 = vld [vmem:[%s17 + $0x44] sm:$0xf]
        %v3081 = vld [vmem:[%s17 + $0x48] sm:$0xf]
        %v3082 = vld [vmem:[%s17 + $0x4c] sm:$0xf]
        %v3083 = vld [vmem:[%s17 + $0x50] sm:$0xf]
        %v3084 = vld [vmem:[%s17 + $0x54] sm:$0xf]
        %v3085 = vld [vmem:[%s17 + $0x58] sm:$0xf]
        %v3086 = vld [vmem:[%s17 + $0x5c] sm:$0xf]
        %v3087 = vld [vmem:[%s17 + $0x60] sm:$0xf]
        %v3088 = vld [vmem:[%s17 + $0x64] sm:$0xf]
        %v3089 = vld [vmem:[%s17 + $0x68] sm:$0xf]
        %v3090 = vld [vmem:[%s17 + $0x6c] sm:$0xf]
        %v3091 = vld [vmem:[%s17 + $0x70] sm:$0xf]
        %v3092 = vld [vmem:[%s17 + $0x74] sm:$0xf]
        %v3093 = vld [vmem:[%s17 + $0x78] sm:$0xf]
        %v3094 = vld [vmem:[%s17 + $0x7c] sm:$0xf]
        %v3095 = vld [vmem:[%s17 + $0x80] sm:$0xf]
        %v3096 = vld [vmem:[%s17 + $0x84] sm:$0xf]
        %v3097 = vld [vmem:[%s17 + $0x88] sm:$0xf]
        %v3098 = vld [vmem:[%s17 + $0x8c] sm:$0xf]
        %v3099 = vld [vmem:[%s17 + $0x90] sm:$0xf]
        %v3100 = vld [vmem:[%s17 + $0x94] sm:$0xf]
        %v3101 = vld [vmem:[%s17 + $0x98] sm:$0xf]
        %v3102 = vld [vmem:[%s17 + $0x9c] sm:$0xf]
        %v3103 = vld [vmem:[%s17 + $0xa0] sm:$0xf]
        %v3104 = vld [vmem:[%s17 + $0xa4] sm:$0xf]
        %v3105 = vld [vmem:[%s17 + $0xa8] sm:$0xf]
        %v3106 = vld [vmem:[%s17 + $0xac] sm:$0xf]
        %v3107 = vld [vmem:[%s17 + $0xb0] sm:$0xf]
        %v3108 = vld [vmem:[%s17 + $0xb4] sm:$0xf]
        %v3109 = vld [vmem:[%s17 + $0xb8] sm:$0xf]
        %v3110 = vld [vmem:[%s17 + $0xbc] sm:$0xf]
        %v3111 = vld [vmem:[%s18] sm:$0x1]
        %v3113 = vlaneseq
        %v3114 = vshrl.u32 %v3113, 7
        %v3115 = vsub.s32 0, %v3114
        %v3116 = vrot.slane %v3111, %v3115
        %v3166 = vunpack.c.l.b16 %v3063
        %v3167 = vunpack.c.l.b16 %v3064
        %v3168 = vunpack.c.l.b16 %v3065
        %v3169 = vunpack.c.l.b16 %v3066
        %v3170 = vunpack.c.l.b16 %v3067
        %v3171 = vunpack.c.l.b16 %v3068
        %v3172 = vunpack.c.l.b16 %v3069
        %v3173 = vunpack.c.l.b16 %v3070
        %v3174 = vunpack.c.l.b16 %v3071
        %v3175 = vunpack.c.l.b16 %v3072
        %v3176 = vunpack.c.l.b16 %v3073
        %v3177 = vunpack.c.l.b16 %v3074
        %v3178 = vunpack.c.l.b16 %v3075
        %v3179 = vunpack.c.l.b16 %v3076
        %v3180 = vunpack.c.l.b16 %v3077
        %v3181 = vunpack.c.l.b16 %v3078
        %v3182 = vunpack.c.l.b16 %v3079
        %v3183 = vunpack.c.l.b16 %v3080
        %v3184 = vunpack.c.l.b16 %v3081
        %v3185 = vunpack.c.l.b16 %v3082
        %v3186 = vunpack.c.l.b16 %v3083
        %v3187 = vunpack.c.l.b16 %v3084
        %v3188 = vunpack.c.l.b16 %v3085
        %v3189 = vunpack.c.l.b16 %v3086
        %v3190 = vunpack.c.l.b16 %v3087
        %v3191 = vunpack.c.l.b16 %v3088
        %v3192 = vunpack.c.l.b16 %v3089
        %v3193 = vunpack.c.l.b16 %v3090
        %v3194 = vunpack.c.l.b16 %v3091
        %v3195 = vunpack.c.l.b16 %v3092
        %v3196 = vunpack.c.l.b16 %v3093
        %v3197 = vunpack.c.l.b16 %v3094
        %v3198 = vunpack.c.l.b16 %v3095
        %v3199 = vunpack.c.l.b16 %v3096
        %v3200 = vunpack.c.l.b16 %v3097
        %v3201 = vunpack.c.l.b16 %v3098
        %v3202 = vunpack.c.l.b16 %v3099
        %v3203 = vunpack.c.l.b16 %v3100
        %v3204 = vunpack.c.l.b16 %v3101
        %v3205 = vunpack.c.l.b16 %v3102
        %v3206 = vunpack.c.l.b16 %v3103
        %v3207 = vunpack.c.l.b16 %v3104
        %v3208 = vunpack.c.l.b16 %v3105
        %v3209 = vunpack.c.l.b16 %v3106
        %v3210 = vunpack.c.l.b16 %v3107
        %v3211 = vunpack.c.l.b16 %v3108
        %v3212 = vunpack.c.l.b16 %v3109
        %v3213 = vunpack.c.l.b16 %v3110
        %v3214 = vpack.c.b16 %v3167, %v3166
        %v3215 = vpack.c.b16 %v3169, %v3168
        %v3216 = vpack.c.b16 %v3171, %v3170
        %v3217 = vpack.c.b16 %v3173, %v3172
        %v3218 = vpack.c.b16 %v3175, %v3174
        %v3219 = vpack.c.b16 %v3177, %v3176
        %v3220 = vpack.c.b16 %v3179, %v3178
        %v3221 = vpack.c.b16 %v3181, %v3180
        %v3222 = vpack.c.b16 %v3183, %v3182
        %v3223 = vpack.c.b16 %v3185, %v3184
        %v3224 = vpack.c.b16 %v3187, %v3186
        %v3225 = vpack.c.b16 %v3189, %v3188
        %v3226 = vpack.c.b16 %v3191, %v3190
        %v3227 = vpack.c.b16 %v3193, %v3192
        %v3228 = vpack.c.b16 %v3195, %v3194
        %v3229 = vpack.c.b16 %v3197, %v3196
        %v3230 = vpack.c.b16 %v3199, %v3198
        %v3231 = vpack.c.b16 %v3201, %v3200
        %v3232 = vpack.c.b16 %v3203, %v3202
        %v3233 = vpack.c.b16 %v3205, %v3204
        %v3234 = vpack.c.b16 %v3207, %v3206
        %v3235 = vpack.c.b16 %v3209, %v3208
        %v3236 = vpack.c.b16 %v3211, %v3210
        %v3237 = vpack.c.b16 %v3213, %v3212
        %3262 = vmatprep.subr.bf16.mxu0 0
        %3263 = vmatpush1.bf16.msra.mxu0 %v3221
        %3264 = vmatprep.subr.bf16.mxu0 0
        %3265 = vmatpush1.bf16.msra.mxu0 %v3220
        %3266 = vmatprep.subr.bf16.mxu0 0
        %3267 = vmatpush1.bf16.msra.mxu0 %v3219
        %3268 = vmatprep.subr.bf16.mxu0 0
        %3269 = vmatpush1.bf16.msra.mxu0 %v3218
        %3270 = vmatprep.subr.bf16.mxu0 0
        %3271 = vmatpush1.bf16.msra.mxu0 %v3217
        %3272 = vmatprep.subr.bf16.mxu0 0
        %3273 = vmatpush1.bf16.msra.mxu0 %v3216
        %3274 = vmatprep.subr.bf16.mxu0 0
        %3275 = vmatpush1.bf16.msra.mxu0 %v3215
        %3276 = vmatprep.subr.bf16.mxu0 0
        %3277 = vmatpush1.bf16.msra.mxu0 %v3214
        %3278 = vmatprep.subr.bf16.mxu0 0
        %3279 = vmatpush2.bf16.msra.mxu0 %v3229
        %3280 = vmatprep.subr.bf16.mxu0 0
        %3281 = vmatpush2.bf16.msra.mxu0 %v3228
        %3282 = vmatprep.subr.bf16.mxu0 0
        %3283 = vmatpush2.bf16.msra.mxu0 %v3227
        %3284 = vmatprep.subr.bf16.mxu0 0
        %3285 = vmatpush2.bf16.msra.mxu0 %v3226
        %3286 = vmatprep.subr.bf16.mxu0 0
        %3287 = vmatpush2.bf16.msra.mxu0 %v3225
        %3288 = vmatprep.subr.bf16.mxu0 0
        %3289 = vmatpush2.bf16.msra.mxu0 %v3224
        %3290 = vmatprep.subr.bf16.mxu0 0
        %3291 = vmatpush2.bf16.msra.mxu0 %v3223
        %3292 = vmatprep.subr.bf16.mxu0 0
        %3293 = vmatpush2.bf16.msra.mxu0 %v3222
        %3294 = vmatprep.mubr.bf16.mxu0 %v3042
        %3295 = vmatmul.mubr.bf16.gmra.mxu0 %v3039
        %v3296 = vpop.f32.mrf.mxu0
        %v3297 = vadd.f32 %v3116, %v3296
        %v3298 = vpop.f32.mrf.mxu0
        %v3299 = vpop.f32.mrf.mxu0
        %v3300 = vadd.f32 %v3116, %v3299
        %v3301 = vpop.f32.mrf.mxu0
        %3302 = vmatprep.mubr.bf16.mxu0 %v3043
        %3303 = vmatmul.mubr.bf16.gmra.mxu0 %v3040
        %v3304 = vpop.f32.mrf.mxu0
        %v3305 = vadd.f32 %v3116, %v3304
        %v3306 = vpop.f32.mrf.mxu0
        %v3307 = vpop.f32.mrf.mxu0
        %v3308 = vadd.f32 %v3116, %v3307
        %v3309 = vpop.f32.mrf.mxu0
        %3310 = vmatprep.mubr.bf16.mxu0 %v3044
        %3311 = vmatmul.mubr.bf16.gmra.mxu0 %v3041
        %v3312 = vpop.f32.mrf.mxu0
        %v3313 = vadd.f32 %v3116, %v3312
        %v3314 = vpop.f32.mrf.mxu0
        %v3315 = vpop.f32.mrf.mxu0
        %v3316 = vpop.f32.mrf.mxu0
        %3317 = vdwg.mxu0
        %3318 = vmatprep.subr.bf16.mxu0 0
        %3319 = vmatpush1.bf16.msra.mxu0 %v3237
        %3320 = vmatprep.subr.bf16.mxu0 0
        %3321 = vmatpush1.bf16.msra.mxu0 %v3236
        %3322 = vmatprep.subr.bf16.mxu0 0
        %3323 = vmatpush1.bf16.msra.mxu0 %v3235
        %3324 = vmatprep.subr.bf16.mxu0 0
        %3325 = vmatpush1.bf16.msra.mxu0 %v3234
        %3326 = vmatprep.subr.bf16.mxu0 0
        %3327 = vmatpush1.bf16.msra.mxu0 %v3233
        %3328 = vmatprep.subr.bf16.mxu0 0
        %3329 = vmatpush1.bf16.msra.mxu0 %v3232
        %3330 = vmatprep.subr.bf16.mxu0 0
        %3331 = vmatpush1.bf16.msra.mxu0 %v3231
        %3332 = vmatprep.subr.bf16.mxu0 0
        %3333 = vmatpush1.bf16.msra.mxu0 %v3230
        %3334 = vmatprep.subr.bf16.mxu0 0
        %3335 = vmatpush2.bf16.msra.mxu0 0
        %3336 = vmatprep.subr.bf16.mxu0 0
        %3337 = vmatpush2.bf16.msra.mxu0 0
        %3338 = vmatprep.subr.bf16.mxu0 0
        %3339 = vmatpush2.bf16.msra.mxu0 0
        %3340 = vmatprep.subr.bf16.mxu0 0
        %3341 = vmatpush2.bf16.msra.mxu0 0
        %3342 = vmatprep.subr.bf16.mxu0 0
        %3343 = vmatpush2.bf16.msra.mxu0 0
        %3344 = vmatprep.subr.bf16.mxu0 0
        %3345 = vmatpush2.bf16.msra.mxu0 0
        %3346 = vmatprep.subr.bf16.mxu0 0
        %3347 = vmatpush2.bf16.msra.mxu0 0
        %3348 = vmatprep.subr.bf16.mxu0 0
        %3349 = vmatpush2.bf16.msra.mxu0 0
        %3350 = vmatprep.mubr.bf16.mxu0 0
        %3351 = vmatmul.mubr.bf16.gmra.mxu0 %v3060
        %v3352 = vpop.f32.mrf.mxu0
        %v3353 = vadd.f32 %v3297, %v3352
        %v3354 = vpop.f32.mrf.mxu0
        %v3355 = vpop.f32.mrf.mxu0
        %v3356 = vadd.f32 %v3300, %v3355
        %v3357 = vpop.f32.mrf.mxu0
        %3358 = vmatprep.mubr.bf16.mxu0 0
        %3359 = vmatmul.mubr.bf16.gmra.mxu0 %v3061
        %v3360 = vpop.f32.mrf.mxu0
        %v3361 = vadd.f32 %v3305, %v3360
        %v3362 = vpop.f32.mrf.mxu0
        %v3363 = vpop.f32.mrf.mxu0
        %v3364 = vadd.f32 %v3308, %v3363
        %v3365 = vpop.f32.mrf.mxu0
        %3366 = vmatprep.mubr.bf16.mxu0 0
        %3367 = vmatmul.mubr.bf16.gmra.mxu0 %v3062
        %v3368 = vpop.f32.mrf.mxu0
        %v3369 = vadd.f32 %v3313, %v3368
        %v3370 = vpop.f32.mrf.mxu0
        %v3371 = vpop.f32.mrf.mxu0
        %v3372 = vpop.f32.mrf.mxu0
        %3373 = vdwg.mxu0
        %v3374 = vmax.f32 %v3353, 0.0
        %v3375 = vmax.f32 %v3356, 0.0
        %v3376 = vmax.f32 %v3361, 0.0
        %v3377 = vmax.f32 %v3364, 0.0
        %v3378 = vmax.f32 %v3369, 0.0
        %3379 = vst [vmem:[#allocation4] sm:$0xff] %v3374
        %3380 = vst [vmem:[#allocation4 + $0x8] sm:$0xff] %v3375
        %3381 = vst [vmem:[#allocation4 + $0x10] sm:$0xff] %v3376
        %3382 = vst [vmem:[#allocation4 + $0x18] sm:$0xff] %v3377
        %3383 = vst [vmem:[#allocation4 + $0x20] sm:$0xff] %v3378
        %v3384 = vld [vmem:[#allocation4] ss:$10 sm:$0xf]
        %s3385 = scalar_lea.vmem [#allocation4], 1
        %v3386 = vld [vmem:[%s3385] ss:$10 sm:$0xf]
        %v3387 = vmax.f32 %v3384, %v3386
        %v3388 = vpack.c.bf16 %v3387, %v3387
        %s3389 = scalar_lea.vmem [#allocation4], 2
        %v3390 = vld [vmem:[%s3389] ss:$10 sm:$0xf]
        %s3391 = scalar_lea.vmem [#allocation4], 3
        %v3392 = vld [vmem:[%s3391] ss:$10 sm:$0xf]
        %v3393 = vmax.f32 %v3390, %v3392
        %v3394 = vpack.c.bf16 %v3393, %v3393
        %s3395 = scalar_lea.vmem [#allocation4], 4
        %v3396 = vld [vmem:[%s3395] ss:$10 sm:$0xf]
        %s3397 = scalar_lea.vmem [#allocation4], 5
        %v3398 = vld [vmem:[%s3397] ss:$10 sm:$0xf]
        %v3399 = vmax.f32 %v3396, %v3398
        %v3400 = vpack.c.bf16 %v3399, %v3399
        %s3401 = scalar_lea.vmem [#allocation4], 6
        %v3402 = vld [vmem:[%s3401] ss:$10 sm:$0xf]
        %s3403 = scalar_lea.vmem [#allocation4], 7
        %v3404 = vld [vmem:[%s3403] ss:$10 sm:$0xf]
        %v3405 = vmax.f32 %v3402, %v3404
        %v3406 = vpack.c.bf16 %v3405, %v3405
        %s3407 = scalar_lea.vmem [#allocation4], 8
        %v3408 = vld [vmem:[%s3407] ss:$10 sm:$0xf]
        %s3409 = scalar_lea.vmem [#allocation4], 9
        %v3410 = vld [vmem:[%s3409] ss:$10 sm:$0xf]
        %v3411 = vmax.f32 %v3408, %v3410
        %v3412 = vpack.c.bf16 %v3411, %v3411
        %v3413 = vld [vmem:[%s19] sm:$0xff]
        %v3414 = vld [vmem:[%s19 + $0x8] sm:$0xff]
        %v3415 = vld [vmem:[%s19 + $0x10] sm:$0xff]
        %v3416 = vld [vmem:[%s19 + $0x18] sm:$0xff]
        %v3417 = vld [vmem:[%s19 + $0x20] sm:$0xff]
        %v3418 = vld [vmem:[%s19 + $0x28] sm:$0xff]
        %v3419 = vld [vmem:[%s19 + $0x30] sm:$0xff]
        %v3420 = vld [vmem:[%s19 + $0x38] sm:$0xff]
        %v3421 = vld [vmem:[%s19 + $0x40] sm:$0xff]
        %v3422 = vld [vmem:[%s19 + $0x48] sm:$0xff]
        %v3423 = vld [vmem:[%s19 + $0x50] sm:$0xff]
        %v3424 = vld [vmem:[%s19 + $0x58] sm:$0xff]
        %v3425 = vld [vmem:[%s19 + $0x60] sm:$0xff]
        %v3426 = vld [vmem:[%s19 + $0x68] sm:$0xff]
        %v3427 = vld [vmem:[%s19 + $0x70] sm:$0xff]
        %v3428 = vld [vmem:[%s19 + $0x78] sm:$0xff]
        %v3429 = vld [vmem:[%s19 + $0x80] sm:$0xff]
        %v3430 = vld [vmem:[%s19 + $0x88] sm:$0xff]
        %v3431 = vld [vmem:[%s19 + $0x90] sm:$0xff]
        %v3432 = vld [vmem:[%s19 + $0x98] sm:$0xff]
        %v3433 = vld [vmem:[%s19 + $0xa0] sm:$0xff]
        %v3434 = vld [vmem:[%s19 + $0xa8] sm:$0xff]
        %v3435 = vld [vmem:[%s19 + $0xb0] sm:$0xff]
        %v3436 = vld [vmem:[%s19 + $0xb8] sm:$0xff]
        %v3437 = vld [vmem:[%s19 + $0xc0] sm:$0xff]
        %v3438 = vld [vmem:[%s19 + $0xc8] sm:$0xff]
        %v3439 = vld [vmem:[%s19 + $0xd0] sm:$0xff]
        %v3440 = vld [vmem:[%s19 + $0xd8] sm:$0xff]
        %v3441 = vld [vmem:[%s19 + $0xe0] sm:$0xff]
        %v3442 = vld [vmem:[%s19 + $0xe8] sm:$0xff]
        %v3443 = vld [vmem:[%s19 + $0xf0] sm:$0xff]
        %v3444 = vld [vmem:[%s19 + $0xf8] sm:$0xff]
        %v3445 = vld [vmem:[%s19 + $0x100] sm:$0xff]
        %v3446 = vld [vmem:[%s19 + $0x108] sm:$0xff]
        %v3447 = vld [vmem:[%s19 + $0x110] sm:$0xff]
        %v3448 = vld [vmem:[%s19 + $0x118] sm:$0xff]
        %v3449 = vld [vmem:[%s19 + $0x120] sm:$0xff]
        %v3450 = vld [vmem:[%s19 + $0x128] sm:$0xff]
        %v3451 = vld [vmem:[%s19 + $0x130] sm:$0xff]
        %v3452 = vld [vmem:[%s19 + $0x138] sm:$0xff]
        %v3453 = vld [vmem:[%s19 + $0x140] sm:$0xff]
        %v3454 = vld [vmem:[%s19 + $0x148] sm:$0xff]
        %v3455 = vld [vmem:[%s19 + $0x150] sm:$0xff]
        %v3456 = vld [vmem:[%s19 + $0x158] sm:$0xff]
        %v3457 = vld [vmem:[%s19 + $0x160] sm:$0xff]
        %v3458 = vld [vmem:[%s19 + $0x168] sm:$0xff]
        %v3459 = vld [vmem:[%s19 + $0x170] sm:$0xff]
        %v3460 = vld [vmem:[%s19 + $0x178] sm:$0xff]
        %v3461 = vld [vmem:[%s19 + $0x180] sm:$0xff]
        %v3462 = vld [vmem:[%s19 + $0x188] sm:$0xff]
        %v3463 = vld [vmem:[%s19 + $0x190] sm:$0xff]
        %v3464 = vld [vmem:[%s19 + $0x198] sm:$0xff]
        %v3465 = vld [vmem:[%s19 + $0x1a0] sm:$0xff]
        %v3466 = vld [vmem:[%s19 + $0x1a8] sm:$0xff]
        %v3467 = vld [vmem:[%s19 + $0x1b0] sm:$0xff]
        %v3468 = vld [vmem:[%s19 + $0x1b8] sm:$0xff]
        %v3469 = vld [vmem:[%s19 + $0x1c0] sm:$0xff]
        %v3470 = vld [vmem:[%s19 + $0x1c8] sm:$0xff]
        %v3471 = vld [vmem:[%s19 + $0x1d0] sm:$0xff]
        %v3472 = vld [vmem:[%s19 + $0x1d8] sm:$0xff]
        %v3473 = vld [vmem:[%s19 + $0x1e0] sm:$0xff]
        %v3474 = vld [vmem:[%s19 + $0x1e8] sm:$0xff]
        %v3475 = vld [vmem:[%s19 + $0x1f0] sm:$0xff]
        %v3476 = vld [vmem:[%s19 + $0x1f8] sm:$0xff]
        %v3477 = vld [vmem:[%s19 + $0x200] sm:$0xff]
        %v3478 = vld [vmem:[%s19 + $0x208] sm:$0xff]
        %v3479 = vld [vmem:[%s19 + $0x210] sm:$0xff]
        %v3480 = vld [vmem:[%s19 + $0x218] sm:$0xff]
        %v3481 = vld [vmem:[%s19 + $0x220] sm:$0xff]
        %v3482 = vld [vmem:[%s19 + $0x228] sm:$0xff]
        %v3483 = vld [vmem:[%s19 + $0x230] sm:$0xff]
        %v3484 = vld [vmem:[%s19 + $0x238] sm:$0xff]
        %v3485 = vld [vmem:[%s19 + $0x240] sm:$0xff]
        %v3486 = vld [vmem:[%s19 + $0x248] sm:$0xff]
        %v3487 = vld [vmem:[%s19 + $0x250] sm:$0xff]
        %v3488 = vld [vmem:[%s19 + $0x258] sm:$0xff]
        %v3489 = vld [vmem:[%s19 + $0x260] sm:$0xff]
        %v3490 = vld [vmem:[%s19 + $0x268] sm:$0xff]
        %v3491 = vld [vmem:[%s19 + $0x270] sm:$0xff]
        %v3492 = vld [vmem:[%s19 + $0x278] sm:$0xff]
        %v3493 = vld [vmem:[%s20] sm:$0x3]
        %v3495 = vlaneseq
        %v3496 = vshrl.u32 %v3495, 7
        %v3497 = vsub.s32 0, %v3496
        %v3498 = vrot.slane %v3493, %v3497
        %v3499 = vlaneseq
        %v3500 = vshrl.u32 %v3499, 7
        %v3501 = vsub.s32 1, %v3500
        %v3502 = vrot.slane %v3493, %v3501
        %v3585 = vunpack.c.l.b16 %v3413
        %v3586 = vunpack.c.h.b16 %v3413
        %v3587 = vunpack.c.l.b16 %v3414
        %v3588 = vunpack.c.h.b16 %v3414
        %v3589 = vunpack.c.l.b16 %v3415
        %v3590 = vunpack.c.h.b16 %v3415
        %v3591 = vunpack.c.l.b16 %v3416
        %v3592 = vunpack.c.h.b16 %v3416
        %v3593 = vunpack.c.l.b16 %v3417
        %v3594 = vunpack.c.h.b16 %v3417
        %v3595 = vunpack.c.l.b16 %v3418
        %v3596 = vunpack.c.h.b16 %v3418
        %v3597 = vunpack.c.l.b16 %v3419
        %v3598 = vunpack.c.h.b16 %v3419
        %v3599 = vunpack.c.l.b16 %v3420
        %v3600 = vunpack.c.h.b16 %v3420
        %v3601 = vunpack.c.l.b16 %v3421
        %v3602 = vunpack.c.h.b16 %v3421
        %v3603 = vunpack.c.l.b16 %v3422
        %v3604 = vunpack.c.h.b16 %v3422
        %v3605 = vunpack.c.l.b16 %v3423
        %v3606 = vunpack.c.h.b16 %v3423
        %v3607 = vunpack.c.l.b16 %v3424
        %v3608 = vunpack.c.h.b16 %v3424
        %v3609 = vunpack.c.l.b16 %v3425
        %v3610 = vunpack.c.h.b16 %v3425
        %v3611 = vunpack.c.l.b16 %v3426
        %v3612 = vunpack.c.h.b16 %v3426
        %v3613 = vunpack.c.l.b16 %v3427
        %v3614 = vunpack.c.h.b16 %v3427
        %v3615 = vunpack.c.l.b16 %v3428
        %v3616 = vunpack.c.h.b16 %v3428
        %v3617 = vunpack.c.l.b16 %v3429
        %v3618 = vunpack.c.h.b16 %v3429
        %v3619 = vunpack.c.l.b16 %v3430
        %v3620 = vunpack.c.h.b16 %v3430
        %v3621 = vunpack.c.l.b16 %v3431
        %v3622 = vunpack.c.h.b16 %v3431
        %v3623 = vunpack.c.l.b16 %v3432
        %v3624 = vunpack.c.h.b16 %v3432
        %v3625 = vunpack.c.l.b16 %v3433
        %v3626 = vunpack.c.h.b16 %v3433
        %v3627 = vunpack.c.l.b16 %v3434
        %v3628 = vunpack.c.h.b16 %v3434
        %v3629 = vunpack.c.l.b16 %v3435
        %v3630 = vunpack.c.h.b16 %v3435
        %v3631 = vunpack.c.l.b16 %v3436
        %v3632 = vunpack.c.h.b16 %v3436
        %v3633 = vunpack.c.l.b16 %v3437
        %v3634 = vunpack.c.h.b16 %v3437
        %v3635 = vunpack.c.l.b16 %v3438
        %v3636 = vunpack.c.h.b16 %v3438
        %v3637 = vunpack.c.l.b16 %v3439
        %v3638 = vunpack.c.h.b16 %v3439
        %v3639 = vunpack.c.l.b16 %v3440
        %v3640 = vunpack.c.h.b16 %v3440
        %v3641 = vunpack.c.l.b16 %v3441
        %v3642 = vunpack.c.h.b16 %v3441
        %v3643 = vunpack.c.l.b16 %v3442
        %v3644 = vunpack.c.h.b16 %v3442
        %v3645 = vunpack.c.l.b16 %v3443
        %v3646 = vunpack.c.h.b16 %v3443
        %v3647 = vunpack.c.l.b16 %v3444
        %v3648 = vunpack.c.h.b16 %v3444
        %v3649 = vunpack.c.l.b16 %v3445
        %v3650 = vunpack.c.h.b16 %v3445
        %v3651 = vunpack.c.l.b16 %v3446
        %v3652 = vunpack.c.h.b16 %v3446
        %v3653 = vunpack.c.l.b16 %v3447
        %v3654 = vunpack.c.h.b16 %v3447
        %v3655 = vunpack.c.l.b16 %v3448
        %v3656 = vunpack.c.h.b16 %v3448
        %v3657 = vunpack.c.l.b16 %v3449
        %v3658 = vunpack.c.h.b16 %v3449
        %v3659 = vunpack.c.l.b16 %v3450
        %v3660 = vunpack.c.h.b16 %v3450
        %v3661 = vunpack.c.l.b16 %v3451
        %v3662 = vunpack.c.h.b16 %v3451
        %v3663 = vunpack.c.l.b16 %v3452
        %v3664 = vunpack.c.h.b16 %v3452
        %v3665 = vunpack.c.l.b16 %v3453
        %v3666 = vunpack.c.h.b16 %v3453
        %v3667 = vunpack.c.l.b16 %v3454
        %v3668 = vunpack.c.h.b16 %v3454
        %v3669 = vunpack.c.l.b16 %v3455
        %v3670 = vunpack.c.h.b16 %v3455
        %v3671 = vunpack.c.l.b16 %v3456
        %v3672 = vunpack.c.h.b16 %v3456
        %v3673 = vunpack.c.l.b16 %v3457
        %v3674 = vunpack.c.h.b16 %v3457
        %v3675 = vunpack.c.l.b16 %v3458
        %v3676 = vunpack.c.h.b16 %v3458
        %v3677 = vunpack.c.l.b16 %v3459
        %v3678 = vunpack.c.h.b16 %v3459
        %v3679 = vunpack.c.l.b16 %v3460
        %v3680 = vunpack.c.h.b16 %v3460
        %v3681 = vunpack.c.l.b16 %v3461
        %v3682 = vunpack.c.h.b16 %v3461
        %v3683 = vunpack.c.l.b16 %v3462
        %v3684 = vunpack.c.h.b16 %v3462
        %v3685 = vunpack.c.l.b16 %v3463
        %v3686 = vunpack.c.h.b16 %v3463
        %v3687 = vunpack.c.l.b16 %v3464
        %v3688 = vunpack.c.h.b16 %v3464
        %v3689 = vunpack.c.l.b16 %v3465
        %v3690 = vunpack.c.h.b16 %v3465
        %v3691 = vunpack.c.l.b16 %v3466
        %v3692 = vunpack.c.h.b16 %v3466
        %v3693 = vunpack.c.l.b16 %v3467
        %v3694 = vunpack.c.h.b16 %v3467
        %v3695 = vunpack.c.l.b16 %v3468
        %v3696 = vunpack.c.h.b16 %v3468
        %v3697 = vunpack.c.l.b16 %v3469
        %v3698 = vunpack.c.h.b16 %v3469
        %v3699 = vunpack.c.l.b16 %v3470
        %v3700 = vunpack.c.h.b16 %v3470
        %v3701 = vunpack.c.l.b16 %v3471
        %v3702 = vunpack.c.h.b16 %v3471
        %v3703 = vunpack.c.l.b16 %v3472
        %v3704 = vunpack.c.h.b16 %v3472
        %v3705 = vunpack.c.l.b16 %v3473
        %v3706 = vunpack.c.h.b16 %v3473
        %v3707 = vunpack.c.l.b16 %v3474
        %v3708 = vunpack.c.h.b16 %v3474
        %v3709 = vunpack.c.l.b16 %v3475
        %v3710 = vunpack.c.h.b16 %v3475
        %v3711 = vunpack.c.l.b16 %v3476
        %v3712 = vunpack.c.h.b16 %v3476
        %v3713 = vunpack.c.l.b16 %v3477
        %v3714 = vunpack.c.h.b16 %v3477
        %v3715 = vunpack.c.l.b16 %v3478
        %v3716 = vunpack.c.h.b16 %v3478
        %v3717 = vunpack.c.l.b16 %v3479
        %v3718 = vunpack.c.h.b16 %v3479
        %v3719 = vunpack.c.l.b16 %v3480
        %v3720 = vunpack.c.h.b16 %v3480
        %v3721 = vunpack.c.l.b16 %v3481
        %v3722 = vunpack.c.h.b16 %v3481
        %v3723 = vunpack.c.l.b16 %v3482
        %v3724 = vunpack.c.h.b16 %v3482
        %v3725 = vunpack.c.l.b16 %v3483
        %v3726 = vunpack.c.h.b16 %v3483
        %v3727 = vunpack.c.l.b16 %v3484
        %v3728 = vunpack.c.h.b16 %v3484
        %v3729 = vunpack.c.l.b16 %v3485
        %v3730 = vunpack.c.h.b16 %v3485
        %v3731 = vunpack.c.l.b16 %v3486
        %v3732 = vunpack.c.h.b16 %v3486
        %v3733 = vunpack.c.l.b16 %v3487
        %v3734 = vunpack.c.h.b16 %v3487
        %v3735 = vunpack.c.l.b16 %v3488
        %v3736 = vunpack.c.h.b16 %v3488
        %v3737 = vunpack.c.l.b16 %v3489
        %v3738 = vunpack.c.h.b16 %v3489
        %v3739 = vunpack.c.l.b16 %v3490
        %v3740 = vunpack.c.h.b16 %v3490
        %v3741 = vunpack.c.l.b16 %v3491
        %v3742 = vunpack.c.h.b16 %v3491
        %v3743 = vunpack.c.l.b16 %v3492
        %v3744 = vunpack.c.h.b16 %v3492
        %v3745 = vpack.c.b16 %v3587, %v3585
        %v3746 = vpack.c.b16 %v3588, %v3586
        %v3747 = vpack.c.b16 %v3591, %v3589
        %v3748 = vpack.c.b16 %v3592, %v3590
        %v3749 = vpack.c.b16 %v3595, %v3593
        %v3750 = vpack.c.b16 %v3596, %v3594
        %v3751 = vpack.c.b16 %v3599, %v3597
        %v3752 = vpack.c.b16 %v3600, %v3598
        %v3753 = vpack.c.b16 %v3603, %v3601
        %v3754 = vpack.c.b16 %v3604, %v3602
        %v3755 = vpack.c.b16 %v3607, %v3605
        %v3756 = vpack.c.b16 %v3608, %v3606
        %v3757 = vpack.c.b16 %v3611, %v3609
        %v3758 = vpack.c.b16 %v3612, %v3610
        %v3759 = vpack.c.b16 %v3615, %v3613
        %v3760 = vpack.c.b16 %v3616, %v3614
        %v3761 = vpack.c.b16 %v3619, %v3617
        %v3762 = vpack.c.b16 %v3620, %v3618
        %v3763 = vpack.c.b16 %v3623, %v3621
        %v3764 = vpack.c.b16 %v3624, %v3622
        %v3765 = vpack.c.b16 %v3627, %v3625
        %v3766 = vpack.c.b16 %v3628, %v3626
        %v3767 = vpack.c.b16 %v3631, %v3629
        %v3768 = vpack.c.b16 %v3632, %v3630
        %v3769 = vpack.c.b16 %v3635, %v3633
        %v3770 = vpack.c.b16 %v3636, %v3634
        %v3771 = vpack.c.b16 %v3639, %v3637
        %v3772 = vpack.c.b16 %v3640, %v3638
        %v3773 = vpack.c.b16 %v3643, %v3641
        %v3774 = vpack.c.b16 %v3644, %v3642
        %v3775 = vpack.c.b16 %v3647, %v3645
        %v3776 = vpack.c.b16 %v3648, %v3646
        %v3777 = vpack.c.b16 %v3651, %v3649
        %v3778 = vpack.c.b16 %v3652, %v3650
        %v3779 = vpack.c.b16 %v3655, %v3653
        %v3780 = vpack.c.b16 %v3656, %v3654
        %v3781 = vpack.c.b16 %v3659, %v3657
        %v3782 = vpack.c.b16 %v3660, %v3658
        %v3783 = vpack.c.b16 %v3663, %v3661
        %v3784 = vpack.c.b16 %v3664, %v3662
        %v3785 = vpack.c.b16 %v3667, %v3665
        %v3786 = vpack.c.b16 %v3668, %v3666
        %v3787 = vpack.c.b16 %v3671, %v3669
        %v3788 = vpack.c.b16 %v3672, %v3670
        %v3789 = vpack.c.b16 %v3675, %v3673
        %v3790 = vpack.c.b16 %v3676, %v3674
        %v3791 = vpack.c.b16 %v3679, %v3677
        %v3792 = vpack.c.b16 %v3680, %v3678
        %v3793 = vpack.c.b16 %v3683, %v3681
        %v3794 = vpack.c.b16 %v3684, %v3682
        %v3795 = vpack.c.b16 %v3687, %v3685
        %v3796 = vpack.c.b16 %v3688, %v3686
        %v3797 = vpack.c.b16 %v3691, %v3689
        %v3798 = vpack.c.b16 %v3692, %v3690
        %v3799 = vpack.c.b16 %v3695, %v3693
        %v3800 = vpack.c.b16 %v3696, %v3694
        %v3801 = vpack.c.b16 %v3699, %v3697
        %v3802 = vpack.c.b16 %v3700, %v3698
        %v3803 = vpack.c.b16 %v3703, %v3701
        %v3804 = vpack.c.b16 %v3704, %v3702
        %v3805 = vpack.c.b16 %v3707, %v3705
        %v3806 = vpack.c.b16 %v3708, %v3706
        %v3807 = vpack.c.b16 %v3711, %v3709
        %v3808 = vpack.c.b16 %v3712, %v3710
        %v3809 = vpack.c.b16 %v3715, %v3713
        %v3810 = vpack.c.b16 %v3716, %v3714
        %v3811 = vpack.c.b16 %v3719, %v3717
        %v3812 = vpack.c.b16 %v3720, %v3718
        %v3813 = vpack.c.b16 %v3723, %v3721
        %v3814 = vpack.c.b16 %v3724, %v3722
        %v3815 = vpack.c.b16 %v3727, %v3725
        %v3816 = vpack.c.b16 %v3728, %v3726
        %v3817 = vpack.c.b16 %v3731, %v3729
        %v3818 = vpack.c.b16 %v3732, %v3730
        %v3819 = vpack.c.b16 %v3735, %v3733
        %v3820 = vpack.c.b16 %v3736, %v3734
        %v3821 = vpack.c.b16 %v3739, %v3737
        %v3822 = vpack.c.b16 %v3740, %v3738
        %v3823 = vpack.c.b16 %v3743, %v3741
        %v3824 = vpack.c.b16 %v3744, %v3742
        %3905 = vmatprep.subr.bf16.mxu0 %v3760
        %3906 = vmatpush1.bf16.msra.mxu0 %v3759
        %3907 = vmatprep.subr.bf16.mxu0 %v3758
        %3908 = vmatpush1.bf16.msra.mxu0 %v3757
        %3909 = vmatprep.subr.bf16.mxu0 %v3756
        %3910 = vmatpush1.bf16.msra.mxu0 %v3755
        %3911 = vmatprep.subr.bf16.mxu0 %v3754
        %3912 = vmatpush1.bf16.msra.mxu0 %v3753
        %3913 = vmatprep.subr.bf16.mxu0 %v3752
        %3914 = vmatpush1.bf16.msra.mxu0 %v3751
        %3915 = vmatprep.subr.bf16.mxu0 %v3750
        %3916 = vmatpush1.bf16.msra.mxu0 %v3749
        %3917 = vmatprep.subr.bf16.mxu0 %v3748
        %3918 = vmatpush1.bf16.msra.mxu0 %v3747
        %3919 = vmatprep.subr.bf16.mxu0 %v3746
        %3920 = vmatpush1.bf16.msra.mxu0 %v3745
        %3921 = vmatprep.subr.bf16.mxu0 %v3776
        %3922 = vmatpush2.bf16.msra.mxu0 %v3775
        %3923 = vmatprep.subr.bf16.mxu0 %v3774
        %3924 = vmatpush2.bf16.msra.mxu0 %v3773
        %3925 = vmatprep.subr.bf16.mxu0 %v3772
        %3926 = vmatpush2.bf16.msra.mxu0 %v3771
        %3927 = vmatprep.subr.bf16.mxu0 %v3770
        %3928 = vmatpush2.bf16.msra.mxu0 %v3769
        %3929 = vmatprep.subr.bf16.mxu0 %v3768
        %3930 = vmatpush2.bf16.msra.mxu0 %v3767
        %3931 = vmatprep.subr.bf16.mxu0 %v3766
        %3932 = vmatpush2.bf16.msra.mxu0 %v3765
        %3933 = vmatprep.subr.bf16.mxu0 %v3764
        %3934 = vmatpush2.bf16.msra.mxu0 %v3763
        %3935 = vmatprep.subr.bf16.mxu0 %v3762
        %3936 = vmatpush2.bf16.msra.mxu0 %v3761
        %3937 = vmatprep.mubr.bf16.mxu0 %v3394
        %3938 = vmatmul.mubr.bf16.gmra.mxu0 %v3388
        %v3939 = vpop.f32.mrf.mxu0
        %v3940 = vadd.f32 %v3498, %v3939
        %v3941 = vpop.f32.mrf.mxu0
        %v3942 = vadd.f32 %v3502, %v3941
        %v3943 = vpop.f32.mrf.mxu0
        %v3944 = vpop.f32.mrf.mxu0
        %3945 = vdwg.mxu0
        %3946 = vmatprep.subr.bf16.mxu0 %v3792
        %3947 = vmatpush1.bf16.msra.mxu0 %v3791
        %3948 = vmatprep.subr.bf16.mxu0 %v3790
        %3949 = vmatpush1.bf16.msra.mxu0 %v3789
        %3950 = vmatprep.subr.bf16.mxu0 %v3788
        %3951 = vmatpush1.bf16.msra.mxu0 %v3787
        %3952 = vmatprep.subr.bf16.mxu0 %v3786
        %3953 = vmatpush1.bf16.msra.mxu0 %v3785
        %3954 = vmatprep.subr.bf16.mxu0 %v3784
        %3955 = vmatpush1.bf16.msra.mxu0 %v3783
        %3956 = vmatprep.subr.bf16.mxu0 %v3782
        %3957 = vmatpush1.bf16.msra.mxu0 %v3781
        %3958 = vmatprep.subr.bf16.mxu0 %v3780
        %3959 = vmatpush1.bf16.msra.mxu0 %v3779
        %3960 = vmatprep.subr.bf16.mxu0 %v3778
        %3961 = vmatpush1.bf16.msra.mxu0 %v3777
        %3962 = vmatprep.subr.bf16.mxu0 %v3808
        %3963 = vmatpush2.bf16.msra.mxu0 %v3807
        %3964 = vmatprep.subr.bf16.mxu0 %v3806
        %3965 = vmatpush2.bf16.msra.mxu0 %v3805
        %3966 = vmatprep.subr.bf16.mxu0 %v3804
        %3967 = vmatpush2.bf16.msra.mxu0 %v3803
        %3968 = vmatprep.subr.bf16.mxu0 %v3802
        %3969 = vmatpush2.bf16.msra.mxu0 %v3801
        %3970 = vmatprep.subr.bf16.mxu0 %v3800
        %3971 = vmatpush2.bf16.msra.mxu0 %v3799
        %3972 = vmatprep.subr.bf16.mxu0 %v3798
        %3973 = vmatpush2.bf16.msra.mxu0 %v3797
        %3974 = vmatprep.subr.bf16.mxu0 %v3796
        %3975 = vmatpush2.bf16.msra.mxu0 %v3795
        %3976 = vmatprep.subr.bf16.mxu0 %v3794
        %3977 = vmatpush2.bf16.msra.mxu0 %v3793
        %3978 = vmatprep.mubr.bf16.mxu0 %v3406
        %3979 = vmatmul.mubr.bf16.gmra.mxu0 %v3400
        %v3980 = vpop.f32.mrf.mxu0
        %v3981 = vadd.f32 %v3940, %v3980
        %v3982 = vpop.f32.mrf.mxu0
        %v3983 = vadd.f32 %v3942, %v3982
        %v3984 = vpop.f32.mrf.mxu0
        %v3985 = vpop.f32.mrf.mxu0
        %3986 = vdwg.mxu0
        %3987 = vmatprep.subr.bf16.mxu0 %v3824
        %3988 = vmatpush1.bf16.msra.mxu0 %v3823
        %3989 = vmatprep.subr.bf16.mxu0 %v3822
        %3990 = vmatpush1.bf16.msra.mxu0 %v3821
        %3991 = vmatprep.subr.bf16.mxu0 %v3820
        %3992 = vmatpush1.bf16.msra.mxu0 %v3819
        %3993 = vmatprep.subr.bf16.mxu0 %v3818
        %3994 = vmatpush1.bf16.msra.mxu0 %v3817
        %3995 = vmatprep.subr.bf16.mxu0 %v3816
        %3996 = vmatpush1.bf16.msra.mxu0 %v3815
        %3997 = vmatprep.subr.bf16.mxu0 %v3814
        %3998 = vmatpush1.bf16.msra.mxu0 %v3813
        %3999 = vmatprep.subr.bf16.mxu0 %v3812
        %4000 = vmatpush1.bf16.msra.mxu0 %v3811
        %4001 = vmatprep.subr.bf16.mxu0 %v3810
        %4002 = vmatpush1.bf16.msra.mxu0 %v3809
        %4003 = vmatprep.subr.bf16.mxu0 0
        %4004 = vmatpush2.bf16.msra.mxu0 0
        %4005 = vmatprep.subr.bf16.mxu0 0
        %4006 = vmatpush2.bf16.msra.mxu0 0
        %4007 = vmatprep.subr.bf16.mxu0 0
        %4008 = vmatpush2.bf16.msra.mxu0 0
        %4009 = vmatprep.subr.bf16.mxu0 0
        %4010 = vmatpush2.bf16.msra.mxu0 0
        %4011 = vmatprep.subr.bf16.mxu0 0
        %4012 = vmatpush2.bf16.msra.mxu0 0
        %4013 = vmatprep.subr.bf16.mxu0 0
        %4014 = vmatpush2.bf16.msra.mxu0 0
        %4015 = vmatprep.subr.bf16.mxu0 0
        %4016 = vmatpush2.bf16.msra.mxu0 0
        %4017 = vmatprep.subr.bf16.mxu0 0
        %4018 = vmatpush2.bf16.msra.mxu0 0
        %4019 = vmatprep.mubr.bf16.mxu0 0
        %4020 = vmatmul.mubr.bf16.gmra.mxu0 %v3412
        %v4021 = vpop.f32.mrf.mxu0
        %v4022 = vadd.f32 %v3981, %v4021
        %v4023 = vpop.f32.mrf.mxu0
        %v4024 = vadd.f32 %v3983, %v4023
        %v4025 = vpop.f32.mrf.mxu0
        %v4026 = vpop.f32.mrf.mxu0
        %4027 = vdwg.mxu0
        %v4028 = vpack.c.bf16 %v4022, %v4022
        %v4029 = vpack.c.bf16 %v4024, %v4024
        %v4030 = vld [vmem:[%s21] sm:$0xf]
        %v4031 = vld [vmem:[%s21 + $0x4] sm:$0xf]
        %v4032 = vld [vmem:[%s21 + $0x8] sm:$0xf]
        %v4033 = vld [vmem:[%s21 + $0xc] sm:$0xf]
        %v4034 = vld [vmem:[%s21 + $0x10] sm:$0xf]
        %v4035 = vld [vmem:[%s21 + $0x14] sm:$0xf]
        %v4036 = vld [vmem:[%s21 + $0x18] sm:$0xf]
        %v4037 = vld [vmem:[%s21 + $0x1c] sm:$0xf]
        %v4038 = vld [vmem:[%s21 + $0x20] sm:$0xf]
        %v4039 = vld [vmem:[%s21 + $0x24] sm:$0xf]
        %v4040 = vld [vmem:[%s21 + $0x28] sm:$0xf]
        %v4041 = vld [vmem:[%s21 + $0x2c] sm:$0xf]
        %v4042 = vld [vmem:[%s21 + $0x30] sm:$0xf]
        %v4043 = vld [vmem:[%s21 + $0x34] sm:$0xf]
        %v4044 = vld [vmem:[%s21 + $0x38] sm:$0xf]
        %v4045 = vld [vmem:[%s21 + $0x3c] sm:$0xf]
        %v4046 = vld [vmem:[%s21 + $0x40] sm:$0xf]
        %v4047 = vld [vmem:[%s21 + $0x44] sm:$0xf]
        %v4048 = vld [vmem:[%s21 + $0x48] sm:$0xf]
        %v4049 = vld [vmem:[%s21 + $0x4c] sm:$0xf]
        %v4050 = vld [vmem:[%s22] sm:$0x1]
        %v4052 = vlaneseq
        %v4053 = vshrl.u32 %v4052, 7
        %v4054 = vsub.s32 0, %v4053
        %v4055 = vrot.slane %v4050, %v4054
        %v4077 = vunpack.c.l.b16 %v4030
        %v4078 = vunpack.c.l.b16 %v4031
        %v4079 = vunpack.c.l.b16 %v4032
        %v4080 = vunpack.c.l.b16 %v4033
        %v4081 = vunpack.c.l.b16 %v4034
        %v4082 = vunpack.c.l.b16 %v4035
        %v4083 = vunpack.c.l.b16 %v4036
        %v4084 = vunpack.c.l.b16 %v4037
        %v4085 = vunpack.c.l.b16 %v4038
        %v4086 = vunpack.c.l.b16 %v4039
        %v4087 = vunpack.c.l.b16 %v4040
        %v4088 = vunpack.c.l.b16 %v4041
        %v4089 = vunpack.c.l.b16 %v4042
        %v4090 = vunpack.c.l.b16 %v4043
        %v4091 = vunpack.c.l.b16 %v4044
        %v4092 = vunpack.c.l.b16 %v4045
        %v4093 = vunpack.c.l.b16 %v4046
        %v4094 = vunpack.c.l.b16 %v4047
        %v4095 = vunpack.c.l.b16 %v4048
        %v4096 = vunpack.c.l.b16 %v4049
        %v4097 = vpack.c.b16 %v4078, %v4077
        %v4098 = vpack.c.b16 %v4080, %v4079
        %v4099 = vpack.c.b16 %v4082, %v4081
        %v4100 = vpack.c.b16 %v4084, %v4083
        %v4101 = vpack.c.b16 %v4086, %v4085
        %v4102 = vpack.c.b16 %v4088, %v4087
        %v4103 = vpack.c.b16 %v4090, %v4089
        %v4104 = vpack.c.b16 %v4092, %v4091
        %v4105 = vpack.c.b16 %v4094, %v4093
        %v4106 = vpack.c.b16 %v4096, %v4095
        %v4118 = vsel %vm1658, %v4029, 0
        %4120 = vmatprep.subr.bf16.mxu0 0
        %4121 = vmatpush1.bf16.msra.mxu0 %v4104
        %4122 = vmatprep.subr.bf16.mxu0 0
        %4123 = vmatpush1.bf16.msra.mxu0 %v4103
        %4124 = vmatprep.subr.bf16.mxu0 0
        %4125 = vmatpush1.bf16.msra.mxu0 %v4102
        %4126 = vmatprep.subr.bf16.mxu0 0
        %4127 = vmatpush1.bf16.msra.mxu0 %v4101
        %4128 = vmatprep.subr.bf16.mxu0 0
        %4129 = vmatpush1.bf16.msra.mxu0 %v4100
        %4130 = vmatprep.subr.bf16.mxu0 0
        %4131 = vmatpush1.bf16.msra.mxu0 %v4099
        %4132 = vmatprep.subr.bf16.mxu0 0
        %4133 = vmatpush1.bf16.msra.mxu0 %v4098
        %4134 = vmatprep.subr.bf16.mxu0 0
        %4135 = vmatpush1.bf16.msra.mxu0 %v4097
        %4136 = vmatprep.subr.bf16.mxu0 0
        %4137 = vmatpush2.bf16.msra.mxu0 0
        %4138 = vmatprep.subr.bf16.mxu0 0
        %4139 = vmatpush2.bf16.msra.mxu0 0
        %4140 = vmatprep.subr.bf16.mxu0 0
        %4141 = vmatpush2.bf16.msra.mxu0 0
        %4142 = vmatprep.subr.bf16.mxu0 0
        %4143 = vmatpush2.bf16.msra.mxu0 0
        %4144 = vmatprep.subr.bf16.mxu0 0
        %4145 = vmatpush2.bf16.msra.mxu0 0
        %4146 = vmatprep.subr.bf16.mxu0 0
        %4147 = vmatpush2.bf16.msra.mxu0 0
        %4148 = vmatprep.subr.bf16.mxu0 0
        %4149 = vmatpush2.bf16.msra.mxu0 %v4106
        %4150 = vmatprep.subr.bf16.mxu0 0
        %4151 = vmatpush2.bf16.msra.mxu0 %v4105
        %4152 = vmatprep.mubr.bf16.mxu0 %v4118
        %4153 = vmatmul.mubr.bf16.gmra.mxu0 %v4028
        %v4154 = vpop.f32.mrf.mxu0
        %v4155 = vadd.f32 %v4055, %v4154
        %v4156 = vpop.f32.mrf.mxu0
        %v4157 = vpop.f32.mrf.mxu0
        %v4158 = vpop.f32.mrf.mxu0
        %4159 = vdwg.mxu0
        %vm4160 = vcmask 76800
        %4161 = vst.msk [vmem:[%s735] sm:$0xf] %vm4160, %v4155
        %v4162 = vsel %vm4160, %v4155, -inf
        %4163 = vmax.xlane.f32.xlu0 %v4162
        %v4164 = vpop.xlane.xlu0 %4163
        %v4165 = vsub.f32 %v4155, %v4164
        %v4166 = vmul.f32 %v4165, 1.442695
        %v4167 = vpow.pop %v4166
        %v4168 = vsel %vm4160, %v4167, 0.0
        %4169 = vadd.xlane.f32.xlu0 %v4168
        %v4170 = vpop.xlane.xlu0 %4169
        %v4171 = vlog2.pop %v4170
        %v4172 = vmul.f32 %v4171, 0.6931472
        %v4173 = vadd.f32 %v4164, %v4172
        %v4174 = vsub.f32 %v4155, %v4173
        %4175 = vst.msk [vmem:[%s742] sm:$0xf] %vm4160, %v4174
        %s4176 = sand.u32 %s538, 1
        %s4177 = scalar_lea.sflag [#allocation6], %s4176
        %s4178 = sand.u32 %s538, 1
        %s4179 = smul.addr %s4178, 4
        %s4180 = scalar_lea.vmem [#allocation5], %s4179
        %s4181 = sand.u32 %s564, 1
        %s4182 = scalar_lea.sflag [#allocation8], %s4181
        %s4183 = sand.u32 %s564, 1
        %s4184 = smul.addr %s4183, 4
        %s4185 = scalar_lea.vmem [#allocation7], %s4184
        // Predicated region
        $region113: #{tpu_custom_call.1} parent=111 // pred_check
          %p4186 = pneg %p548
        $region114: #{tpu_custom_call.1} parent=111 // pred_check_branch
          %4188 = sbr.rel (%p4186) target = $region116
        $region115: #{tpu_custom_call.1} parent=111 // pred_region
          %s4190 = ssub.s32 64, 64
          %4191 = vsyncadd %s4177, %s4190
          %s4192 = smul.addr %s42, 64
          %s4193 = scalar_lea.hbm %s23, %s4192
          %s4195 = sshll.u32 %s4180, 4
          %s4196 = int_to_ptr.vmem [resolvable:$true] %s4195
          %4198 = dma.vmem_to_hbm [thread:$0]  %s4196, 64, %s4193, %s4177
        $region116: #{tpu_custom_call.1} parent=111 // pred_fallthru
          _
        // Predicated region
        $region117: #{tpu_custom_call.1} parent=111 // pred_check
          %p4199 = pneg %p574
        $region118: #{tpu_custom_call.1} parent=111 // pred_check_branch
          %4201 = sbr.rel (%p4199) target = $region120
        $region119: #{tpu_custom_call.1} parent=111 // pred_region
          %s4203 = ssub.s32 64, 64
          %4204 = vsyncadd %s4182, %s4203
          %s4205 = smul.addr %s42, 64
          %s4206 = scalar_lea.hbm %s24, %s4205
          %s4208 = sshll.u32 %s4185, 4
          %s4209 = int_to_ptr.vmem [resolvable:$true] %s4208
          %4211 = dma.vmem_to_hbm [thread:$0]  %s4209, 64, %s4206, %s4182
        $region120: #{tpu_custom_call.1} parent=111 // pred_fallthru
          _
      $region112: #{tpu_custom_call.1} parent=5 // pred_fallthru
        _
      %p4212 = scmp.le.s32.totalorder 2, %s37
      // Predicated region
      $region121: #{tpu_custom_call.1} parent=5 // pred_check
        %p4213 = pneg %p4212
      $region122: #{tpu_custom_call.1} parent=5 // pred_check_branch
        %4215 = sbr.rel (%p4213) target = $region124
      $region123: #{tpu_custom_call.1} parent=5 // pred_region
        %s4216 = ssub.s32 %s37, 2
        // Predicated region
        $region125: #{tpu_custom_call.1} parent=123 // pred_check
          %p4217 = pneg %p554
        $region126: #{tpu_custom_call.1} parent=123 // pred_check_branch
          %4219 = sbr.rel (%p4217) target = $region128
        $region127: #{tpu_custom_call.1} parent=123 // pred_region
          %s4220 = sand.u32 %s539, 1
          %s4221 = scalar_lea.sflag [#allocation6], %s4220
          %s4222 = sand.u32 %s539, 1
          %s4223 = smul.addr %s4222, 4
          %s4224 = scalar_lea.vmem [#allocation5], %s4223
          %4225 = dma.done %s4221, 64
        $region128: #{tpu_custom_call.1} parent=123 // pred_fallthru
          _
        // Predicated region
        $region129: #{tpu_custom_call.1} parent=123 // pred_check
          %p4226 = pneg %p580
        $region130: #{tpu_custom_call.1} parent=123 // pred_check_branch
          %4228 = sbr.rel (%p4226) target = $region132
        $region131: #{tpu_custom_call.1} parent=123 // pred_region
          %s4229 = sand.u32 %s565, 1
          %s4230 = scalar_lea.sflag [#allocation8], %s4229
          %s4231 = sand.u32 %s565, 1
          %s4232 = smul.addr %s4231, 4
          %s4233 = scalar_lea.vmem [#allocation7], %s4232
          %4234 = dma.done %s4230, 64
        $region132: #{tpu_custom_call.1} parent=123 // pred_fallthru
          _
      $region124: #{tpu_custom_call.1} parent=5 // pred_fallthru
        _
    $region6: #{tpu_custom_call.1} parent=1 // loop_footer
      %s41 = sadd.s32 1, %s37
    $region7: #{tpu_custom_call.1} parent=1 // loop_footer_branch
      %36 = sbr.rel target = $region3
    $region8: #{tpu_custom_call.1} parent=1 // loop_exit
      _
    %4235 = vsyncpa [#allocation6], 1
    %s4236 = scalar_lea.sflag [#allocation6], 1
    %4237 = vsyncpa %s4236, 1
    %4238 = vsyncpa [#allocation8], 1
    %s4239 = scalar_lea.sflag [#allocation8], 1
    %4240 = vsyncpa %s4239, 1

</llo_original>
